<compile_context>
chip_gen: v5e
topology: v5e:2x2
jax: 0.10.0
libtpu: 0.0.40
codegen_flags: <defaults>
</compile_context>

<pallas_src>
import jax
import jax.numpy as jnp
from jax.experimental import pallas as pl
from jax.experimental.pallas import tpu as pltpu  # noqa: F401  (TPU backend)

IMG_HEIGHT = 64
IMG_WIDTH = 84
HIDDEN = 256


# ----------------------------------------------------------------------------
# Pallas kernel 1: fused conv-as-matmul  Y = relu(cols @ W + b)
#   bf16 operands on the MXU, f32 accumulate / epilogue, bf16 output.
# ----------------------------------------------------------------------------
def _conv_mm_kernel(cols_ref, w_ref, b_ref, o_ref):
    acc = jnp.dot(cols_ref[...], w_ref[...], preferred_element_type=jnp.float32)
    acc = jnp.maximum(acc + b_ref[...], 0.0)        # bias + ReLU in f32
    o_ref[...] = acc.astype(o_ref.dtype)


def _conv_matmul_relu(cols, w_mat, b):
    M, K = cols.shape
    K2, N = w_mat.shape
    assert K == K2, (K, K2)
    return pl.pallas_call(
        _conv_mm_kernel,
        out_shape=jax.ShapeDtypeStruct((M, N), jnp.bfloat16),
        grid=(1,),
        in_specs=[
            pl.BlockSpec((M, K), lambda i: (0, 0)),
            pl.BlockSpec((K, N), lambda i: (0, 0)),
            pl.BlockSpec((1, N), lambda i: (0, 0)),
        ],
        out_specs=pl.BlockSpec((M, N), lambda i: (0, 0)),
    )(cols, w_mat, b)


def _conv2d_relu(x_nhwc, w_mat, b, ksize, stride):
    """Conv2d(valid, square stride) + ReLU.  Patch extraction is XLA glue."""
    # TODO(synk): im2col stays outside the kernel; an in-kernel strided patch
    # gather would need sublane-crossing reshapes / strided multi-dim gathers
    # that Mosaic does not lower cleanly.
    B, H, W, C = x_nhwc.shape
    OC = w_mat.shape[1]
    OH = (H - ksize) // stride + 1
    OW = (W - ksize) // stride + 1
    patches = []
    for i in range(ksize):
        for j in range(ksize):
            p = jax.lax.slice(
                x_nhwc,
                (0, i, j, 0),
                (B, i + (OH - 1) * stride + 1, j + (OW - 1) * stride + 1, C),
                (1, stride, stride, 1),
            )  # (B, OH, OW, C)
            patches.append(p[:, :, :, None, :])
    cols = jnp.concatenate(patches, axis=3).reshape(B * OH * OW, ksize * ksize * C)
    y = _conv_matmul_relu(cols, w_mat, b)            # fused conv + bias + relu
    return y.reshape(B, OH, OW, OC)


# ----------------------------------------------------------------------------
# Pallas kernel 2: fused FC stage.
#   latents = relu(feat @ [actor_fc|critic_fc] + b)       (B, 512) lane-dense
#   action_mean = tanh(latents[:, :256] @ mu_w + mu_b)
#   state_value =      latents[:, 256:] @ v_w  + v_b
# ----------------------------------------------------------------------------
def _heads_kernel(feat_ref, fcw_ref, fcb_ref, muw_ref, mub_ref, vw_ref, vb_ref,
                  mean_ref, value_ref):
    lat = jnp.dot(feat_ref[...], fcw_ref[...], preferred_element_type=jnp.float32)
    lat = jnp.maximum(lat + fcb_ref[...], 0.0)               # (B, 2*HIDDEN) f32
    actor = lat[:, :HIDDEN].astype(jnp.bfloat16)
    critic = lat[:, HIDDEN:].astype(jnp.bfloat16)
    mu = jnp.dot(actor, muw_ref[...], preferred_element_type=jnp.float32) + mub_ref[...]
    mean_ref[...] = jnp.tanh(mu)
    value_ref[...] = (jnp.dot(critic, vw_ref[...], preferred_element_type=jnp.float32)
                      + vb_ref[...])


def _heads(feat, fc_w, fc_b, mu_w, mu_b, v_w, v_b):
    B, F = feat.shape
    H2 = fc_w.shape[1]          # 2 * HIDDEN
    A = mu_w.shape[1]
    return pl.pallas_call(
        _heads_kernel,
        out_shape=(jax.ShapeDtypeStruct((B, A), jnp.float32),
                   jax.ShapeDtypeStruct((B, 1), jnp.float32)),
        grid=(1,),
        in_specs=[
            pl.BlockSpec((B, F), lambda i: (0, 0)),
            pl.BlockSpec((F, H2), lambda i: (0, 0)),
            pl.BlockSpec((1, H2), lambda i: (0, 0)),
            pl.BlockSpec((HIDDEN, A), lambda i: (0, 0)),
            pl.BlockSpec((1, A), lambda i: (0, 0)),
            pl.BlockSpec((HIDDEN, 1), lambda i: (0, 0)),
            pl.BlockSpec((1, 1), lambda i: (0, 0)),
        ],
        out_specs=(pl.BlockSpec((B, A), lambda i: (0, 0)),
                   pl.BlockSpec((B, 1), lambda i: (0, 0))),
    )(feat, fc_w, fc_b, mu_w, mu_b, v_w, v_b)


# ----------------------------------------------------------------------------
# Parameter construction (torch layout) and one-time kernel-layout preparation
# ----------------------------------------------------------------------------
def _conv_out(hw, k, s):
    return ((hw[0] - k) // s + 1, (hw[1] - k) // s + 1)


def init_params(key, input_channels, action_dim):
    h, w = (IMG_HEIGHT, IMG_WIDTH)
    h, w = _conv_out((h, w), 8, 4)
    h, w = _conv_out((h, w), 4, 2)
    h, w = _conv_out((h, w), 3, 1)
    flattened_size = h * w * 64

    keys = jax.random.split(key, 16)
    it = iter(keys)

    def uni(shape, fan_in):
        bound = 1.0 / (fan_in ** 0.5)
        return jax.random.uniform(next(it), shape, jnp.float32, -bound, bound)

    p = {
        "conv1_w": uni((32, input_channels, 8, 8), input_channels * 8 * 8),
        "conv1_b": uni((32,), input_channels * 8 * 8),
        "conv2_w": uni((64, 32, 4, 4), 32 * 4 * 4),
        "conv2_b": uni((64,), 32 * 4 * 4),
        "conv3_w": uni((64, 64, 3, 3), 64 * 3 * 3),
        "conv3_b": uni((64,), 64 * 3 * 3),
        # FC weights stored transposed: (in_features, out_features), rows in
        # torch's NCHW-flatten order.
        "actor_fc_w": uni((flattened_size, 256), flattened_size),
        "actor_fc_b": uni((256,), flattened_size),
        "actor_mu_w": uni((256, action_dim), 256),
        "actor_mu_b": uni((action_dim,), 256),
        "actor_log_std": jnp.zeros((1, action_dim), jnp.float32),
        "critic_fc_w": uni((flattened_size, 256), flattened_size),
        "critic_fc_b": uni((256,), flattened_size),
        "critic_value_w": uni((256, 1), 256),
        "critic_value_b": uni((1,), 256),
    }
    return p, flattened_size


def prepare_params(params):
    """One-time (outside jit) conversion of torch-layout params to kernel layout."""
    h1, w1 = _conv_out((IMG_HEIGHT, IMG_WIDTH), 8, 4)
    h2, w2 = _conv_out((h1, w1), 4, 2)
    h3, w3 = _conv_out((h2, w2), 3, 1)

    def conv_mat(w):  # (OC, IC, KH, KW) -> (KH*KW*IC, OC), bf16
        oc, ic, kh, kw = w.shape
        return jnp.transpose(w, (2, 3, 1, 0)).reshape(kh * kw * ic, oc).astype(jnp.bfloat16)

    # FC row permutation: row r of the kernel weight corresponds to NHWC-flatten
    # feature (h, w, c); pull the torch row at the matching NCHW-flatten index,
    # so the forward pass can flatten conv3's NHWC output with no transpose.
    r = jnp.arange(h3 * w3 * 64)
    hh = r // (w3 * 64)
    ww = (r // 64) % w3
    cc = r % 64
    perm = (cc * h3 + hh) * w3 + ww

    fc_w = jnp.concatenate([params["actor_fc_w"][perm, :],
                            params["critic_fc_w"][perm, :]], axis=1)   # (F, 512)
    fc_b = jnp.concatenate([params["actor_fc_b"], params["critic_fc_b"]])

    return {
        "conv1_w": conv_mat(params["conv1_w"]), "conv1_b": params["conv1_b"].reshape(1, -1),
        "conv2_w": conv_mat(params["conv2_w"]), "conv2_b": params["conv2_b"].reshape(1, -1),
        "conv3_w": conv_mat(params["conv3_w"]), "conv3_b": params["conv3_b"].reshape(1, -1),
        "fc_w": fc_w.astype(jnp.bfloat16),
        "fc_b": fc_b.reshape(1, -1).astype(jnp.float32),
        "mu_w": params["actor_mu_w"].astype(jnp.bfloat16),
        "mu_b": params["actor_mu_b"].reshape(1, -1).astype(jnp.float32),
        "v_w": params["critic_value_w"].astype(jnp.bfloat16),
        "v_b": params["critic_value_b"].reshape(1, -1).astype(jnp.float32),
        "log_std": params["actor_log_std"],
    }


# ----------------------------------------------------------------------------
# Forward pass (mirrors ActorCritic.forward)
# ----------------------------------------------------------------------------
def actor_critic_forward(prep, x_nchw):
    if x_nchw.ndim == 3:                              # torch: x.unsqueeze(0)
        x_nchw = x_nchw[None]
    # NCHW -> NHWC once on the raw input; activations stay bf16 end-to-end.
    x = jnp.transpose(x_nchw, (0, 2, 3, 1)).astype(jnp.bfloat16)

    x = _conv2d_relu(x, prep["conv1_w"], prep["conv1_b"], 8, 4)
    x = _conv2d_relu(x, prep["conv2_w"], prep["conv2_b"], 4, 2)
    x = _conv2d_relu(x, prep["conv3_w"], prep["conv3_b"], 3, 1)

    B = x.shape[0]
    feat = x.reshape(B, -1)   # NHWC flatten; FC weight rows were pre-permuted to match

    action_mean, state_value = _heads(feat, prep["fc_w"], prep["fc_b"],
                                      prep["mu_w"], prep["mu_b"],
                                      prep["v_w"], prep["v_b"])
    # action_std = exp(log_std).expand_as(action_mean): tiny elementwise, plain JAX.
    action_std = jnp.broadcast_to(jnp.exp(prep["log_std"]), action_mean.shape)
    return action_mean, action_std, state_value


if __name__ == "__main__":
    key = jax.random.PRNGKey(0)
    k_param, k_x = jax.random.split(key)

    INPUT_CHANNELS = 4
    ACTION_DIM = 3
    BATCH = 2

    params, flattened_size = init_params(k_param, INPUT_CHANNELS, ACTION_DIM)
    assert flattened_size == 4 * 7 * 64  # 1792, from (64, 84) input

    prep = prepare_params(params)        # one-time layout / bf16 preparation

    x = jax.random.normal(k_x, (BATCH, INPUT_CHANNELS, IMG_HEIGHT, IMG_WIDTH), jnp.float32)

    fwd = jax.jit(actor_critic_forward)
    action_mean, action_std, state_value = fwd(prep, x)
    jax.block_until_ready((action_mean, action_std, state_value))

    assert action_mean.shape == (BATCH, ACTION_DIM)
    assert action_std.shape == (BATCH, ACTION_DIM)
    assert state_value.shape == (BATCH, 1)
    assert bool(jnp.all(jnp.abs(action_mean) <= 1.0))
    assert bool(jnp.all(action_std == 1.0))  # log_std initialized to zeros

    print("KERNEL_OK")
</pallas_src>

<mosaic_0001>
module attributes {stable_mosaic.version = 11 : i64} {
  func.func @_conv_mm_kernel(%arg0: i32, %arg1: memref<600x256xbf16, #tpu.memory_space<vmem>>, %arg2: memref<256x32xbf16, #tpu.memory_space<vmem>>, %arg3: memref<1x32xf32, #tpu.memory_space<vmem>>, %arg4: memref<600x32xbf16, #tpu.memory_space<vmem>>) attributes {dimension_semantics = [#tpu.dimension_semantics<arbitrary>], iteration_bounds = array<i64: 1>, scalar_prefetch = 0 : i64, scratch_operands = 0 : i64, tpu.core_type = #tpu.core_type<tc>, window_params = [{pipeline_mode = #tpu.pipeline_mode<synchronous>, transform_indices = @transform_0, window_bounds = array<i64: 600, 256>}, {pipeline_mode = #tpu.pipeline_mode<synchronous>, transform_indices = @transform_1, window_bounds = array<i64: 256, 32>}, {pipeline_mode = #tpu.pipeline_mode<synchronous>, transform_indices = @transform_2, window_bounds = array<i64: 1, 32>}, {pipeline_mode = #tpu.pipeline_mode<synchronous>, transform_indices = @transform_3, window_bounds = array<i64: 600, 32>}]} {
    %c0 = arith.constant 0 : index
    %c0_0 = arith.constant 0 : index
    %0 = vector.load %arg1[%c0, %c0_0] : memref<600x256xbf16, #tpu.memory_space<vmem>>, vector<600x256xbf16>
    %c0_1 = arith.constant 0 : index
    %c0_2 = arith.constant 0 : index
    %1 = vector.load %arg2[%c0_1, %c0_2] : memref<256x32xbf16, #tpu.memory_space<vmem>>, vector<256x32xbf16>
    %cst = arith.constant dense<0.000000e+00> : vector<600x32xf32>
    %2 = tpu.matmul %0, %1, %cst {dimension_numbers = #tpu.dot_dimension_numbers<[1], [0], [0], [1], [0, 0, 1, 1], [], []>} : vector<600x256xbf16>, vector<256x32xbf16>, vector<600x32xf32> -> vector<600x32xf32>
    %c0_3 = arith.constant 0 : index
    %c0_4 = arith.constant 0 : index
    %3 = vector.load %arg3[%c0_3, %c0_4] : memref<1x32xf32, #tpu.memory_space<vmem>>, vector<1x32xf32>
    %4 = vector.broadcast %3 : vector<1x32xf32> to vector<600x32xf32>
    %5 = arith.addf %2, %4 : vector<600x32xf32>
    %cst_5 = arith.constant 0.000000e+00 : f32
    %6 = vector.broadcast %cst_5 : f32 to vector<600x32xf32>
    %7 = arith.maximumf %5, %6 : vector<600x32xf32>
    %8 = arith.truncf %7 : vector<600x32xf32> to vector<600x32xbf16>
    %c0_6 = arith.constant 0 : index
    %c0_7 = arith.constant 0 : index
    %9 = vector.load %arg4[%c0_6, %c0_7] : memref<600x32xbf16, #tpu.memory_space<vmem>>, vector<600x32xbf16>
    tpu.vector_store %arg4[%c0_6, %c0_7], %8 {strides = array<i32>} : memref<600x32xbf16, #tpu.memory_space<vmem>>, vector<600x32xbf16>,
    return
  }
  func.func @transform_0(%arg0: i32) -> (i32, i32) {
    %c0_i32 = arith.constant 0 : i32
    %c0_i32_0 = arith.constant 0 : i32
    %c0_i32_1 = arith.constant 0 : i32
    return %c0_i32, %c0_i32_0 : i32, i32
  }
  func.func @transform_1(%arg0: i32) -> (i32, i32) {
    %c0_i32 = arith.constant 0 : i32
    %c0_i32_0 = arith.constant 0 : i32
    %c0_i32_1 = arith.constant 0 : i32
    return %c0_i32, %c0_i32_0 : i32, i32
  }
  func.func @transform_2(%arg0: i32) -> (i32, i32) {
    %c0_i32 = arith.constant 0 : i32
    %c0_i32_0 = arith.constant 0 : i32
    %c0_i32_1 = arith.constant 0 : i32
    return %c0_i32, %c0_i32_0 : i32, i32
  }
  func.func @transform_3(%arg0: i32) -> (i32, i32) {
    %c0_i32 = arith.constant 0 : i32
    %c0_i32_0 = arith.constant 0 : i32
    %c0_i32_1 = arith.constant 0 : i32
    return %c0_i32, %c0_i32_0 : i32, i32
  }
}

module attributes {stable_mosaic.version = 11 : i64} {
  func.func @_conv_mm_kernel(%arg0: i32, %arg1: memref<108x512xbf16, #tpu.memory_space<vmem>>, %arg2: memref<512x64xbf16, #tpu.memory_space<vmem>>, %arg3: memref<1x64xf32, #tpu.memory_space<vmem>>, %arg4: memref<108x64xbf16, #tpu.memory_space<vmem>>) attributes {dimension_semantics = [#tpu.dimension_semantics<arbitrary>], iteration_bounds = array<i64: 1>, scalar_prefetch = 0 : i64, scratch_operands = 0 : i64, tpu.core_type = #tpu.core_type<tc>, window_params = [{pipeline_mode = #tpu.pipeline_mode<synchronous>, transform_indices = @transform_0, window_bounds = array<i64: 108, 512>}, {pipeline_mode = #tpu.pipeline_mode<synchronous>, transform_indices = @transform_1, window_bounds = array<i64: 512, 64>}, {pipeline_mode = #tpu.pipeline_mode<synchronous>, transform_indices = @transform_2, window_bounds = array<i64: 1, 64>}, {pipeline_mode = #tpu.pipeline_mode<synchronous>, transform_indices = @transform_3, window_bounds = array<i64: 108, 64>}]} {
    %c0 = arith.constant 0 : index
    %c0_0 = arith.constant 0 : index
    %0 = vector.load %arg1[%c0, %c0_0] : memref<108x512xbf16, #tpu.memory_space<vmem>>, vector<108x512xbf16>
    %c0_1 = arith.constant 0 : index
    %c0_2 = arith.constant 0 : index
    %1 = vector.load %arg2[%c0_1, %c0_2] : memref<512x64xbf16, #tpu.memory_space<vmem>>, vector<512x64xbf16>
    %cst = arith.constant dense<0.000000e+00> : vector<108x64xf32>
    %2 = tpu.matmul %0, %1, %cst {dimension_numbers = #tpu.dot_dimension_numbers<[1], [0], [0], [1], [0, 0, 1, 1], [], []>} : vector<108x512xbf16>, vector<512x64xbf16>, vector<108x64xf32> -> vector<108x64xf32>
    %c0_3 = arith.constant 0 : index
    %c0_4 = arith.constant 0 : index
    %3 = vector.load %arg3[%c0_3, %c0_4] : memref<1x64xf32, #tpu.memory_space<vmem>>, vector<1x64xf32>
    %4 = vector.broadcast %3 : vector<1x64xf32> to vector<108x64xf32>
    %5 = arith.addf %2, %4 : vector<108x64xf32>
    %cst_5 = arith.constant 0.000000e+00 : f32
    %6 = vector.broadcast %cst_5 : f32 to vector<108x64xf32>
    %7 = arith.maximumf %5, %6 : vector<108x64xf32>
    %8 = arith.truncf %7 : vector<108x64xf32> to vector<108x64xbf16>
    %c0_6 = arith.constant 0 : index
    %c0_7 = arith.constant 0 : index
    %9 = vector.load %arg4[%c0_6, %c0_7] : memref<108x64xbf16, #tpu.memory_space<vmem>>, vector<108x64xbf16>
    tpu.vector_store %arg4[%c0_6, %c0_7], %8 {strides = array<i32>} : memref<108x64xbf16, #tpu.memory_space<vmem>>, vector<108x64xbf16>,
    return
  }
  func.func @transform_0(%arg0: i32) -> (i32, i32) {
    %c0_i32 = arith.constant 0 : i32
    %c0_i32_0 = arith.constant 0 : i32
    %c0_i32_1 = arith.constant 0 : i32
    return %c0_i32, %c0_i32_0 : i32, i32
  }
  func.func @transform_1(%arg0: i32) -> (i32, i32) {
    %c0_i32 = arith.constant 0 : i32
    %c0_i32_0 = arith.constant 0 : i32
    %c0_i32_1 = arith.constant 0 : i32
    return %c0_i32, %c0_i32_0 : i32, i32
  }
  func.func @transform_2(%arg0: i32) -> (i32, i32) {
    %c0_i32 = arith.constant 0 : i32
    %c0_i32_0 = arith.constant 0 : i32
    %c0_i32_1 = arith.constant 0 : i32
    return %c0_i32, %c0_i32_0 : i32, i32
  }
  func.func @transform_3(%arg0: i32) -> (i32, i32) {
    %c0_i32 = arith.constant 0 : i32
    %c0_i32_0 = arith.constant 0 : i32
    %c0_i32_1 = arith.constant 0 : i32
    return %c0_i32, %c0_i32_0 : i32, i32
  }
}

module attributes {stable_mosaic.version = 11 : i64} {
  func.func @_conv_mm_kernel(%arg0: i32, %arg1: memref<56x576xbf16, #tpu.memory_space<vmem>>, %arg2: memref<576x64xbf16, #tpu.memory_space<vmem>>, %arg3: memref<1x64xf32, #tpu.memory_space<vmem>>, %arg4: memref<56x64xbf16, #tpu.memory_space<vmem>>) attributes {dimension_semantics = [#tpu.dimension_semantics<arbitrary>], iteration_bounds = array<i64: 1>, scalar_prefetch = 0 : i64, scratch_operands = 0 : i64, tpu.core_type = #tpu.core_type<tc>, window_params = [{pipeline_mode = #tpu.pipeline_mode<synchronous>, transform_indices = @transform_0, window_bounds = array<i64: 56, 576>}, {pipeline_mode = #tpu.pipeline_mode<synchronous>, transform_indices = @transform_1, window_bounds = array<i64: 576, 64>}, {pipeline_mode = #tpu.pipeline_mode<synchronous>, transform_indices = @transform_2, window_bounds = array<i64: 1, 64>}, {pipeline_mode = #tpu.pipeline_mode<synchronous>, transform_indices = @transform_3, window_bounds = array<i64: 56, 64>}]} {
    %c0 = arith.constant 0 : index
    %c0_0 = arith.constant 0 : index
    %0 = vector.load %arg1[%c0, %c0_0] : memref<56x576xbf16, #tpu.memory_space<vmem>>, vector<56x576xbf16>
    %c0_1 = arith.constant 0 : index
    %c0_2 = arith.constant 0 : index
    %1 = vector.load %arg2[%c0_1, %c0_2] : memref<576x64xbf16, #tpu.memory_space<vmem>>, vector<576x64xbf16>
    %cst = arith.constant dense<0.000000e+00> : vector<56x64xf32>
    %2 = tpu.matmul %0, %1, %cst {dimension_numbers = #tpu.dot_dimension_numbers<[1], [0], [0], [1], [0, 0, 1, 1], [], []>} : vector<56x576xbf16>, vector<576x64xbf16>, vector<56x64xf32> -> vector<56x64xf32>
    %c0_3 = arith.constant 0 : index
    %c0_4 = arith.constant 0 : index
    %3 = vector.load %arg3[%c0_3, %c0_4] : memref<1x64xf32, #tpu.memory_space<vmem>>, vector<1x64xf32>
    %4 = vector.broadcast %3 : vector<1x64xf32> to vector<56x64xf32>
    %5 = arith.addf %2, %4 : vector<56x64xf32>
    %cst_5 = arith.constant 0.000000e+00 : f32
    %6 = vector.broadcast %cst_5 : f32 to vector<56x64xf32>
    %7 = arith.maximumf %5, %6 : vector<56x64xf32>
    %8 = arith.truncf %7 : vector<56x64xf32> to vector<56x64xbf16>
    %c0_6 = arith.constant 0 : index
    %c0_7 = arith.constant 0 : index
    %9 = vector.load %arg4[%c0_6, %c0_7] : memref<56x64xbf16, #tpu.memory_space<vmem>>, vector<56x64xbf16>
    tpu.vector_store %arg4[%c0_6, %c0_7], %8 {strides = array<i32>} : memref<56x64xbf16, #tpu.memory_space<vmem>>, vector<56x64xbf16>,
    return
  }
  func.func @transform_0(%arg0: i32) -> (i32, i32) {
    %c0_i32 = arith.constant 0 : i32
    %c0_i32_0 = arith.constant 0 : i32
    %c0_i32_1 = arith.constant 0 : i32
    return %c0_i32, %c0_i32_0 : i32, i32
  }
  func.func @transform_1(%arg0: i32) -> (i32, i32) {
    %c0_i32 = arith.constant 0 : i32
    %c0_i32_0 = arith.constant 0 : i32
    %c0_i32_1 = arith.constant 0 : i32
    return %c0_i32, %c0_i32_0 : i32, i32
  }
  func.func @transform_2(%arg0: i32) -> (i32, i32) {
    %c0_i32 = arith.constant 0 : i32
    %c0_i32_0 = arith.constant 0 : i32
    %c0_i32_1 = arith.constant 0 : i32
    return %c0_i32, %c0_i32_0 : i32, i32
  }
  func.func @transform_3(%arg0: i32) -> (i32, i32) {
    %c0_i32 = arith.constant 0 : i32
    %c0_i32_0 = arith.constant 0 : i32
    %c0_i32_1 = arith.constant 0 : i32
    return %c0_i32, %c0_i32_0 : i32, i32
  }
}

module attributes {stable_mosaic.version = 11 : i64} {
  func.func @_heads_kernel(%arg0: i32, %arg1: memref<2x1792xbf16, #tpu.memory_space<vmem>>, %arg2: memref<1792x512xbf16, #tpu.memory_space<vmem>>, %arg3: memref<1x512xf32, #tpu.memory_space<vmem>>, %arg4: memref<256x3xbf16, #tpu.memory_space<vmem>>, %arg5: memref<1x3xf32, #tpu.memory_space<vmem>>, %arg6: memref<256x1xbf16, #tpu.memory_space<vmem>>, %arg7: memref<1x1xf32, #tpu.memory_space<vmem>>, %arg8: memref<2x3xf32, #tpu.memory_space<vmem>>, %arg9: memref<2x1xf32, #tpu.memory_space<vmem>>) attributes {dimension_semantics = [#tpu.dimension_semantics<arbitrary>], iteration_bounds = array<i64: 1>, scalar_prefetch = 0 : i64, scratch_operands = 0 : i64, tpu.core_type = #tpu.core_type<tc>, window_params = [{pipeline_mode = #tpu.pipeline_mode<synchronous>, transform_indices = @transform_0, window_bounds = array<i64: 2, 1792>}, {pipeline_mode = #tpu.pipeline_mode<synchronous>, transform_indices = @transform_1, window_bounds = array<i64: 1792, 512>}, {pipeline_mode = #tpu.pipeline_mode<synchronous>, transform_indices = @transform_2, window_bounds = array<i64: 1, 512>}, {pipeline_mode = #tpu.pipeline_mode<synchronous>, transform_indices = @transform_3, window_bounds = array<i64: 256, 3>}, {pipeline_mode = #tpu.pipeline_mode<synchronous>, transform_indices = @transform_4, window_bounds = array<i64: 1, 3>}, {pipeline_mode = #tpu.pipeline_mode<synchronous>, transform_indices = @transform_5, window_bounds = array<i64: 256, 1>}, {pipeline_mode = #tpu.pipeline_mode<synchronous>, transform_indices = @transform_6, window_bounds = array<i64: 1, 1>}, {pipeline_mode = #tpu.pipeline_mode<synchronous>, transform_indices = @transform_7, window_bounds = array<i64: 2, 3>}, {pipeline_mode = #tpu.pipeline_mode<synchronous>, transform_indices = @transform_8, window_bounds = array<i64: 2, 1>}]} {
    %c0 = arith.constant 0 : index
    %c0_0 = arith.constant 0 : index
    %0 = vector.load %arg1[%c0, %c0_0] : memref<2x1792xbf16, #tpu.memory_space<vmem>>, vector<2x1792xbf16>
    %c0_1 = arith.constant 0 : index
    %c0_2 = arith.constant 0 : index
    %1 = vector.load %arg2[%c0_1, %c0_2] : memref<1792x512xbf16, #tpu.memory_space<vmem>>, vector<1792x512xbf16>
    %cst = arith.constant dense<0.000000e+00> : vector<2x512xf32>
    %2 = tpu.matmul %0, %1, %cst {dimension_numbers = #tpu.dot_dimension_numbers<[1], [0], [0], [1], [0, 0, 1, 1], [], []>} : vector<2x1792xbf16>, vector<1792x512xbf16>, vector<2x512xf32> -> vector<2x512xf32>
    %c0_3 = arith.constant 0 : index
    %c0_4 = arith.constant 0 : index
    %3 = vector.load %arg3[%c0_3, %c0_4] : memref<1x512xf32, #tpu.memory_space<vmem>>, vector<1x512xf32>
    %4 = vector.broadcast %3 : vector<1x512xf32> to vector<2x512xf32>
    %5 = arith.addf %2, %4 : vector<2x512xf32>
    %cst_5 = arith.constant 0.000000e+00 : f32
    %6 = vector.broadcast %cst_5 : f32 to vector<2x512xf32>
    %7 = arith.maximumf %5, %6 : vector<2x512xf32>
    %8 = vector.extract_strided_slice %7 {offsets = [0, 0], sizes = [2, 256], strides = [1, 1]} : vector<2x512xf32> to vector<2x256xf32>
    %9 = arith.truncf %8 : vector<2x256xf32> to vector<2x256xbf16>
    %10 = vector.extract_strided_slice %7 {offsets = [0, 256], sizes = [2, 256], strides = [1, 1]} : vector<2x512xf32> to vector<2x256xf32>
    %11 = arith.truncf %10 : vector<2x256xf32> to vector<2x256xbf16>
    %c0_6 = arith.constant 0 : index
    %c0_7 = arith.constant 0 : index
    %12 = vector.load %arg4[%c0_6, %c0_7] : memref<256x3xbf16, #tpu.memory_space<vmem>>, vector<256x3xbf16>
    %cst_8 = arith.constant dense<0.000000e+00> : vector<2x3xf32>
    %13 = tpu.matmul %9, %12, %cst_8 {dimension_numbers = #tpu.dot_dimension_numbers<[1], [0], [0], [1], [0, 0, 1, 1], [], []>} : vector<2x256xbf16>, vector<256x3xbf16>, vector<2x3xf32> -> vector<2x3xf32>
    %c0_9 = arith.constant 0 : index
    %c0_10 = arith.constant 0 : index
    %14 = vector.load %arg5[%c0_9, %c0_10] : memref<1x3xf32, #tpu.memory_space<vmem>>, vector<1x3xf32>
    %15 = vector.broadcast %14 : vector<1x3xf32> to vector<2x3xf32>
    %16 = arith.addf %13, %15 : vector<2x3xf32>
    %17 = math.tanh %16 : vector<2x3xf32>
    %c0_11 = arith.constant 0 : index
    %c0_12 = arith.constant 0 : index
    %18 = vector.load %arg8[%c0_11, %c0_12] : memref<2x3xf32, #tpu.memory_space<vmem>>, vector<2x3xf32>
    tpu.vector_store %arg8[%c0_11, %c0_12], %17 {strides = array<i32>} : memref<2x3xf32, #tpu.memory_space<vmem>>, vector<2x3xf32>,
    %c0_13 = arith.constant 0 : index
    %c0_14 = arith.constant 0 : index
    %19 = vector.load %arg6[%c0_13, %c0_14] : memref<256x1xbf16, #tpu.memory_space<vmem>>, vector<256x1xbf16>
    %cst_15 = arith.constant dense<0.000000e+00> : vector<2x1xf32>
    %20 = tpu.matmul %11, %19, %cst_15 {dimension_numbers = #tpu.dot_dimension_numbers<[1], [0], [0], [1], [0, 0, 1, 1], [], []>} : vector<2x256xbf16>, vector<256x1xbf16>, vector<2x1xf32> -> vector<2x1xf32>
    %c0_16 = arith.constant 0 : index
    %c0_17 = arith.constant 0 : index
    %21 = vector.load %arg7[%c0_16, %c0_17] : memref<1x1xf32, #tpu.memory_space<vmem>>, vector<1x1xf32>
    %22 = vector.broadcast %21 : vector<1x1xf32> to vector<2x1xf32>
    %23 = arith.addf %20, %22 : vector<2x1xf32>
    %c0_18 = arith.constant 0 : index
    %c0_19 = arith.constant 0 : index
    %24 = vector.load %arg9[%c0_18, %c0_19] : memref<2x1xf32, #tpu.memory_space<vmem>>, vector<2x1xf32>
    tpu.vector_store %arg9[%c0_18, %c0_19], %23 {strides = array<i32>} : memref<2x1xf32, #tpu.memory_space<vmem>>, vector<2x1xf32>,
    return
  }
  func.func @transform_0(%arg0: i32) -> (i32, i32) {
    %c0_i32 = arith.constant 0 : i32
    %c0_i32_0 = arith.constant 0 : i32
    %c0_i32_1 = arith.constant 0 : i32
    return %c0_i32, %c0_i32_0 : i32, i32
  }
  func.func @transform_1(%arg0: i32) -> (i32, i32) {
    %c0_i32 = arith.constant 0 : i32
    %c0_i32_0 = arith.constant 0 : i32
    %c0_i32_1 = arith.constant 0 : i32
    return %c0_i32, %c0_i32_0 : i32, i32
  }
  func.func @transform_2(%arg0: i32) -> (i32, i32) {
    %c0_i32 = arith.constant 0 : i32
    %c0_i32_0 = arith.constant 0 : i32
    %c0_i32_1 = arith.constant 0 : i32
    return %c0_i32, %c0_i32_0 : i32, i32
  }
  func.func @transform_3(%arg0: i32) -> (i32, i32) {
    %c0_i32 = arith.constant 0 : i32
    %c0_i32_0 = arith.constant 0 : i32
    %c0_i32_1 = arith.constant 0 : i32
    return %c0_i32, %c0_i32_0 : i32, i32
  }
  func.func @transform_4(%arg0: i32) -> (i32, i32) {
    %c0_i32 = arith.constant 0 : i32
    %c0_i32_0 = arith.constant 0 : i32
    %c0_i32_1 = arith.constant 0 : i32
    return %c0_i32, %c0_i32_0 : i32, i32
  }
  func.func @transform_5(%arg0: i32) -> (i32, i32) {
    %c0_i32 = arith.constant 0 : i32
    %c0_i32_0 = arith.constant 0 : i32
    %c0_i32_1 = arith.constant 0 : i32
    return %c0_i32, %c0_i32_0 : i32, i32
  }
  func.func @transform_6(%arg0: i32) -> (i32, i32) {
    %c0_i32 = arith.constant 0 : i32
    %c0_i32_0 = arith.constant 0 : i32
    %c0_i32_1 = arith.constant 0 : i32
    return %c0_i32, %c0_i32_0 : i32, i32
  }
  func.func @transform_7(%arg0: i32) -> (i32, i32) {
    %c0_i32 = arith.constant 0 : i32
    %c0_i32_0 = arith.constant 0 : i32
    %c0_i32_1 = arith.constant 0 : i32
    return %c0_i32, %c0_i32_0 : i32, i32
  }
  func.func @transform_8(%arg0: i32) -> (i32, i32) {
    %c0_i32 = arith.constant 0 : i32
    %c0_i32_0 = arith.constant 0 : i32
    %c0_i32_1 = arith.constant 0 : i32
    return %c0_i32, %c0_i32_0 : i32, i32
  }
}

</mosaic_0001>

<llo_original>
// kernel: actor_critic_forward.4
$region0: #{actor_critic_forward.4}
  #allocation0 [shape = 'u32[]', space=smem, size = 0x4, offset = 0x4, fixed_abs, tag = 'smem constant byte address 0x4 - core index']
  #allocation1 [shape = 'u32[72,128]{1,0:T(1,128)}', space=vmem, size = 0x9000, scoped, tag = 'internal scratch']
  %s0 = inlined_call_operand.vmem [shape: bf16[600,256], index: 0, kind: input, shape index: {}]
  %s1 = inlined_call_operand.vmem [shape: bf16[256,32], index: 1, kind: input, shape index: {}]
  %s2 = inlined_call_operand.vmem [shape: f32[1,32], index: 2, kind: input, shape index: {}]
  %s3 = inlined_call_operand.vmem [shape: bf16[600,32], index: 3, kind: output, shape index: {}]
  %s4 = sld [smem:[#allocation0]]
  $region22: #{actor_critic_forward.4} parent=0
    _
  %s6 = ssub.s32 1, %s4
  %s7 = scalar_select 0, %s6, %s4
  // Predicated region
  $region2: #{actor_critic_forward.4} parent=0 // pred_check
    _
  $region3: #{actor_critic_forward.4} parent=0 // pred_check_branch
    %9 = sbr.rel (0) target = $region5
  $region4: #{actor_critic_forward.4} parent=0 // pred_region
    _
  $region5: #{actor_critic_forward.4} parent=0 // pred_fallthru
    _
  // Predicated region
  $region6: #{actor_critic_forward.4} parent=0 // pred_check
    _
  $region7: #{actor_critic_forward.4} parent=0 // pred_check_branch
    %11 = sbr.rel (0) target = $region9
  $region8: #{actor_critic_forward.4} parent=0 // pred_region
    _
  $region9: #{actor_critic_forward.4} parent=0 // pred_fallthru
    _
  // Predicated region
  $region10: #{actor_critic_forward.4} parent=0 // pred_check
    _
  $region11: #{actor_critic_forward.4} parent=0 // pred_check_branch
    %13 = sbr.rel (0) target = $region13
  $region12: #{actor_critic_forward.4} parent=0 // pred_region
    _
  $region13: #{actor_critic_forward.4} parent=0 // pred_fallthru
    _
  %v14 = vld [vmem:[%s0] sm:$0xff]
  %v15 = vld [vmem:[%s0 + $0x8] sm:$0xff]
  %v16 = vld [vmem:[%s0 + $0x10] sm:$0xff]
  %v17 = vld [vmem:[%s0 + $0x18] sm:$0xff]
  %v18 = vld [vmem:[%s0 + $0x20] sm:$0xff]
  %v19 = vld [vmem:[%s0 + $0x28] sm:$0xff]
  %v20 = vld [vmem:[%s0 + $0x30] sm:$0xff]
  %v21 = vld [vmem:[%s0 + $0x38] sm:$0xff]
  %v22 = vld [vmem:[%s0 + $0x40] sm:$0xff]
  %v23 = vld [vmem:[%s0 + $0x48] sm:$0xff]
  %v24 = vld [vmem:[%s0 + $0x50] sm:$0xff]
  %v25 = vld [vmem:[%s0 + $0x58] sm:$0xff]
  %v26 = vld [vmem:[%s0 + $0x60] sm:$0xff]
  %v27 = vld [vmem:[%s0 + $0x68] sm:$0xff]
  %v28 = vld [vmem:[%s0 + $0x70] sm:$0xff]
  %v29 = vld [vmem:[%s0 + $0x78] sm:$0xff]
  %v30 = vld [vmem:[%s0 + $0x80] sm:$0xff]
  %v31 = vld [vmem:[%s0 + $0x88] sm:$0xff]
  %v32 = vld [vmem:[%s0 + $0x90] sm:$0xff]
  %v33 = vld [vmem:[%s0 + $0x98] sm:$0xff]
  %v34 = vld [vmem:[%s0 + $0xa0] sm:$0xff]
  %v35 = vld [vmem:[%s0 + $0xa8] sm:$0xff]
  %v36 = vld [vmem:[%s0 + $0xb0] sm:$0xff]
  %v37 = vld [vmem:[%s0 + $0xb8] sm:$0xff]
  %v38 = vld [vmem:[%s0 + $0xc0] sm:$0xff]
  %v39 = vld [vmem:[%s0 + $0xc8] sm:$0xff]
  %v40 = vld [vmem:[%s0 + $0xd0] sm:$0xff]
  %v41 = vld [vmem:[%s0 + $0xd8] sm:$0xff]
  %v42 = vld [vmem:[%s0 + $0xe0] sm:$0xff]
  %v43 = vld [vmem:[%s0 + $0xe8] sm:$0xff]
  %v44 = vld [vmem:[%s0 + $0xf0] sm:$0xff]
  %v45 = vld [vmem:[%s0 + $0xf8] sm:$0xff]
  %v46 = vld [vmem:[%s0 + $0x100] sm:$0xff]
  %v47 = vld [vmem:[%s0 + $0x108] sm:$0xff]
  %v48 = vld [vmem:[%s0 + $0x110] sm:$0xff]
  %v49 = vld [vmem:[%s0 + $0x118] sm:$0xff]
  %v50 = vld [vmem:[%s0 + $0x120] sm:$0xff]
  %v51 = vld [vmem:[%s0 + $0x128] sm:$0xff]
  %v52 = vld [vmem:[%s0 + $0x130] sm:$0xff]
  %v53 = vld [vmem:[%s0 + $0x138] sm:$0xff]
  %v54 = vld [vmem:[%s0 + $0x140] sm:$0xff]
  %v55 = vld [vmem:[%s0 + $0x148] sm:$0xff]
  %v56 = vld [vmem:[%s0 + $0x150] sm:$0xff]
  %v57 = vld [vmem:[%s0 + $0x158] sm:$0xff]
  %v58 = vld [vmem:[%s0 + $0x160] sm:$0xff]
  %v59 = vld [vmem:[%s0 + $0x168] sm:$0xff]
  %v60 = vld [vmem:[%s0 + $0x170] sm:$0xff]
  %v61 = vld [vmem:[%s0 + $0x178] sm:$0xff]
  %v62 = vld [vmem:[%s0 + $0x180] sm:$0xff]
  %v63 = vld [vmem:[%s0 + $0x188] sm:$0xff]
  %v64 = vld [vmem:[%s0 + $0x190] sm:$0xff]
  %v65 = vld [vmem:[%s0 + $0x198] sm:$0xff]
  %v66 = vld [vmem:[%s0 + $0x1a0] sm:$0xff]
  %v67 = vld [vmem:[%s0 + $0x1a8] sm:$0xff]
  %v68 = vld [vmem:[%s0 + $0x1b0] sm:$0xff]
  %v69 = vld [vmem:[%s0 + $0x1b8] sm:$0xff]
  %v70 = vld [vmem:[%s0 + $0x1c0] sm:$0xff]
  %v71 = vld [vmem:[%s0 + $0x1c8] sm:$0xff]
  %v72 = vld [vmem:[%s0 + $0x1d0] sm:$0xff]
  %v73 = vld [vmem:[%s0 + $0x1d8] sm:$0xff]
  %v74 = vld [vmem:[%s0 + $0x1e0] sm:$0xff]
  %v75 = vld [vmem:[%s0 + $0x1e8] sm:$0xff]
  %v76 = vld [vmem:[%s0 + $0x1f0] sm:$0xff]
  %v77 = vld [vmem:[%s0 + $0x1f8] sm:$0xff]
  %v78 = vld [vmem:[%s0 + $0x200] sm:$0xff]
  %v79 = vld [vmem:[%s0 + $0x208] sm:$0xff]
  %v80 = vld [vmem:[%s0 + $0x210] sm:$0xff]
  %v81 = vld [vmem:[%s0 + $0x218] sm:$0xff]
  %v82 = vld [vmem:[%s0 + $0x220] sm:$0xff]
  %v83 = vld [vmem:[%s0 + $0x228] sm:$0xff]
  %v84 = vld [vmem:[%s0 + $0x230] sm:$0xff]
  %v85 = vld [vmem:[%s0 + $0x238] sm:$0xff]
  %v86 = vld [vmem:[%s0 + $0x240] sm:$0xff]
  %v87 = vld [vmem:[%s0 + $0x248] sm:$0xff]
  %v88 = vld [vmem:[%s0 + $0x250] sm:$0xff]
  %v89 = vld [vmem:[%s1] sm:$0xf]
  %v90 = vld [vmem:[%s1 + $0x4] sm:$0xf]
  %v91 = vld [vmem:[%s1 + $0x8] sm:$0xf]
  %v92 = vld [vmem:[%s1 + $0xc] sm:$0xf]
  %v93 = vld [vmem:[%s1 + $0x10] sm:$0xf]
  %v94 = vld [vmem:[%s1 + $0x14] sm:$0xf]
  %v95 = vld [vmem:[%s1 + $0x18] sm:$0xf]
  %v96 = vld [vmem:[%s1 + $0x1c] sm:$0xf]
  %v97 = vld [vmem:[%s1 + $0x20] sm:$0xf]
  %v98 = vld [vmem:[%s1 + $0x24] sm:$0xf]
  %v99 = vld [vmem:[%s1 + $0x28] sm:$0xf]
  %v100 = vld [vmem:[%s1 + $0x2c] sm:$0xf]
  %v101 = vld [vmem:[%s1 + $0x30] sm:$0xf]
  %v102 = vld [vmem:[%s1 + $0x34] sm:$0xf]
  %v103 = vld [vmem:[%s1 + $0x38] sm:$0xf]
  %v104 = vld [vmem:[%s1 + $0x3c] sm:$0xf]
  %v105 = vld [vmem:[%s1 + $0x40] sm:$0xf]
  %v106 = vld [vmem:[%s1 + $0x44] sm:$0xf]
  %v107 = vld [vmem:[%s1 + $0x48] sm:$0xf]
  %v108 = vld [vmem:[%s1 + $0x4c] sm:$0xf]
  %v109 = vld [vmem:[%s1 + $0x50] sm:$0xf]
  %v110 = vld [vmem:[%s1 + $0x54] sm:$0xf]
  %v111 = vld [vmem:[%s1 + $0x58] sm:$0xf]
  %v112 = vld [vmem:[%s1 + $0x5c] sm:$0xf]
  %v113 = vld [vmem:[%s1 + $0x60] sm:$0xf]
  %v114 = vld [vmem:[%s1 + $0x64] sm:$0xf]
  %v115 = vld [vmem:[%s1 + $0x68] sm:$0xf]
  %v116 = vld [vmem:[%s1 + $0x6c] sm:$0xf]
  %v117 = vld [vmem:[%s1 + $0x70] sm:$0xf]
  %v118 = vld [vmem:[%s1 + $0x74] sm:$0xf]
  %v119 = vld [vmem:[%s1 + $0x78] sm:$0xf]
  %v120 = vld [vmem:[%s1 + $0x7c] sm:$0xf]
  %v121 = vld [vmem:[%s2] sm:$0x1]
  %v123 = vperm.slane %v121, 0
  %v200 = vunpack.c.l.b16 %v14
  %v201 = vunpack.c.h.b16 %v14
  %v202 = vunpack.c.l.b16 %v15
  %v203 = vunpack.c.h.b16 %v15
  %v204 = vunpack.c.l.b16 %v16
  %v205 = vunpack.c.h.b16 %v16
  %v206 = vunpack.c.l.b16 %v17
  %v207 = vunpack.c.h.b16 %v17
  %v208 = vunpack.c.l.b16 %v18
  %v209 = vunpack.c.h.b16 %v18
  %v210 = vunpack.c.l.b16 %v19
  %v211 = vunpack.c.h.b16 %v19
  %v212 = vunpack.c.l.b16 %v20
  %v213 = vunpack.c.h.b16 %v20
  %v214 = vunpack.c.l.b16 %v21
  %v215 = vunpack.c.h.b16 %v21
  %v216 = vunpack.c.l.b16 %v22
  %v217 = vunpack.c.h.b16 %v22
  %v218 = vunpack.c.l.b16 %v23
  %v219 = vunpack.c.h.b16 %v23
  %v220 = vunpack.c.l.b16 %v24
  %v221 = vunpack.c.h.b16 %v24
  %v222 = vunpack.c.l.b16 %v25
  %v223 = vunpack.c.h.b16 %v25
  %v224 = vunpack.c.l.b16 %v26
  %v225 = vunpack.c.h.b16 %v26
  %v226 = vunpack.c.l.b16 %v27
  %v227 = vunpack.c.h.b16 %v27
  %v228 = vunpack.c.l.b16 %v28
  %v229 = vunpack.c.h.b16 %v28
  %v230 = vunpack.c.l.b16 %v29
  %v231 = vunpack.c.h.b16 %v29
  %v232 = vunpack.c.l.b16 %v30
  %v233 = vunpack.c.h.b16 %v30
  %v234 = vunpack.c.l.b16 %v31
  %v235 = vunpack.c.h.b16 %v31
  %v236 = vunpack.c.l.b16 %v32
  %v237 = vunpack.c.h.b16 %v32
  %v238 = vunpack.c.l.b16 %v33
  %v239 = vunpack.c.h.b16 %v33
  %v240 = vunpack.c.l.b16 %v34
  %v241 = vunpack.c.h.b16 %v34
  %v242 = vunpack.c.l.b16 %v35
  %v243 = vunpack.c.h.b16 %v35
  %v244 = vunpack.c.l.b16 %v36
  %v245 = vunpack.c.h.b16 %v36
  %v246 = vunpack.c.l.b16 %v37
  %v247 = vunpack.c.h.b16 %v37
  %v248 = vunpack.c.l.b16 %v38
  %v249 = vunpack.c.h.b16 %v38
  %v250 = vunpack.c.l.b16 %v39
  %v251 = vunpack.c.h.b16 %v39
  %v252 = vunpack.c.l.b16 %v40
  %v253 = vunpack.c.h.b16 %v40
  %v254 = vunpack.c.l.b16 %v41
  %v255 = vunpack.c.h.b16 %v41
  %v256 = vunpack.c.l.b16 %v42
  %v257 = vunpack.c.h.b16 %v42
  %v258 = vunpack.c.l.b16 %v43
  %v259 = vunpack.c.h.b16 %v43
  %v260 = vunpack.c.l.b16 %v44
  %v261 = vunpack.c.h.b16 %v44
  %v262 = vunpack.c.l.b16 %v45
  %v263 = vunpack.c.h.b16 %v45
  %v264 = vunpack.c.l.b16 %v46
  %v265 = vunpack.c.h.b16 %v46
  %v266 = vunpack.c.l.b16 %v47
  %v267 = vunpack.c.h.b16 %v47
  %v268 = vunpack.c.l.b16 %v48
  %v269 = vunpack.c.h.b16 %v48
  %v270 = vunpack.c.l.b16 %v49
  %v271 = vunpack.c.h.b16 %v49
  %v272 = vunpack.c.l.b16 %v50
  %v273 = vunpack.c.h.b16 %v50
  %v274 = vunpack.c.l.b16 %v51
  %v275 = vunpack.c.h.b16 %v51
  %v276 = vunpack.c.l.b16 %v52
  %v277 = vunpack.c.h.b16 %v52
  %v278 = vunpack.c.l.b16 %v53
  %v279 = vunpack.c.h.b16 %v53
  %v280 = vunpack.c.l.b16 %v54
  %v281 = vunpack.c.h.b16 %v54
  %v282 = vunpack.c.l.b16 %v55
  %v283 = vunpack.c.h.b16 %v55
  %v284 = vunpack.c.l.b16 %v56
  %v285 = vunpack.c.h.b16 %v56
  %v286 = vunpack.c.l.b16 %v57
  %v287 = vunpack.c.h.b16 %v57
  %v288 = vunpack.c.l.b16 %v58
  %v289 = vunpack.c.h.b16 %v58
  %v290 = vunpack.c.l.b16 %v59
  %v291 = vunpack.c.h.b16 %v59
  %v292 = vunpack.c.l.b16 %v60
  %v293 = vunpack.c.h.b16 %v60
  %v294 = vunpack.c.l.b16 %v61
  %v295 = vunpack.c.h.b16 %v61
  %v296 = vunpack.c.l.b16 %v62
  %v297 = vunpack.c.h.b16 %v62
  %v298 = vunpack.c.l.b16 %v63
  %v299 = vunpack.c.h.b16 %v63
  %v300 = vunpack.c.l.b16 %v64
  %v301 = vunpack.c.h.b16 %v64
  %v302 = vunpack.c.l.b16 %v65
  %v303 = vunpack.c.h.b16 %v65
  %v304 = vunpack.c.l.b16 %v66
  %v305 = vunpack.c.h.b16 %v66
  %v306 = vunpack.c.l.b16 %v67
  %v307 = vunpack.c.h.b16 %v67
  %v308 = vunpack.c.l.b16 %v68
  %v309 = vunpack.c.h.b16 %v68
  %v310 = vunpack.c.l.b16 %v69
  %v311 = vunpack.c.h.b16 %v69
  %v312 = vunpack.c.l.b16 %v70
  %v313 = vunpack.c.h.b16 %v70
  %v314 = vunpack.c.l.b16 %v71
  %v315 = vunpack.c.h.b16 %v71
  %v316 = vunpack.c.l.b16 %v72
  %v317 = vunpack.c.h.b16 %v72
  %v318 = vunpack.c.l.b16 %v73
  %v319 = vunpack.c.h.b16 %v73
  %v320 = vunpack.c.l.b16 %v74
  %v321 = vunpack.c.h.b16 %v74
  %v322 = vunpack.c.l.b16 %v75
  %v323 = vunpack.c.h.b16 %v75
  %v324 = vunpack.c.l.b16 %v76
  %v325 = vunpack.c.h.b16 %v76
  %v326 = vunpack.c.l.b16 %v77
  %v327 = vunpack.c.h.b16 %v77
  %v328 = vunpack.c.l.b16 %v78
  %v329 = vunpack.c.h.b16 %v78
  %v330 = vunpack.c.l.b16 %v79
  %v331 = vunpack.c.h.b16 %v79
  %v332 = vunpack.c.l.b16 %v80
  %v333 = vunpack.c.h.b16 %v80
  %v334 = vunpack.c.l.b16 %v81
  %v335 = vunpack.c.h.b16 %v81
  %v336 = vunpack.c.l.b16 %v82
  %v337 = vunpack.c.h.b16 %v82
  %v338 = vunpack.c.l.b16 %v83
  %v339 = vunpack.c.h.b16 %v83
  %v340 = vunpack.c.l.b16 %v84
  %v341 = vunpack.c.h.b16 %v84
  %v342 = vunpack.c.l.b16 %v85
  %v343 = vunpack.c.h.b16 %v85
  %v344 = vunpack.c.l.b16 %v86
  %v345 = vunpack.c.h.b16 %v86
  %v346 = vunpack.c.l.b16 %v87
  %v347 = vunpack.c.h.b16 %v87
  %v348 = vunpack.c.l.b16 %v88
  %v349 = vunpack.c.h.b16 %v88
  %v350 = vpack.c.b16 %v202, %v200
  %v351 = vpack.c.b16 %v203, %v201
  %v352 = vpack.c.b16 %v206, %v204
  %v353 = vpack.c.b16 %v207, %v205
  %v354 = vpack.c.b16 %v210, %v208
  %v355 = vpack.c.b16 %v211, %v209
  %v356 = vpack.c.b16 %v214, %v212
  %v357 = vpack.c.b16 %v215, %v213
  %v358 = vpack.c.b16 %v218, %v216
  %v359 = vpack.c.b16 %v219, %v217
  %v360 = vpack.c.b16 %v222, %v220
  %v361 = vpack.c.b16 %v223, %v221
  %v362 = vpack.c.b16 %v226, %v224
  %v363 = vpack.c.b16 %v227, %v225
  %v364 = vpack.c.b16 %v230, %v228
  %v365 = vpack.c.b16 %v231, %v229
  %v366 = vpack.c.b16 %v234, %v232
  %v367 = vpack.c.b16 %v235, %v233
  %v368 = vpack.c.b16 %v238, %v236
  %v369 = vpack.c.b16 %v239, %v237
  %v370 = vpack.c.b16 %v242, %v240
  %v371 = vpack.c.b16 %v243, %v241
  %v372 = vpack.c.b16 %v246, %v244
  %v373 = vpack.c.b16 %v247, %v245
  %v374 = vpack.c.b16 %v250, %v248
  %v375 = vpack.c.b16 %v251, %v249
  %v376 = vpack.c.b16 %v254, %v252
  %v377 = vpack.c.b16 %v255, %v253
  %v378 = vpack.c.b16 %v258, %v256
  %v379 = vpack.c.b16 %v259, %v257
  %v380 = vpack.c.b16 %v262, %v260
  %v381 = vpack.c.b16 %v263, %v261
  %v382 = vpack.c.b16 %v266, %v264
  %v383 = vpack.c.b16 %v267, %v265
  %v384 = vpack.c.b16 %v270, %v268
  %v385 = vpack.c.b16 %v271, %v269
  %v386 = vpack.c.b16 %v274, %v272
  %v387 = vpack.c.b16 %v275, %v273
  %v388 = vpack.c.b16 %v278, %v276
  %v389 = vpack.c.b16 %v279, %v277
  %v390 = vpack.c.b16 %v282, %v280
  %v391 = vpack.c.b16 %v283, %v281
  %v392 = vpack.c.b16 %v286, %v284
  %v393 = vpack.c.b16 %v287, %v285
  %v394 = vpack.c.b16 %v290, %v288
  %v395 = vpack.c.b16 %v291, %v289
  %v396 = vpack.c.b16 %v294, %v292
  %v397 = vpack.c.b16 %v295, %v293
  %v398 = vpack.c.b16 %v298, %v296
  %v399 = vpack.c.b16 %v299, %v297
  %v400 = vpack.c.b16 %v302, %v300
  %v401 = vpack.c.b16 %v303, %v301
  %v402 = vpack.c.b16 %v306, %v304
  %v403 = vpack.c.b16 %v307, %v305
  %v404 = vpack.c.b16 %v310, %v308
  %v405 = vpack.c.b16 %v311, %v309
  %v406 = vpack.c.b16 %v314, %v312
  %v407 = vpack.c.b16 %v315, %v313
  %v408 = vpack.c.b16 %v318, %v316
  %v409 = vpack.c.b16 %v319, %v317
  %v410 = vpack.c.b16 %v322, %v320
  %v411 = vpack.c.b16 %v323, %v321
  %v412 = vpack.c.b16 %v326, %v324
  %v413 = vpack.c.b16 %v327, %v325
  %v414 = vpack.c.b16 %v330, %v328
  %v415 = vpack.c.b16 %v331, %v329
  %v416 = vpack.c.b16 %v334, %v332
  %v417 = vpack.c.b16 %v335, %v333
  %v418 = vpack.c.b16 %v338, %v336
  %v419 = vpack.c.b16 %v339, %v337
  %v420 = vpack.c.b16 %v342, %v340
  %v421 = vpack.c.b16 %v343, %v341
  %v422 = vpack.c.b16 %v346, %v344
  %v423 = vpack.c.b16 %v347, %v345
  %v424 = vpack.c.b16 %v348, %v348
  %v425 = vpack.c.b16 %v349, %v349
  %v534 = vunpack.c.l.b16 %v89
  %v535 = vunpack.c.l.b16 %v90
  %v536 = vunpack.c.l.b16 %v91
  %v537 = vunpack.c.l.b16 %v92
  %v538 = vunpack.c.l.b16 %v93
  %v539 = vunpack.c.l.b16 %v94
  %v540 = vunpack.c.l.b16 %v95
  %v541 = vunpack.c.l.b16 %v96
  %v542 = vunpack.c.l.b16 %v97
  %v543 = vunpack.c.l.b16 %v98
  %v544 = vunpack.c.l.b16 %v99
  %v545 = vunpack.c.l.b16 %v100
  %v546 = vunpack.c.l.b16 %v101
  %v547 = vunpack.c.l.b16 %v102
  %v548 = vunpack.c.l.b16 %v103
  %v549 = vunpack.c.l.b16 %v104
  %v550 = vunpack.c.l.b16 %v105
  %v551 = vunpack.c.l.b16 %v106
  %v552 = vunpack.c.l.b16 %v107
  %v553 = vunpack.c.l.b16 %v108
  %v554 = vunpack.c.l.b16 %v109
  %v555 = vunpack.c.l.b16 %v110
  %v556 = vunpack.c.l.b16 %v111
  %v557 = vunpack.c.l.b16 %v112
  %v558 = vunpack.c.l.b16 %v113
  %v559 = vunpack.c.l.b16 %v114
  %v560 = vunpack.c.l.b16 %v115
  %v561 = vunpack.c.l.b16 %v116
  %v562 = vunpack.c.l.b16 %v117
  %v563 = vunpack.c.l.b16 %v118
  %v564 = vunpack.c.l.b16 %v119
  %v565 = vunpack.c.l.b16 %v120
  %v566 = vpack.c.b16 %v535, %v534
  %v567 = vpack.c.b16 %v537, %v536
  %v568 = vpack.c.b16 %v539, %v538
  %v569 = vpack.c.b16 %v541, %v540
  %v570 = vpack.c.b16 %v543, %v542
  %v571 = vpack.c.b16 %v545, %v544
  %v572 = vpack.c.b16 %v547, %v546
  %v573 = vpack.c.b16 %v549, %v548
  %v574 = vpack.c.b16 %v551, %v550
  %v575 = vpack.c.b16 %v553, %v552
  %v576 = vpack.c.b16 %v555, %v554
  %v577 = vpack.c.b16 %v557, %v556
  %v578 = vpack.c.b16 %v559, %v558
  %v579 = vpack.c.b16 %v561, %v560
  %v580 = vpack.c.b16 %v563, %v562
  %v581 = vpack.c.b16 %v565, %v564
  %598 = vmatpush.bf16.msra.mxu0 %v573
  %599 = vmatpush.bf16.msra.mxu0 %v572
  %600 = vmatpush.bf16.msra.mxu0 %v571
  %601 = vmatpush.bf16.msra.mxu0 %v570
  %602 = vmatpush.bf16.msra.mxu0 %v569
  %603 = vmatpush.bf16.msra.mxu0 %v568
  %604 = vmatpush.bf16.msra.mxu0 %v567
  %605 = vmatpush.bf16.msra.mxu0 %v566
  %606 = vmatmul.bf16.gmra.mxu0 %v350
  %v607 = vpop.f32.mrf.mxu0
  %v608 = vadd.f32 %v123, %v607
  %v609 = vpop.f32.mrf.mxu0
  %v610 = vadd.f32 %v123, %v609
  %611 = vmatmul.bf16.gmra.mxu0 %v352
  %v612 = vpop.f32.mrf.mxu0
  %v613 = vadd.f32 %v123, %v612
  %v614 = vpop.f32.mrf.mxu0
  %v615 = vadd.f32 %v123, %v614
  %616 = vmatmul.bf16.gmra.mxu0 %v354
  %v617 = vpop.f32.mrf.mxu0
  %v618 = vadd.f32 %v123, %v617
  %v619 = vpop.f32.mrf.mxu0
  %v620 = vadd.f32 %v123, %v619
  %621 = vmatmul.bf16.gmra.mxu0 %v356
  %v622 = vpop.f32.mrf.mxu0
  %v623 = vadd.f32 %v123, %v622
  %v624 = vpop.f32.mrf.mxu0
  %v625 = vadd.f32 %v123, %v624
  %626 = vmatmul.bf16.gmra.mxu0 %v358
  %v627 = vpop.f32.mrf.mxu0
  %v628 = vadd.f32 %v123, %v627
  %v629 = vpop.f32.mrf.mxu0
  %v630 = vadd.f32 %v123, %v629
  %631 = vmatmul.bf16.gmra.mxu0 %v360
  %v632 = vpop.f32.mrf.mxu0
  %v633 = vadd.f32 %v123, %v632
  %v634 = vpop.f32.mrf.mxu0
  %v635 = vadd.f32 %v123, %v634
  %636 = vmatmul.bf16.gmra.mxu0 %v362
  %v637 = vpop.f32.mrf.mxu0
  %v638 = vadd.f32 %v123, %v637
  %v639 = vpop.f32.mrf.mxu0
  %v640 = vadd.f32 %v123, %v639
  %641 = vmatmul.bf16.gmra.mxu0 %v364
  %v642 = vpop.f32.mrf.mxu0
  %v643 = vadd.f32 %v123, %v642
  %v644 = vpop.f32.mrf.mxu0
  %v645 = vadd.f32 %v123, %v644
  %646 = vmatmul.bf16.gmra.mxu0 %v366
  %v647 = vpop.f32.mrf.mxu0
  %v648 = vadd.f32 %v123, %v647
  %v649 = vpop.f32.mrf.mxu0
  %v650 = vadd.f32 %v123, %v649
  %651 = vmatmul.bf16.gmra.mxu0 %v368
  %v652 = vpop.f32.mrf.mxu0
  %v653 = vadd.f32 %v123, %v652
  %v654 = vpop.f32.mrf.mxu0
  %v655 = vadd.f32 %v123, %v654
  %656 = vmatmul.bf16.gmra.mxu0 %v370
  %v657 = vpop.f32.mrf.mxu0
  %v658 = vadd.f32 %v123, %v657
  %v659 = vpop.f32.mrf.mxu0
  %v660 = vadd.f32 %v123, %v659
  %661 = vmatmul.bf16.gmra.mxu0 %v372
  %v662 = vpop.f32.mrf.mxu0
  %v663 = vadd.f32 %v123, %v662
  %v664 = vpop.f32.mrf.mxu0
  %v665 = vadd.f32 %v123, %v664
  %666 = vmatmul.bf16.gmra.mxu0 %v374
  %v667 = vpop.f32.mrf.mxu0
  %v668 = vadd.f32 %v123, %v667
  %v669 = vpop.f32.mrf.mxu0
  %v670 = vadd.f32 %v123, %v669
  %671 = vmatmul.bf16.gmra.mxu0 %v376
  %v672 = vpop.f32.mrf.mxu0
  %v673 = vadd.f32 %v123, %v672
  %v674 = vpop.f32.mrf.mxu0
  %v675 = vadd.f32 %v123, %v674
  %676 = vmatmul.bf16.gmra.mxu0 %v378
  %v677 = vpop.f32.mrf.mxu0
  %v678 = vadd.f32 %v123, %v677
  %v679 = vpop.f32.mrf.mxu0
  %v680 = vadd.f32 %v123, %v679
  %681 = vmatmul.bf16.gmra.mxu0 %v380
  %v682 = vpop.f32.mrf.mxu0
  %v683 = vadd.f32 %v123, %v682
  %v684 = vpop.f32.mrf.mxu0
  %v685 = vadd.f32 %v123, %v684
  %686 = vmatmul.bf16.gmra.mxu0 %v382
  %v687 = vpop.f32.mrf.mxu0
  %v688 = vadd.f32 %v123, %v687
  %v689 = vpop.f32.mrf.mxu0
  %v690 = vadd.f32 %v123, %v689
  %691 = vmatmul.bf16.gmra.mxu0 %v384
  %v692 = vpop.f32.mrf.mxu0
  %v693 = vadd.f32 %v123, %v692
  %v694 = vpop.f32.mrf.mxu0
  %v695 = vadd.f32 %v123, %v694
  %696 = vmatmul.bf16.gmra.mxu0 %v386
  %v697 = vpop.f32.mrf.mxu0
  %v698 = vadd.f32 %v123, %v697
  %v699 = vpop.f32.mrf.mxu0
  %v700 = vadd.f32 %v123, %v699
  %701 = vmatmul.bf16.gmra.mxu0 %v388
  %v702 = vpop.f32.mrf.mxu0
  %v703 = vadd.f32 %v123, %v702
  %v704 = vpop.f32.mrf.mxu0
  %v705 = vadd.f32 %v123, %v704
  %706 = vmatmul.bf16.gmra.mxu0 %v390
  %v707 = vpop.f32.mrf.mxu0
  %v708 = vadd.f32 %v123, %v707
  %v709 = vpop.f32.mrf.mxu0
  %v710 = vadd.f32 %v123, %v709
  %711 = vmatmul.bf16.gmra.mxu0 %v392
  %v712 = vpop.f32.mrf.mxu0
  %v713 = vadd.f32 %v123, %v712
  %v714 = vpop.f32.mrf.mxu0
  %v715 = vadd.f32 %v123, %v714
  %716 = vmatmul.bf16.gmra.mxu0 %v394
  %v717 = vpop.f32.mrf.mxu0
  %v718 = vadd.f32 %v123, %v717
  %v719 = vpop.f32.mrf.mxu0
  %v720 = vadd.f32 %v123, %v719
  %721 = vmatmul.bf16.gmra.mxu0 %v396
  %v722 = vpop.f32.mrf.mxu0
  %v723 = vadd.f32 %v123, %v722
  %v724 = vpop.f32.mrf.mxu0
  %v725 = vadd.f32 %v123, %v724
  %726 = vmatmul.bf16.gmra.mxu0 %v398
  %v727 = vpop.f32.mrf.mxu0
  %v728 = vadd.f32 %v123, %v727
  %v729 = vpop.f32.mrf.mxu0
  %v730 = vadd.f32 %v123, %v729
  %731 = vmatmul.bf16.gmra.mxu0 %v400
  %v732 = vpop.f32.mrf.mxu0
  %v733 = vadd.f32 %v123, %v732
  %v734 = vpop.f32.mrf.mxu0
  %v735 = vadd.f32 %v123, %v734
  %736 = vmatmul.bf16.gmra.mxu0 %v402
  %v737 = vpop.f32.mrf.mxu0
  %v738 = vadd.f32 %v123, %v737
  %v739 = vpop.f32.mrf.mxu0
  %v740 = vadd.f32 %v123, %v739
  %741 = vmatmul.bf16.gmra.mxu0 %v404
  %v742 = vpop.f32.mrf.mxu0
  %v743 = vadd.f32 %v123, %v742
  %v744 = vpop.f32.mrf.mxu0
  %v745 = vadd.f32 %v123, %v744
  %746 = vmatmul.bf16.gmra.mxu0 %v406
  %v747 = vpop.f32.mrf.mxu0
  %v748 = vadd.f32 %v123, %v747
  %v749 = vpop.f32.mrf.mxu0
  %v750 = vadd.f32 %v123, %v749
  %751 = vmatmul.bf16.gmra.mxu0 %v408
  %v752 = vpop.f32.mrf.mxu0
  %v753 = vadd.f32 %v123, %v752
  %v754 = vpop.f32.mrf.mxu0
  %v755 = vadd.f32 %v123, %v754
  %756 = vmatmul.bf16.gmra.mxu0 %v410
  %v757 = vpop.f32.mrf.mxu0
  %v758 = vadd.f32 %v123, %v757
  %v759 = vpop.f32.mrf.mxu0
  %v760 = vadd.f32 %v123, %v759
  %761 = vmatmul.bf16.gmra.mxu0 %v412
  %v762 = vpop.f32.mrf.mxu0
  %v763 = vadd.f32 %v123, %v762
  %v764 = vpop.f32.mrf.mxu0
  %v765 = vadd.f32 %v123, %v764
  %766 = vmatmul.bf16.gmra.mxu0 %v414
  %v767 = vpop.f32.mrf.mxu0
  %v768 = vadd.f32 %v123, %v767
  %v769 = vpop.f32.mrf.mxu0
  %v770 = vadd.f32 %v123, %v769
  %771 = vmatmul.bf16.gmra.mxu0 %v416
  %v772 = vpop.f32.mrf.mxu0
  %v773 = vadd.f32 %v123, %v772
  %v774 = vpop.f32.mrf.mxu0
  %v775 = vadd.f32 %v123, %v774
  %776 = vmatmul.bf16.gmra.mxu0 %v418
  %v777 = vpop.f32.mrf.mxu0
  %v778 = vadd.f32 %v123, %v777
  %v779 = vpop.f32.mrf.mxu0
  %v780 = vadd.f32 %v123, %v779
  %781 = vmatmul.bf16.gmra.mxu0 %v420
  %v782 = vpop.f32.mrf.mxu0
  %v783 = vadd.f32 %v123, %v782
  %v784 = vpop.f32.mrf.mxu0
  %v785 = vadd.f32 %v123, %v784
  %786 = vmatmul.bf16.gmra.mxu0 %v422
  %v787 = vpop.f32.mrf.mxu0
  %v788 = vadd.f32 %v123, %v787
  %v789 = vpop.f32.mrf.mxu0
  %v790 = vadd.f32 %v123, %v789
  %791 = vmatmul.bf16.gmra.mxu0 %v424
  %v792 = vpop.f32.mrf.mxu0
  %v793 = vadd.f32 %v123, %v792
  %v794 = vpop.f32.mrf.mxu0
  %795 = vdwg.mxu0
  %796 = vmatpush.bf16.msra.mxu0 %v581
  %797 = vmatpush.bf16.msra.mxu0 %v580
  %798 = vmatpush.bf16.msra.mxu0 %v579
  %799 = vmatpush.bf16.msra.mxu0 %v578
  %800 = vmatpush.bf16.msra.mxu0 %v577
  %801 = vmatpush.bf16.msra.mxu0 %v576
  %802 = vmatpush.bf16.msra.mxu0 %v575
  %803 = vmatpush.bf16.msra.mxu0 %v574
  %804 = vmatmul.bf16.gmra.mxu0 %v351
  %v805 = vpop.f32.mrf.mxu0
  %v806 = vadd.f32 %v608, %v805
  %v807 = vpop.f32.mrf.mxu0
  %v808 = vadd.f32 %v610, %v807
  %809 = vmatmul.bf16.gmra.mxu0 %v353
  %v810 = vpop.f32.mrf.mxu0
  %v811 = vadd.f32 %v613, %v810
  %v812 = vpop.f32.mrf.mxu0
  %v813 = vadd.f32 %v615, %v812
  %814 = vmatmul.bf16.gmra.mxu0 %v355
  %v815 = vpop.f32.mrf.mxu0
  %v816 = vadd.f32 %v618, %v815
  %v817 = vpop.f32.mrf.mxu0
  %v818 = vadd.f32 %v620, %v817
  %819 = vmatmul.bf16.gmra.mxu0 %v357
  %v820 = vpop.f32.mrf.mxu0
  %v821 = vadd.f32 %v623, %v820
  %v822 = vpop.f32.mrf.mxu0
  %v823 = vadd.f32 %v625, %v822
  %824 = vmatmul.bf16.gmra.mxu0 %v359
  %v825 = vpop.f32.mrf.mxu0
  %v826 = vadd.f32 %v628, %v825
  %v827 = vpop.f32.mrf.mxu0
  %v828 = vadd.f32 %v630, %v827
  %829 = vmatmul.bf16.gmra.mxu0 %v361
  %v830 = vpop.f32.mrf.mxu0
  %v831 = vadd.f32 %v633, %v830
  %v832 = vpop.f32.mrf.mxu0
  %v833 = vadd.f32 %v635, %v832
  %834 = vmatmul.bf16.gmra.mxu0 %v363
  %v835 = vpop.f32.mrf.mxu0
  %v836 = vadd.f32 %v638, %v835
  %v837 = vpop.f32.mrf.mxu0
  %v838 = vadd.f32 %v640, %v837
  %839 = vmatmul.bf16.gmra.mxu0 %v365
  %v840 = vpop.f32.mrf.mxu0
  %v841 = vadd.f32 %v643, %v840
  %v842 = vpop.f32.mrf.mxu0
  %v843 = vadd.f32 %v645, %v842
  %844 = vmatmul.bf16.gmra.mxu0 %v367
  %v845 = vpop.f32.mrf.mxu0
  %v846 = vadd.f32 %v648, %v845
  %v847 = vpop.f32.mrf.mxu0
  %v848 = vadd.f32 %v650, %v847
  %849 = vmatmul.bf16.gmra.mxu0 %v369
  %v850 = vpop.f32.mrf.mxu0
  %v851 = vadd.f32 %v653, %v850
  %v852 = vpop.f32.mrf.mxu0
  %v853 = vadd.f32 %v655, %v852
  %854 = vmatmul.bf16.gmra.mxu0 %v371
  %v855 = vpop.f32.mrf.mxu0
  %v856 = vadd.f32 %v658, %v855
  %v857 = vpop.f32.mrf.mxu0
  %v858 = vadd.f32 %v660, %v857
  %859 = vmatmul.bf16.gmra.mxu0 %v373
  %v860 = vpop.f32.mrf.mxu0
  %v861 = vadd.f32 %v663, %v860
  %v862 = vpop.f32.mrf.mxu0
  %v863 = vadd.f32 %v665, %v862
  %864 = vmatmul.bf16.gmra.mxu0 %v375
  %v865 = vpop.f32.mrf.mxu0
  %v866 = vadd.f32 %v668, %v865
  %v867 = vpop.f32.mrf.mxu0
  %v868 = vadd.f32 %v670, %v867
  %869 = vmatmul.bf16.gmra.mxu0 %v377
  %v870 = vpop.f32.mrf.mxu0
  %v871 = vadd.f32 %v673, %v870
  %v872 = vpop.f32.mrf.mxu0
  %v873 = vadd.f32 %v675, %v872
  %874 = vmatmul.bf16.gmra.mxu0 %v379
  %v875 = vpop.f32.mrf.mxu0
  %v876 = vadd.f32 %v678, %v875
  %v877 = vpop.f32.mrf.mxu0
  %v878 = vadd.f32 %v680, %v877
  %879 = vmatmul.bf16.gmra.mxu0 %v381
  %v880 = vpop.f32.mrf.mxu0
  %v881 = vadd.f32 %v683, %v880
  %v882 = vpop.f32.mrf.mxu0
  %v883 = vadd.f32 %v685, %v882
  %884 = vmatmul.bf16.gmra.mxu0 %v383
  %v885 = vpop.f32.mrf.mxu0
  %v886 = vadd.f32 %v688, %v885
  %v887 = vpop.f32.mrf.mxu0
  %v888 = vadd.f32 %v690, %v887
  %889 = vmatmul.bf16.gmra.mxu0 %v385
  %v890 = vpop.f32.mrf.mxu0
  %v891 = vadd.f32 %v693, %v890
  %v892 = vpop.f32.mrf.mxu0
  %v893 = vadd.f32 %v695, %v892
  %894 = vmatmul.bf16.gmra.mxu0 %v387
  %v895 = vpop.f32.mrf.mxu0
  %v896 = vadd.f32 %v698, %v895
  %v897 = vpop.f32.mrf.mxu0
  %v898 = vadd.f32 %v700, %v897
  %899 = vmatmul.bf16.gmra.mxu0 %v389
  %v900 = vpop.f32.mrf.mxu0
  %v901 = vadd.f32 %v703, %v900
  %v902 = vpop.f32.mrf.mxu0
  %v903 = vadd.f32 %v705, %v902
  %904 = vmatmul.bf16.gmra.mxu0 %v391
  %v905 = vpop.f32.mrf.mxu0
  %v906 = vadd.f32 %v708, %v905
  %v907 = vpop.f32.mrf.mxu0
  %v908 = vadd.f32 %v710, %v907
  %909 = vmatmul.bf16.gmra.mxu0 %v393
  %v910 = vpop.f32.mrf.mxu0
  %v911 = vadd.f32 %v713, %v910
  %v912 = vpop.f32.mrf.mxu0
  %v913 = vadd.f32 %v715, %v912
  %914 = vmatmul.bf16.gmra.mxu0 %v395
  %v915 = vpop.f32.mrf.mxu0
  %v916 = vadd.f32 %v718, %v915
  %v917 = vpop.f32.mrf.mxu0
  %v918 = vadd.f32 %v720, %v917
  %919 = vmatmul.bf16.gmra.mxu0 %v397
  %v920 = vpop.f32.mrf.mxu0
  %v921 = vadd.f32 %v723, %v920
  %v922 = vpop.f32.mrf.mxu0
  %v923 = vadd.f32 %v725, %v922
  %924 = vmatmul.bf16.gmra.mxu0 %v399
  %v925 = vpop.f32.mrf.mxu0
  %v926 = vadd.f32 %v728, %v925
  %v927 = vpop.f32.mrf.mxu0
  %v928 = vadd.f32 %v730, %v927
  %929 = vmatmul.bf16.gmra.mxu0 %v401
  %v930 = vpop.f32.mrf.mxu0
  %v931 = vadd.f32 %v733, %v930
  %v932 = vpop.f32.mrf.mxu0
  %v933 = vadd.f32 %v735, %v932
  %934 = vmatmul.bf16.gmra.mxu0 %v403
  %v935 = vpop.f32.mrf.mxu0
  %v936 = vadd.f32 %v738, %v935
  %v937 = vpop.f32.mrf.mxu0
  %v938 = vadd.f32 %v740, %v937
  %939 = vmatmul.bf16.gmra.mxu0 %v405
  %v940 = vpop.f32.mrf.mxu0
  %v941 = vadd.f32 %v743, %v940
  %v942 = vpop.f32.mrf.mxu0
  %v943 = vadd.f32 %v745, %v942
  %944 = vmatmul.bf16.gmra.mxu0 %v407
  %v945 = vpop.f32.mrf.mxu0
  %v946 = vadd.f32 %v748, %v945
  %v947 = vpop.f32.mrf.mxu0
  %v948 = vadd.f32 %v750, %v947
  %949 = vmatmul.bf16.gmra.mxu0 %v409
  %v950 = vpop.f32.mrf.mxu0
  %v951 = vadd.f32 %v753, %v950
  %v952 = vpop.f32.mrf.mxu0
  %v953 = vadd.f32 %v755, %v952
  %954 = vmatmul.bf16.gmra.mxu0 %v411
  %v955 = vpop.f32.mrf.mxu0
  %v956 = vadd.f32 %v758, %v955
  %v957 = vpop.f32.mrf.mxu0
  %v958 = vadd.f32 %v760, %v957
  %959 = vmatmul.bf16.gmra.mxu0 %v413
  %v960 = vpop.f32.mrf.mxu0
  %v961 = vadd.f32 %v763, %v960
  %v962 = vpop.f32.mrf.mxu0
  %v963 = vadd.f32 %v765, %v962
  %964 = vmatmul.bf16.gmra.mxu0 %v415
  %v965 = vpop.f32.mrf.mxu0
  %v966 = vadd.f32 %v768, %v965
  %v967 = vpop.f32.mrf.mxu0
  %v968 = vadd.f32 %v770, %v967
  %969 = vmatmul.bf16.gmra.mxu0 %v417
  %v970 = vpop.f32.mrf.mxu0
  %v971 = vadd.f32 %v773, %v970
  %v972 = vpop.f32.mrf.mxu0
  %v973 = vadd.f32 %v775, %v972
  %974 = vmatmul.bf16.gmra.mxu0 %v419
  %v975 = vpop.f32.mrf.mxu0
  %v976 = vadd.f32 %v778, %v975
  %v977 = vpop.f32.mrf.mxu0
  %v978 = vadd.f32 %v780, %v977
  %979 = vmatmul.bf16.gmra.mxu0 %v421
  %v980 = vpop.f32.mrf.mxu0
  %v981 = vadd.f32 %v783, %v980
  %v982 = vpop.f32.mrf.mxu0
  %v983 = vadd.f32 %v785, %v982
  %984 = vmatmul.bf16.gmra.mxu0 %v423
  %v985 = vpop.f32.mrf.mxu0
  %v986 = vadd.f32 %v788, %v985
  %v987 = vpop.f32.mrf.mxu0
  %v988 = vadd.f32 %v790, %v987
  %989 = vmatmul.bf16.gmra.mxu0 %v425
  %v990 = vpop.f32.mrf.mxu0
  %v991 = vadd.f32 %v793, %v990
  %v992 = vpop.f32.mrf.mxu0
  %993 = vdwg.mxu0
  %v994 = vmax.f32 %v806, 0.0
  %v995 = vmax.f32 %v808, 0.0
  %v996 = vmax.f32 %v811, 0.0
  %v997 = vmax.f32 %v813, 0.0
  %v998 = vmax.f32 %v816, 0.0
  %v999 = vmax.f32 %v818, 0.0
  %v1000 = vmax.f32 %v821, 0.0
  %v1001 = vmax.f32 %v823, 0.0
  %v1002 = vmax.f32 %v826, 0.0
  %v1003 = vmax.f32 %v828, 0.0
  %v1004 = vmax.f32 %v831, 0.0
  %v1005 = vmax.f32 %v833, 0.0
  %v1006 = vmax.f32 %v836, 0.0
  %v1007 = vmax.f32 %v838, 0.0
  %v1008 = vmax.f32 %v841, 0.0
  %v1009 = vmax.f32 %v843, 0.0
  %v1010 = vmax.f32 %v846, 0.0
  %v1011 = vmax.f32 %v848, 0.0
  %v1012 = vmax.f32 %v851, 0.0
  %v1013 = vmax.f32 %v853, 0.0
  %v1014 = vmax.f32 %v856, 0.0
  %v1015 = vmax.f32 %v858, 0.0
  %v1016 = vmax.f32 %v861, 0.0
  %v1017 = vmax.f32 %v863, 0.0
  %v1018 = vmax.f32 %v866, 0.0
  %v1019 = vmax.f32 %v868, 0.0
  %v1020 = vmax.f32 %v871, 0.0
  %v1021 = vmax.f32 %v873, 0.0
  %v1022 = vmax.f32 %v876, 0.0
  %v1023 = vmax.f32 %v878, 0.0
  %v1024 = vmax.f32 %v881, 0.0
  %v1025 = vmax.f32 %v883, 0.0
  %v1026 = vmax.f32 %v886, 0.0
  %v1027 = vmax.f32 %v888, 0.0
  %v1028 = vmax.f32 %v891, 0.0
  %v1029 = vmax.f32 %v893, 0.0
  %v1030 = vmax.f32 %v896, 0.0
  %v1031 = vmax.f32 %v898, 0.0
  %v1032 = vmax.f32 %v901, 0.0
  %v1033 = vmax.f32 %v903, 0.0
  %v1034 = vmax.f32 %v906, 0.0
  %v1035 = vmax.f32 %v908, 0.0
  %v1036 = vmax.f32 %v911, 0.0
  %v1037 = vmax.f32 %v913, 0.0
  %v1038 = vmax.f32 %v916, 0.0
  %v1039 = vmax.f32 %v918, 0.0
  %v1040 = vmax.f32 %v921, 0.0
  %v1041 = vmax.f32 %v923, 0.0
  %v1042 = vmax.f32 %v926, 0.0
  %v1043 = vmax.f32 %v928, 0.0
  %v1044 = vmax.f32 %v931, 0.0
  %v1045 = vmax.f32 %v933, 0.0
  %v1046 = vmax.f32 %v936, 0.0
  %v1047 = vmax.f32 %v938, 0.0
  %v1048 = vmax.f32 %v941, 0.0
  %v1049 = vmax.f32 %v943, 0.0
  %v1050 = vmax.f32 %v946, 0.0
  %v1051 = vmax.f32 %v948, 0.0
  %v1052 = vmax.f32 %v951, 0.0
  %v1053 = vmax.f32 %v953, 0.0
  %v1054 = vmax.f32 %v956, 0.0
  %v1055 = vmax.f32 %v958, 0.0
  %v1056 = vmax.f32 %v961, 0.0
  %v1057 = vmax.f32 %v963, 0.0
  %v1058 = vmax.f32 %v966, 0.0
  %v1059 = vmax.f32 %v968, 0.0
  %v1060 = vmax.f32 %v971, 0.0
  %v1061 = vmax.f32 %v973, 0.0
  %v1062 = vmax.f32 %v976, 0.0
  %v1063 = vmax.f32 %v978, 0.0
  %v1064 = vmax.f32 %v981, 0.0
  %v1065 = vmax.f32 %v983, 0.0
  %v1066 = vmax.f32 %v986, 0.0
  %v1067 = vmax.f32 %v988, 0.0
  %v1068 = vmax.f32 %v991, 0.0
  %v1069 = vpack.c.bf16 %v994, %v994
  %v1070 = vpack.c.bf16 %v995, %v995
  %v1071 = vpack.c.bf16 %v996, %v996
  %v1072 = vpack.c.bf16 %v997, %v997
  %v1073 = vpack.c.bf16 %v998, %v998
  %v1074 = vpack.c.bf16 %v999, %v999
  %v1075 = vpack.c.bf16 %v1000, %v1000
  %v1076 = vpack.c.bf16 %v1001, %v1001
  %v1077 = vpack.c.bf16 %v1002, %v1002
  %v1078 = vpack.c.bf16 %v1003, %v1003
  %v1079 = vpack.c.bf16 %v1004, %v1004
  %v1080 = vpack.c.bf16 %v1005, %v1005
  %v1081 = vpack.c.bf16 %v1006, %v1006
  %v1082 = vpack.c.bf16 %v1007, %v1007
  %v1083 = vpack.c.bf16 %v1008, %v1008
  %v1084 = vpack.c.bf16 %v1009, %v1009
  %v1085 = vpack.c.bf16 %v1010, %v1010
  %v1086 = vpack.c.bf16 %v1011, %v1011
  %v1087 = vpack.c.bf16 %v1012, %v1012
  %v1088 = vpack.c.bf16 %v1013, %v1013
  %v1089 = vpack.c.bf16 %v1014, %v1014
  %v1090 = vpack.c.bf16 %v1015, %v1015
  %v1091 = vpack.c.bf16 %v1016, %v1016
  %v1092 = vpack.c.bf16 %v1017, %v1017
  %v1093 = vpack.c.bf16 %v1018, %v1018
  %v1094 = vpack.c.bf16 %v1019, %v1019
  %v1095 = vpack.c.bf16 %v1020, %v1020
  %v1096 = vpack.c.bf16 %v1021, %v1021
  %v1097 = vpack.c.bf16 %v1022, %v1022
  %v1098 = vpack.c.bf16 %v1023, %v1023
  %v1099 = vpack.c.bf16 %v1024, %v1024
  %v1100 = vpack.c.bf16 %v1025, %v1025
  %v1101 = vpack.c.bf16 %v1026, %v1026
  %v1102 = vpack.c.bf16 %v1027, %v1027
  %v1103 = vpack.c.bf16 %v1028, %v1028
  %v1104 = vpack.c.bf16 %v1029, %v1029
  %v1105 = vpack.c.bf16 %v1030, %v1030
  %v1106 = vpack.c.bf16 %v1031, %v1031
  %v1107 = vpack.c.bf16 %v1032, %v1032
  %v1108 = vpack.c.bf16 %v1033, %v1033
  %v1109 = vpack.c.bf16 %v1034, %v1034
  %v1110 = vpack.c.bf16 %v1035, %v1035
  %v1111 = vpack.c.bf16 %v1036, %v1036
  %v1112 = vpack.c.bf16 %v1037, %v1037
  %v1113 = vpack.c.bf16 %v1038, %v1038
  %v1114 = vpack.c.bf16 %v1039, %v1039
  %v1115 = vpack.c.bf16 %v1040, %v1040
  %v1116 = vpack.c.bf16 %v1041, %v1041
  %v1117 = vpack.c.bf16 %v1042, %v1042
  %v1118 = vpack.c.bf16 %v1043, %v1043
  %v1119 = vpack.c.bf16 %v1044, %v1044
  %v1120 = vpack.c.bf16 %v1045, %v1045
  %v1121 = vpack.c.bf16 %v1046, %v1046
  %v1122 = vpack.c.bf16 %v1047, %v1047
  %v1123 = vpack.c.bf16 %v1048, %v1048
  %v1124 = vpack.c.bf16 %v1049, %v1049
  %v1125 = vpack.c.bf16 %v1050, %v1050
  %v1126 = vpack.c.bf16 %v1051, %v1051
  %v1127 = vpack.c.bf16 %v1052, %v1052
  %v1128 = vpack.c.bf16 %v1053, %v1053
  %v1129 = vpack.c.bf16 %v1054, %v1054
  %v1130 = vpack.c.bf16 %v1055, %v1055
  %v1131 = vpack.c.bf16 %v1056, %v1056
  %v1132 = vpack.c.bf16 %v1057, %v1057
  %v1133 = vpack.c.bf16 %v1058, %v1058
  %v1134 = vpack.c.bf16 %v1059, %v1059
  %v1135 = vpack.c.bf16 %v1060, %v1060
  %v1136 = vpack.c.bf16 %v1061, %v1061
  %v1137 = vpack.c.bf16 %v1062, %v1062
  %v1138 = vpack.c.bf16 %v1063, %v1063
  %v1139 = vpack.c.bf16 %v1064, %v1064
  %v1140 = vpack.c.bf16 %v1065, %v1065
  %v1141 = vpack.c.bf16 %v1066, %v1066
  %v1142 = vpack.c.bf16 %v1067, %v1067
  %v1143 = vpack.c.bf16 %v1068, %v1068
  %vm1144 = vcmask 257024
  %1145 = vst.msk [vmem:[%s3] sm:$0xf] %vm1144, %v1069
  %1146 = vst.msk [vmem:[%s3 + $0x4] sm:$0xf] %vm1144, %v1070
  %1147 = vst.msk [vmem:[%s3 + $0x8] sm:$0xf] %vm1144, %v1071
  %1148 = vst.msk [vmem:[%s3 + $0xc] sm:$0xf] %vm1144, %v1072
  %1149 = vst.msk [vmem:[%s3 + $0x10] sm:$0xf] %vm1144, %v1073
  %1150 = vst.msk [vmem:[%s3 + $0x14] sm:$0xf] %vm1144, %v1074
  %1151 = vst.msk [vmem:[%s3 + $0x18] sm:$0xf] %vm1144, %v1075
  %1152 = vst.msk [vmem:[%s3 + $0x1c] sm:$0xf] %vm1144, %v1076
  %1153 = vst.msk [vmem:[%s3 + $0x20] sm:$0xf] %vm1144, %v1077
  %1154 = vst.msk [vmem:[%s3 + $0x24] sm:$0xf] %vm1144, %v1078
  %1155 = vst.msk [vmem:[%s3 + $0x28] sm:$0xf] %vm1144, %v1079
  %1156 = vst.msk [vmem:[%s3 + $0x2c] sm:$0xf] %vm1144, %v1080
  %1157 = vst.msk [vmem:[%s3 + $0x30] sm:$0xf] %vm1144, %v1081
  %1158 = vst.msk [vmem:[%s3 + $0x34] sm:$0xf] %vm1144, %v1082
  %1159 = vst.msk [vmem:[%s3 + $0x38] sm:$0xf] %vm1144, %v1083
  %1160 = vst.msk [vmem:[%s3 + $0x3c] sm:$0xf] %vm1144, %v1084
  %1161 = vst.msk [vmem:[%s3 + $0x40] sm:$0xf] %vm1144, %v1085
  %1162 = vst.msk [vmem:[%s3 + $0x44] sm:$0xf] %vm1144, %v1086
  %1163 = vst.msk [vmem:[%s3 + $0x48] sm:$0xf] %vm1144, %v1087
  %1164 = vst.msk [vmem:[%s3 + $0x4c] sm:$0xf] %vm1144, %v1088
  %1165 = vst.msk [vmem:[%s3 + $0x50] sm:$0xf] %vm1144, %v1089
  %1166 = vst.msk [vmem:[%s3 + $0x54] sm:$0xf] %vm1144, %v1090
  %1167 = vst.msk [vmem:[%s3 + $0x58] sm:$0xf] %vm1144, %v1091
  %1168 = vst.msk [vmem:[%s3 + $0x5c] sm:$0xf] %vm1144, %v1092
  %1169 = vst.msk [vmem:[%s3 + $0x60] sm:$0xf] %vm1144, %v1093
  %1170 = vst.msk [vmem:[%s3 + $0x64] sm:$0xf] %vm1144, %v1094
  %1171 = vst.msk [vmem:[%s3 + $0x68] sm:$0xf] %vm1144, %v1095
  %1172 = vst.msk [vmem:[%s3 + $0x6c] sm:$0xf] %vm1144, %v1096
  %1173 = vst.msk [vmem:[%s3 + $0x70] sm:$0xf] %vm1144, %v1097
  %1174 = vst.msk [vmem:[%s3 + $0x74] sm:$0xf] %vm1144, %v1098
  %1175 = vst.msk [vmem:[%s3 + $0x78] sm:$0xf] %vm1144, %v1099
  %1176 = vst.msk [vmem:[%s3 + $0x7c] sm:$0xf] %vm1144, %v1100
  %1177 = vst.msk [vmem:[%s3 + $0x80] sm:$0xf] %vm1144, %v1101
  %1178 = vst.msk [vmem:[%s3 + $0x84] sm:$0xf] %vm1144, %v1102
  %1179 = vst.msk [vmem:[%s3 + $0x88] sm:$0xf] %vm1144, %v1103
  %1180 = vst.msk [vmem:[%s3 + $0x8c] sm:$0xf] %vm1144, %v1104
  %1181 = vst.msk [vmem:[%s3 + $0x90] sm:$0xf] %vm1144, %v1105
  %1182 = vst.msk [vmem:[%s3 + $0x94] sm:$0xf] %vm1144, %v1106
  %1183 = vst.msk [vmem:[%s3 + $0x98] sm:$0xf] %vm1144, %v1107
  %1184 = vst.msk [vmem:[%s3 + $0x9c] sm:$0xf] %vm1144, %v1108
  %1185 = vst.msk [vmem:[%s3 + $0xa0] sm:$0xf] %vm1144, %v1109
  %1186 = vst.msk [vmem:[%s3 + $0xa4] sm:$0xf] %vm1144, %v1110
  %1187 = vst.msk [vmem:[%s3 + $0xa8] sm:$0xf] %vm1144, %v1111
  %1188 = vst.msk [vmem:[%s3 + $0xac] sm:$0xf] %vm1144, %v1112
  %1189 = vst.msk [vmem:[%s3 + $0xb0] sm:$0xf] %vm1144, %v1113
  %1190 = vst.msk [vmem:[%s3 + $0xb4] sm:$0xf] %vm1144, %v1114
  %1191 = vst.msk [vmem:[%s3 + $0xb8] sm:$0xf] %vm1144, %v1115
  %1192 = vst.msk [vmem:[%s3 + $0xbc] sm:$0xf] %vm1144, %v1116
  %1193 = vst.msk [vmem:[%s3 + $0xc0] sm:$0xf] %vm1144, %v1117
  %1194 = vst.msk [vmem:[%s3 + $0xc4] sm:$0xf] %vm1144, %v1118
  %1195 = vst.msk [vmem:[%s3 + $0xc8] sm:$0xf] %vm1144, %v1119
  %1196 = vst.msk [vmem:[%s3 + $0xcc] sm:$0xf] %vm1144, %v1120
  %1197 = vst.msk [vmem:[%s3 + $0xd0] sm:$0xf] %vm1144, %v1121
  %1198 = vst.msk [vmem:[%s3 + $0xd4] sm:$0xf] %vm1144, %v1122
  %1199 = vst.msk [vmem:[%s3 + $0xd8] sm:$0xf] %vm1144, %v1123
  %1200 = vst.msk [vmem:[%s3 + $0xdc] sm:$0xf] %vm1144, %v1124
  %1201 = vst.msk [vmem:[%s3 + $0xe0] sm:$0xf] %vm1144, %v1125
  %1202 = vst.msk [vmem:[%s3 + $0xe4] sm:$0xf] %vm1144, %v1126
  %1203 = vst.msk [vmem:[%s3 + $0xe8] sm:$0xf] %vm1144, %v1127
  %1204 = vst.msk [vmem:[%s3 + $0xec] sm:$0xf] %vm1144, %v1128
  %1205 = vst.msk [vmem:[%s3 + $0xf0] sm:$0xf] %vm1144, %v1129
  %1206 = vst.msk [vmem:[%s3 + $0xf4] sm:$0xf] %vm1144, %v1130
  %1207 = vst.msk [vmem:[%s3 + $0xf8] sm:$0xf] %vm1144, %v1131
  %1208 = vst.msk [vmem:[%s3 + $0xfc] sm:$0xf] %vm1144, %v1132
  %1209 = vst.msk [vmem:[%s3 + $0x100] sm:$0xf] %vm1144, %v1133
  %1210 = vst.msk [vmem:[%s3 + $0x104] sm:$0xf] %vm1144, %v1134
  %1211 = vst.msk [vmem:[%s3 + $0x108] sm:$0xf] %vm1144, %v1135
  %1212 = vst.msk [vmem:[%s3 + $0x10c] sm:$0xf] %vm1144, %v1136
  %1213 = vst.msk [vmem:[%s3 + $0x110] sm:$0xf] %vm1144, %v1137
  %1214 = vst.msk [vmem:[%s3 + $0x114] sm:$0xf] %vm1144, %v1138
  %1215 = vst.msk [vmem:[%s3 + $0x118] sm:$0xf] %vm1144, %v1139
  %1216 = vst.msk [vmem:[%s3 + $0x11c] sm:$0xf] %vm1144, %v1140
  %1217 = vst.msk [vmem:[%s3 + $0x120] sm:$0xf] %vm1144, %v1141
  %1218 = vst.msk [vmem:[%s3 + $0x124] sm:$0xf] %vm1144, %v1142
  %1219 = vst.msk [vmem:[%s3 + $0x128] sm:$0xf] %vm1144, %v1143
  // Predicated region
  $region14: #{actor_critic_forward.4} parent=0 // pred_check
    _
  $region15: #{actor_critic_forward.4} parent=0 // pred_check_branch
    %1221 = sbr.rel (0) target = $region17
  $region16: #{actor_critic_forward.4} parent=0 // pred_region
    _
  $region17: #{actor_critic_forward.4} parent=0 // pred_fallthru
    _
  // Predicated region
  $region18: #{actor_critic_forward.4} parent=0 // pred_check
    _
  $region19: #{actor_critic_forward.4} parent=0 // pred_check_branch
    %1223 = sbr.rel (0) target = $region21
  $region20: #{actor_critic_forward.4} parent=0 // pred_region
    _
  $region21: #{actor_critic_forward.4} parent=0 // pred_fallthru
    _

// kernel: actor_critic_forward.5
$region0: #{actor_critic_forward.5}
  #allocation0 [shape = 'u32[]', space=smem, size = 0x4, offset = 0x4, fixed_abs, tag = 'smem constant byte address 0x4 - core index']
  #allocation1 [shape = 'u32[72,128]{1,0:T(1,128)}', space=vmem, size = 0x9000, scoped, tag = 'internal scratch']
  %s0 = inlined_call_operand.vmem [shape: bf16[108,512], index: 0, kind: input, shape index: {}]
  %s1 = inlined_call_operand.vmem [shape: bf16[512,64], index: 1, kind: input, shape index: {}]
  %s2 = inlined_call_operand.vmem [shape: f32[1,64], index: 2, kind: input, shape index: {}]
  %s3 = inlined_call_operand.vmem [shape: bf16[108,64], index: 3, kind: output, shape index: {}]
  %s4 = sld [smem:[#allocation0]]
  $region22: #{actor_critic_forward.5} parent=0
    _
  %s6 = ssub.s32 1, %s4
  %s7 = scalar_select 0, %s6, %s4
  // Predicated region
  $region2: #{actor_critic_forward.5} parent=0 // pred_check
    _
  $region3: #{actor_critic_forward.5} parent=0 // pred_check_branch
    %9 = sbr.rel (0) target = $region5
  $region4: #{actor_critic_forward.5} parent=0 // pred_region
    _
  $region5: #{actor_critic_forward.5} parent=0 // pred_fallthru
    _
  // Predicated region
  $region6: #{actor_critic_forward.5} parent=0 // pred_check
    _
  $region7: #{actor_critic_forward.5} parent=0 // pred_check_branch
    %11 = sbr.rel (0) target = $region9
  $region8: #{actor_critic_forward.5} parent=0 // pred_region
    _
  $region9: #{actor_critic_forward.5} parent=0 // pred_fallthru
    _
  // Predicated region
  $region10: #{actor_critic_forward.5} parent=0 // pred_check
    _
  $region11: #{actor_critic_forward.5} parent=0 // pred_check_branch
    %13 = sbr.rel (0) target = $region13
  $region12: #{actor_critic_forward.5} parent=0 // pred_region
    _
  $region13: #{actor_critic_forward.5} parent=0 // pred_fallthru
    _
  %v14 = vld [vmem:[%s0] sm:$0xff]
  %v15 = vld [vmem:[%s0 + $0x8] sm:$0xff]
  %v16 = vld [vmem:[%s0 + $0x10] sm:$0xff]
  %v17 = vld [vmem:[%s0 + $0x18] sm:$0xff]
  %v18 = vld [vmem:[%s0 + $0x20] sm:$0xff]
  %v19 = vld [vmem:[%s0 + $0x28] sm:$0xff]
  %v20 = vld [vmem:[%s0 + $0x30] sm:$0xff]
  %v21 = vld [vmem:[%s0 + $0x38] sm:$0xff]
  %v22 = vld [vmem:[%s0 + $0x40] sm:$0xff]
  %v23 = vld [vmem:[%s0 + $0x48] sm:$0xff]
  %v24 = vld [vmem:[%s0 + $0x50] sm:$0xff]
  %v25 = vld [vmem:[%s0 + $0x58] sm:$0xff]
  %v26 = vld [vmem:[%s0 + $0x60] sm:$0xff]
  %v27 = vld [vmem:[%s0 + $0x68] sm:$0xff]
  %v28 = vld [vmem:[%s0 + $0x70] sm:$0xff]
  %v29 = vld [vmem:[%s0 + $0x78] sm:$0xff]
  %v30 = vld [vmem:[%s0 + $0x80] sm:$0xff]
  %v31 = vld [vmem:[%s0 + $0x88] sm:$0xff]
  %v32 = vld [vmem:[%s0 + $0x90] sm:$0xff]
  %v33 = vld [vmem:[%s0 + $0x98] sm:$0xff]
  %v34 = vld [vmem:[%s0 + $0xa0] sm:$0xff]
  %v35 = vld [vmem:[%s0 + $0xa8] sm:$0xff]
  %v36 = vld [vmem:[%s0 + $0xb0] sm:$0xff]
  %v37 = vld [vmem:[%s0 + $0xb8] sm:$0xff]
  %v38 = vld [vmem:[%s0 + $0xc0] sm:$0xff]
  %v39 = vld [vmem:[%s0 + $0xc8] sm:$0xff]
  %v40 = vld [vmem:[%s0 + $0xd0] sm:$0x33]
  %v41 = vld [vmem:[%s0 + $0xd8] sm:$0x33]
  %v42 = vld [vmem:[%s1] sm:$0xf]
  %v43 = vld [vmem:[%s1 + $0x4] sm:$0xf]
  %v44 = vld [vmem:[%s1 + $0x8] sm:$0xf]
  %v45 = vld [vmem:[%s1 + $0xc] sm:$0xf]
  %v46 = vld [vmem:[%s1 + $0x10] sm:$0xf]
  %v47 = vld [vmem:[%s1 + $0x14] sm:$0xf]
  %v48 = vld [vmem:[%s1 + $0x18] sm:$0xf]
  %v49 = vld [vmem:[%s1 + $0x1c] sm:$0xf]
  %v50 = vld [vmem:[%s1 + $0x20] sm:$0xf]
  %v51 = vld [vmem:[%s1 + $0x24] sm:$0xf]
  %v52 = vld [vmem:[%s1 + $0x28] sm:$0xf]
  %v53 = vld [vmem:[%s1 + $0x2c] sm:$0xf]
  %v54 = vld [vmem:[%s1 + $0x30] sm:$0xf]
  %v55 = vld [vmem:[%s1 + $0x34] sm:$0xf]
  %v56 = vld [vmem:[%s1 + $0x38] sm:$0xf]
  %v57 = vld [vmem:[%s1 + $0x3c] sm:$0xf]
  %v58 = vld [vmem:[%s1 + $0x40] sm:$0xf]
  %v59 = vld [vmem:[%s1 + $0x44] sm:$0xf]
  %v60 = vld [vmem:[%s1 + $0x48] sm:$0xf]
  %v61 = vld [vmem:[%s1 + $0x4c] sm:$0xf]
  %v62 = vld [vmem:[%s1 + $0x50] sm:$0xf]
  %v63 = vld [vmem:[%s1 + $0x54] sm:$0xf]
  %v64 = vld [vmem:[%s1 + $0x58] sm:$0xf]
  %v65 = vld [vmem:[%s1 + $0x5c] sm:$0xf]
  %v66 = vld [vmem:[%s1 + $0x60] sm:$0xf]
  %v67 = vld [vmem:[%s1 + $0x64] sm:$0xf]
  %v68 = vld [vmem:[%s1 + $0x68] sm:$0xf]
  %v69 = vld [vmem:[%s1 + $0x6c] sm:$0xf]
  %v70 = vld [vmem:[%s1 + $0x70] sm:$0xf]
  %v71 = vld [vmem:[%s1 + $0x74] sm:$0xf]
  %v72 = vld [vmem:[%s1 + $0x78] sm:$0xf]
  %v73 = vld [vmem:[%s1 + $0x7c] sm:$0xf]
  %v74 = vld [vmem:[%s1 + $0x80] sm:$0xf]
  %v75 = vld [vmem:[%s1 + $0x84] sm:$0xf]
  %v76 = vld [vmem:[%s1 + $0x88] sm:$0xf]
  %v77 = vld [vmem:[%s1 + $0x8c] sm:$0xf]
  %v78 = vld [vmem:[%s1 + $0x90] sm:$0xf]
  %v79 = vld [vmem:[%s1 + $0x94] sm:$0xf]
  %v80 = vld [vmem:[%s1 + $0x98] sm:$0xf]
  %v81 = vld [vmem:[%s1 + $0x9c] sm:$0xf]
  %v82 = vld [vmem:[%s1 + $0xa0] sm:$0xf]
  %v83 = vld [vmem:[%s1 + $0xa4] sm:$0xf]
  %v84 = vld [vmem:[%s1 + $0xa8] sm:$0xf]
  %v85 = vld [vmem:[%s1 + $0xac] sm:$0xf]
  %v86 = vld [vmem:[%s1 + $0xb0] sm:$0xf]
  %v87 = vld [vmem:[%s1 + $0xb4] sm:$0xf]
  %v88 = vld [vmem:[%s1 + $0xb8] sm:$0xf]
  %v89 = vld [vmem:[%s1 + $0xbc] sm:$0xf]
  %v90 = vld [vmem:[%s1 + $0xc0] sm:$0xf]
  %v91 = vld [vmem:[%s1 + $0xc4] sm:$0xf]
  %v92 = vld [vmem:[%s1 + $0xc8] sm:$0xf]
  %v93 = vld [vmem:[%s1 + $0xcc] sm:$0xf]
  %v94 = vld [vmem:[%s1 + $0xd0] sm:$0xf]
  %v95 = vld [vmem:[%s1 + $0xd4] sm:$0xf]
  %v96 = vld [vmem:[%s1 + $0xd8] sm:$0xf]
  %v97 = vld [vmem:[%s1 + $0xdc] sm:$0xf]
  %v98 = vld [vmem:[%s1 + $0xe0] sm:$0xf]
  %v99 = vld [vmem:[%s1 + $0xe4] sm:$0xf]
  %v100 = vld [vmem:[%s1 + $0xe8] sm:$0xf]
  %v101 = vld [vmem:[%s1 + $0xec] sm:$0xf]
  %v102 = vld [vmem:[%s1 + $0xf0] sm:$0xf]
  %v103 = vld [vmem:[%s1 + $0xf4] sm:$0xf]
  %v104 = vld [vmem:[%s1 + $0xf8] sm:$0xf]
  %v105 = vld [vmem:[%s1 + $0xfc] sm:$0xf]
  %v106 = vld [vmem:[%s2] sm:$0x1]
  %v108 = vperm.slane %v106, 0
  %v138 = vunpack.c.l.b16 %v14
  %v139 = vunpack.c.h.b16 %v14
  %v140 = vunpack.c.l.b16 %v15
  %v141 = vunpack.c.h.b16 %v15
  %v142 = vunpack.c.l.b16 %v16
  %v143 = vunpack.c.h.b16 %v16
  %v144 = vunpack.c.l.b16 %v17
  %v145 = vunpack.c.h.b16 %v17
  %v146 = vunpack.c.l.b16 %v18
  %v147 = vunpack.c.h.b16 %v18
  %v148 = vunpack.c.l.b16 %v19
  %v149 = vunpack.c.h.b16 %v19
  %v150 = vunpack.c.l.b16 %v20
  %v151 = vunpack.c.h.b16 %v20
  %v152 = vunpack.c.l.b16 %v21
  %v153 = vunpack.c.h.b16 %v21
  %v154 = vunpack.c.l.b16 %v22
  %v155 = vunpack.c.h.b16 %v22
  %v156 = vunpack.c.l.b16 %v23
  %v157 = vunpack.c.h.b16 %v23
  %v158 = vunpack.c.l.b16 %v24
  %v159 = vunpack.c.h.b16 %v24
  %v160 = vunpack.c.l.b16 %v25
  %v161 = vunpack.c.h.b16 %v25
  %v162 = vunpack.c.l.b16 %v26
  %v163 = vunpack.c.h.b16 %v26
  %v164 = vunpack.c.l.b16 %v27
  %v165 = vunpack.c.h.b16 %v27
  %v166 = vunpack.c.l.b16 %v28
  %v167 = vunpack.c.h.b16 %v28
  %v168 = vunpack.c.l.b16 %v29
  %v169 = vunpack.c.h.b16 %v29
  %v170 = vunpack.c.l.b16 %v30
  %v171 = vunpack.c.h.b16 %v30
  %v172 = vunpack.c.l.b16 %v31
  %v173 = vunpack.c.h.b16 %v31
  %v174 = vunpack.c.l.b16 %v32
  %v175 = vunpack.c.h.b16 %v32
  %v176 = vunpack.c.l.b16 %v33
  %v177 = vunpack.c.h.b16 %v33
  %v178 = vunpack.c.l.b16 %v34
  %v179 = vunpack.c.h.b16 %v34
  %v180 = vunpack.c.l.b16 %v35
  %v181 = vunpack.c.h.b16 %v35
  %v182 = vunpack.c.l.b16 %v36
  %v183 = vunpack.c.h.b16 %v36
  %v184 = vunpack.c.l.b16 %v37
  %v185 = vunpack.c.h.b16 %v37
  %v186 = vunpack.c.l.b16 %v38
  %v187 = vunpack.c.h.b16 %v38
  %v188 = vunpack.c.l.b16 %v39
  %v189 = vunpack.c.h.b16 %v39
  %v190 = vunpack.c.l.b16 %v40
  %v191 = vunpack.c.h.b16 %v40
  %v192 = vunpack.c.l.b16 %v41
  %v193 = vunpack.c.h.b16 %v41
  %v194 = vpack.c.b16 %v142, %v138
  %v195 = vpack.c.b16 %v143, %v139
  %v196 = vpack.c.b16 %v144, %v140
  %v197 = vpack.c.b16 %v145, %v141
  %v198 = vpack.c.b16 %v150, %v146
  %v199 = vpack.c.b16 %v151, %v147
  %v200 = vpack.c.b16 %v152, %v148
  %v201 = vpack.c.b16 %v153, %v149
  %v202 = vpack.c.b16 %v158, %v154
  %v203 = vpack.c.b16 %v159, %v155
  %v204 = vpack.c.b16 %v160, %v156
  %v205 = vpack.c.b16 %v161, %v157
  %v206 = vpack.c.b16 %v166, %v162
  %v207 = vpack.c.b16 %v167, %v163
  %v208 = vpack.c.b16 %v168, %v164
  %v209 = vpack.c.b16 %v169, %v165
  %v210 = vpack.c.b16 %v174, %v170
  %v211 = vpack.c.b16 %v175, %v171
  %v212 = vpack.c.b16 %v176, %v172
  %v213 = vpack.c.b16 %v177, %v173
  %v214 = vpack.c.b16 %v182, %v178
  %v215 = vpack.c.b16 %v183, %v179
  %v216 = vpack.c.b16 %v184, %v180
  %v217 = vpack.c.b16 %v185, %v181
  %v218 = vpack.c.b16 %v190, %v186
  %v219 = vpack.c.b16 %v191, %v187
  %v220 = vpack.c.b16 %v192, %v188
  %v221 = vpack.c.b16 %v193, %v189
  %v314 = vunpack.c.l.b16 %v42
  %v315 = vunpack.c.l.b16 %v43
  %v316 = vunpack.c.l.b16 %v44
  %v317 = vunpack.c.l.b16 %v45
  %v318 = vunpack.c.l.b16 %v46
  %v319 = vunpack.c.l.b16 %v47
  %v320 = vunpack.c.l.b16 %v48
  %v321 = vunpack.c.l.b16 %v49
  %v322 = vunpack.c.l.b16 %v50
  %v323 = vunpack.c.l.b16 %v51
  %v324 = vunpack.c.l.b16 %v52
  %v325 = vunpack.c.l.b16 %v53
  %v326 = vunpack.c.l.b16 %v54
  %v327 = vunpack.c.l.b16 %v55
  %v328 = vunpack.c.l.b16 %v56
  %v329 = vunpack.c.l.b16 %v57
  %v330 = vunpack.c.l.b16 %v58
  %v331 = vunpack.c.l.b16 %v59
  %v332 = vunpack.c.l.b16 %v60
  %v333 = vunpack.c.l.b16 %v61
  %v334 = vunpack.c.l.b16 %v62
  %v335 = vunpack.c.l.b16 %v63
  %v336 = vunpack.c.l.b16 %v64
  %v337 = vunpack.c.l.b16 %v65
  %v338 = vunpack.c.l.b16 %v66
  %v339 = vunpack.c.l.b16 %v67
  %v340 = vunpack.c.l.b16 %v68
  %v341 = vunpack.c.l.b16 %v69
  %v342 = vunpack.c.l.b16 %v70
  %v343 = vunpack.c.l.b16 %v71
  %v344 = vunpack.c.l.b16 %v72
  %v345 = vunpack.c.l.b16 %v73
  %v346 = vunpack.c.l.b16 %v74
  %v347 = vunpack.c.l.b16 %v75
  %v348 = vunpack.c.l.b16 %v76
  %v349 = vunpack.c.l.b16 %v77
  %v350 = vunpack.c.l.b16 %v78
  %v351 = vunpack.c.l.b16 %v79
  %v352 = vunpack.c.l.b16 %v80
  %v353 = vunpack.c.l.b16 %v81
  %v354 = vunpack.c.l.b16 %v82
  %v355 = vunpack.c.l.b16 %v83
  %v356 = vunpack.c.l.b16 %v84
  %v357 = vunpack.c.l.b16 %v85
  %v358 = vunpack.c.l.b16 %v86
  %v359 = vunpack.c.l.b16 %v87
  %v360 = vunpack.c.l.b16 %v88
  %v361 = vunpack.c.l.b16 %v89
  %v362 = vunpack.c.l.b16 %v90
  %v363 = vunpack.c.l.b16 %v91
  %v364 = vunpack.c.l.b16 %v92
  %v365 = vunpack.c.l.b16 %v93
  %v366 = vunpack.c.l.b16 %v94
  %v367 = vunpack.c.l.b16 %v95
  %v368 = vunpack.c.l.b16 %v96
  %v369 = vunpack.c.l.b16 %v97
  %v370 = vunpack.c.l.b16 %v98
  %v371 = vunpack.c.l.b16 %v99
  %v372 = vunpack.c.l.b16 %v100
  %v373 = vunpack.c.l.b16 %v101
  %v374 = vunpack.c.l.b16 %v102
  %v375 = vunpack.c.l.b16 %v103
  %v376 = vunpack.c.l.b16 %v104
  %v377 = vunpack.c.l.b16 %v105
  %v378 = vpack.c.b16 %v315, %v314
  %v379 = vpack.c.b16 %v317, %v316
  %v380 = vpack.c.b16 %v319, %v318
  %v381 = vpack.c.b16 %v321, %v320
  %v382 = vpack.c.b16 %v323, %v322
  %v383 = vpack.c.b16 %v325, %v324
  %v384 = vpack.c.b16 %v327, %v326
  %v385 = vpack.c.b16 %v329, %v328
  %v386 = vpack.c.b16 %v331, %v330
  %v387 = vpack.c.b16 %v333, %v332
  %v388 = vpack.c.b16 %v335, %v334
  %v389 = vpack.c.b16 %v337, %v336
  %v390 = vpack.c.b16 %v339, %v338
  %v391 = vpack.c.b16 %v341, %v340
  %v392 = vpack.c.b16 %v343, %v342
  %v393 = vpack.c.b16 %v345, %v344
  %v394 = vpack.c.b16 %v347, %v346
  %v395 = vpack.c.b16 %v349, %v348
  %v396 = vpack.c.b16 %v351, %v350
  %v397 = vpack.c.b16 %v353, %v352
  %v398 = vpack.c.b16 %v355, %v354
  %v399 = vpack.c.b16 %v357, %v356
  %v400 = vpack.c.b16 %v359, %v358
  %v401 = vpack.c.b16 %v361, %v360
  %v402 = vpack.c.b16 %v363, %v362
  %v403 = vpack.c.b16 %v365, %v364
  %v404 = vpack.c.b16 %v367, %v366
  %v405 = vpack.c.b16 %v369, %v368
  %v406 = vpack.c.b16 %v371, %v370
  %v407 = vpack.c.b16 %v373, %v372
  %v408 = vpack.c.b16 %v375, %v374
  %v409 = vpack.c.b16 %v377, %v376
  %442 = vmatpush.bf16.msra.mxu0 %v385
  %443 = vmatpush.bf16.msra.mxu0 %v384
  %444 = vmatpush.bf16.msra.mxu0 %v383
  %445 = vmatpush.bf16.msra.mxu0 %v382
  %446 = vmatpush.bf16.msra.mxu0 %v381
  %447 = vmatpush.bf16.msra.mxu0 %v380
  %448 = vmatpush.bf16.msra.mxu0 %v379
  %449 = vmatpush.bf16.msra.mxu0 %v378
  %450 = vmatmul.bf16.gmra.mxu0 %v194
  %v451 = vpop.f32.mrf.mxu0
  %v452 = vadd.f32 %v108, %v451
  %v453 = vpop.f32.mrf.mxu0
  %v454 = vadd.f32 %v108, %v453
  %455 = vmatmul.bf16.gmra.mxu0 %v198
  %v456 = vpop.f32.mrf.mxu0
  %v457 = vadd.f32 %v108, %v456
  %v458 = vpop.f32.mrf.mxu0
  %v459 = vadd.f32 %v108, %v458
  %460 = vmatmul.bf16.gmra.mxu0 %v202
  %v461 = vpop.f32.mrf.mxu0
  %v462 = vadd.f32 %v108, %v461
  %v463 = vpop.f32.mrf.mxu0
  %v464 = vadd.f32 %v108, %v463
  %465 = vmatmul.bf16.gmra.mxu0 %v206
  %v466 = vpop.f32.mrf.mxu0
  %v467 = vadd.f32 %v108, %v466
  %v468 = vpop.f32.mrf.mxu0
  %v469 = vadd.f32 %v108, %v468
  %470 = vmatmul.bf16.gmra.mxu0 %v210
  %v471 = vpop.f32.mrf.mxu0
  %v472 = vadd.f32 %v108, %v471
  %v473 = vpop.f32.mrf.mxu0
  %v474 = vadd.f32 %v108, %v473
  %475 = vmatmul.bf16.gmra.mxu0 %v214
  %v476 = vpop.f32.mrf.mxu0
  %v477 = vadd.f32 %v108, %v476
  %v478 = vpop.f32.mrf.mxu0
  %v479 = vadd.f32 %v108, %v478
  %480 = vmatmul.bf16.gmra.mxu0 %v218
  %v481 = vpop.f32.mrf.mxu0
  %v482 = vadd.f32 %v108, %v481
  %v483 = vpop.f32.mrf.mxu0
  %v484 = vadd.f32 %v108, %v483
  %485 = vdwg.mxu0
  %486 = vmatpush.bf16.msra.mxu0 %v393
  %487 = vmatpush.bf16.msra.mxu0 %v392
  %488 = vmatpush.bf16.msra.mxu0 %v391
  %489 = vmatpush.bf16.msra.mxu0 %v390
  %490 = vmatpush.bf16.msra.mxu0 %v389
  %491 = vmatpush.bf16.msra.mxu0 %v388
  %492 = vmatpush.bf16.msra.mxu0 %v387
  %493 = vmatpush.bf16.msra.mxu0 %v386
  %494 = vmatmul.bf16.gmra.mxu0 %v195
  %v495 = vpop.f32.mrf.mxu0
  %v496 = vadd.f32 %v452, %v495
  %v497 = vpop.f32.mrf.mxu0
  %v498 = vadd.f32 %v454, %v497
  %499 = vmatmul.bf16.gmra.mxu0 %v199
  %v500 = vpop.f32.mrf.mxu0
  %v501 = vadd.f32 %v457, %v500
  %v502 = vpop.f32.mrf.mxu0
  %v503 = vadd.f32 %v459, %v502
  %504 = vmatmul.bf16.gmra.mxu0 %v203
  %v505 = vpop.f32.mrf.mxu0
  %v506 = vadd.f32 %v462, %v505
  %v507 = vpop.f32.mrf.mxu0
  %v508 = vadd.f32 %v464, %v507
  %509 = vmatmul.bf16.gmra.mxu0 %v207
  %v510 = vpop.f32.mrf.mxu0
  %v511 = vadd.f32 %v467, %v510
  %v512 = vpop.f32.mrf.mxu0
  %v513 = vadd.f32 %v469, %v512
  %514 = vmatmul.bf16.gmra.mxu0 %v211
  %v515 = vpop.f32.mrf.mxu0
  %v516 = vadd.f32 %v472, %v515
  %v517 = vpop.f32.mrf.mxu0
  %v518 = vadd.f32 %v474, %v517
  %519 = vmatmul.bf16.gmra.mxu0 %v215
  %v520 = vpop.f32.mrf.mxu0
  %v521 = vadd.f32 %v477, %v520
  %v522 = vpop.f32.mrf.mxu0
  %v523 = vadd.f32 %v479, %v522
  %524 = vmatmul.bf16.gmra.mxu0 %v219
  %v525 = vpop.f32.mrf.mxu0
  %v526 = vadd.f32 %v482, %v525
  %v527 = vpop.f32.mrf.mxu0
  %v528 = vadd.f32 %v484, %v527
  %529 = vdwg.mxu0
  %530 = vmatpush.bf16.msra.mxu0 %v401
  %531 = vmatpush.bf16.msra.mxu0 %v400
  %532 = vmatpush.bf16.msra.mxu0 %v399
  %533 = vmatpush.bf16.msra.mxu0 %v398
  %534 = vmatpush.bf16.msra.mxu0 %v397
  %535 = vmatpush.bf16.msra.mxu0 %v396
  %536 = vmatpush.bf16.msra.mxu0 %v395
  %537 = vmatpush.bf16.msra.mxu0 %v394
  %538 = vmatmul.bf16.gmra.mxu0 %v196
  %v539 = vpop.f32.mrf.mxu0
  %v540 = vadd.f32 %v496, %v539
  %v541 = vpop.f32.mrf.mxu0
  %v542 = vadd.f32 %v498, %v541
  %543 = vmatmul.bf16.gmra.mxu0 %v200
  %v544 = vpop.f32.mrf.mxu0
  %v545 = vadd.f32 %v501, %v544
  %v546 = vpop.f32.mrf.mxu0
  %v547 = vadd.f32 %v503, %v546
  %548 = vmatmul.bf16.gmra.mxu0 %v204
  %v549 = vpop.f32.mrf.mxu0
  %v550 = vadd.f32 %v506, %v549
  %v551 = vpop.f32.mrf.mxu0
  %v552 = vadd.f32 %v508, %v551
  %553 = vmatmul.bf16.gmra.mxu0 %v208
  %v554 = vpop.f32.mrf.mxu0
  %v555 = vadd.f32 %v511, %v554
  %v556 = vpop.f32.mrf.mxu0
  %v557 = vadd.f32 %v513, %v556
  %558 = vmatmul.bf16.gmra.mxu0 %v212
  %v559 = vpop.f32.mrf.mxu0
  %v560 = vadd.f32 %v516, %v559
  %v561 = vpop.f32.mrf.mxu0
  %v562 = vadd.f32 %v518, %v561
  %563 = vmatmul.bf16.gmra.mxu0 %v216
  %v564 = vpop.f32.mrf.mxu0
  %v565 = vadd.f32 %v521, %v564
  %v566 = vpop.f32.mrf.mxu0
  %v567 = vadd.f32 %v523, %v566
  %568 = vmatmul.bf16.gmra.mxu0 %v220
  %v569 = vpop.f32.mrf.mxu0
  %v570 = vadd.f32 %v526, %v569
  %v571 = vpop.f32.mrf.mxu0
  %v572 = vadd.f32 %v528, %v571
  %573 = vdwg.mxu0
  %574 = vmatpush.bf16.msra.mxu0 %v409
  %575 = vmatpush.bf16.msra.mxu0 %v408
  %576 = vmatpush.bf16.msra.mxu0 %v407
  %577 = vmatpush.bf16.msra.mxu0 %v406
  %578 = vmatpush.bf16.msra.mxu0 %v405
  %579 = vmatpush.bf16.msra.mxu0 %v404
  %580 = vmatpush.bf16.msra.mxu0 %v403
  %581 = vmatpush.bf16.msra.mxu0 %v402
  %582 = vmatmul.bf16.gmra.mxu0 %v197
  %v583 = vpop.f32.mrf.mxu0
  %v584 = vadd.f32 %v540, %v583
  %v585 = vpop.f32.mrf.mxu0
  %v586 = vadd.f32 %v542, %v585
  %587 = vmatmul.bf16.gmra.mxu0 %v201
  %v588 = vpop.f32.mrf.mxu0
  %v589 = vadd.f32 %v545, %v588
  %v590 = vpop.f32.mrf.mxu0
  %v591 = vadd.f32 %v547, %v590
  %592 = vmatmul.bf16.gmra.mxu0 %v205
  %v593 = vpop.f32.mrf.mxu0
  %v594 = vadd.f32 %v550, %v593
  %v595 = vpop.f32.mrf.mxu0
  %v596 = vadd.f32 %v552, %v595
  %597 = vmatmul.bf16.gmra.mxu0 %v209
  %v598 = vpop.f32.mrf.mxu0
  %v599 = vadd.f32 %v555, %v598
  %v600 = vpop.f32.mrf.mxu0
  %v601 = vadd.f32 %v557, %v600
  %602 = vmatmul.bf16.gmra.mxu0 %v213
  %v603 = vpop.f32.mrf.mxu0
  %v604 = vadd.f32 %v560, %v603
  %v605 = vpop.f32.mrf.mxu0
  %v606 = vadd.f32 %v562, %v605
  %607 = vmatmul.bf16.gmra.mxu0 %v217
  %v608 = vpop.f32.mrf.mxu0
  %v609 = vadd.f32 %v565, %v608
  %v610 = vpop.f32.mrf.mxu0
  %v611 = vadd.f32 %v567, %v610
  %612 = vmatmul.bf16.gmra.mxu0 %v221
  %v613 = vpop.f32.mrf.mxu0
  %v614 = vadd.f32 %v570, %v613
  %v615 = vpop.f32.mrf.mxu0
  %v616 = vadd.f32 %v572, %v615
  %617 = vdwg.mxu0
  %v618 = vmax.f32 %v584, 0.0
  %v619 = vmax.f32 %v586, 0.0
  %v620 = vmax.f32 %v589, 0.0
  %v621 = vmax.f32 %v591, 0.0
  %v622 = vmax.f32 %v594, 0.0
  %v623 = vmax.f32 %v596, 0.0
  %v624 = vmax.f32 %v599, 0.0
  %v625 = vmax.f32 %v601, 0.0
  %v626 = vmax.f32 %v604, 0.0
  %v627 = vmax.f32 %v606, 0.0
  %v628 = vmax.f32 %v609, 0.0
  %v629 = vmax.f32 %v611, 0.0
  %v630 = vmax.f32 %v614, 0.0
  %v631 = vmax.f32 %v616, 0.0
  %v632 = vpack.c.bf16 %v618, %v618
  %v633 = vpack.c.bf16 %v619, %v619
  %v634 = vpack.c.bf16 %v620, %v620
  %v635 = vpack.c.bf16 %v621, %v621
  %v636 = vpack.c.bf16 %v622, %v622
  %v637 = vpack.c.bf16 %v623, %v623
  %v638 = vpack.c.bf16 %v624, %v624
  %v639 = vpack.c.bf16 %v625, %v625
  %v640 = vpack.c.bf16 %v626, %v626
  %v641 = vpack.c.bf16 %v627, %v627
  %v642 = vpack.c.bf16 %v628, %v628
  %v643 = vpack.c.bf16 %v629, %v629
  %v644 = vpack.c.bf16 %v630, %v630
  %v645 = vpack.c.bf16 %v631, %v631
  %vm646 = vcmask 519168
  %647 = vst.msk [vmem:[%s3] sm:$0xf] %vm646, %v632
  %648 = vst.msk [vmem:[%s3 + $0x4] sm:$0xf] %vm646, %v633
  %649 = vst.msk [vmem:[%s3 + $0x8] sm:$0xf] %vm646, %v634
  %650 = vst.msk [vmem:[%s3 + $0xc] sm:$0xf] %vm646, %v635
  %651 = vst.msk [vmem:[%s3 + $0x10] sm:$0xf] %vm646, %v636
  %652 = vst.msk [vmem:[%s3 + $0x14] sm:$0xf] %vm646, %v637
  %653 = vst.msk [vmem:[%s3 + $0x18] sm:$0xf] %vm646, %v638
  %654 = vst.msk [vmem:[%s3 + $0x1c] sm:$0xf] %vm646, %v639
  %655 = vst.msk [vmem:[%s3 + $0x20] sm:$0xf] %vm646, %v640
  %656 = vst.msk [vmem:[%s3 + $0x24] sm:$0xf] %vm646, %v641
  %657 = vst.msk [vmem:[%s3 + $0x28] sm:$0xf] %vm646, %v642
  %658 = vst.msk [vmem:[%s3 + $0x2c] sm:$0xf] %vm646, %v643
  %659 = vst.msk [vmem:[%s3 + $0x30] sm:$0xf] %vm646, %v644
  %vm660 = vcmask 517120
  %661 = vst.msk [vmem:[%s3 + $0x34] sm:$0x3] %vm660, %v645
  // Predicated region
  $region14: #{actor_critic_forward.5} parent=0 // pred_check
    _
  $region15: #{actor_critic_forward.5} parent=0 // pred_check_branch
    %663 = sbr.rel (0) target = $region17
  $region16: #{actor_critic_forward.5} parent=0 // pred_region
    _
  $region17: #{actor_critic_forward.5} parent=0 // pred_fallthru
    _
  // Predicated region
  $region18: #{actor_critic_forward.5} parent=0 // pred_check
    _
  $region19: #{actor_critic_forward.5} parent=0 // pred_check_branch
    %665 = sbr.rel (0) target = $region21
  $region20: #{actor_critic_forward.5} parent=0 // pred_region
    _
  $region21: #{actor_critic_forward.5} parent=0 // pred_fallthru
    _

// kernel: actor_critic_forward.6
$region0: #{actor_critic_forward.6}
  #allocation0 [shape = 'u32[]', space=smem, size = 0x4, offset = 0x4, fixed_abs, tag = 'smem constant byte address 0x4 - core index']
  #allocation1 [shape = 'u32[72,128]{1,0:T(1,128)}', space=vmem, size = 0x9000, scoped, tag = 'internal scratch']
  %s0 = inlined_call_operand.vmem [shape: bf16[56,576], index: 0, kind: input, shape index: {}]
  %s1 = inlined_call_operand.vmem [shape: bf16[576,64], index: 1, kind: input, shape index: {}]
  %s2 = inlined_call_operand.vmem [shape: f32[1,64], index: 2, kind: input, shape index: {}]
  %s3 = inlined_call_operand.vmem [shape: bf16[56,64], index: 3, kind: output, shape index: {}]
  %s4 = sld [smem:[#allocation0]]
  $region22: #{actor_critic_forward.6} parent=0
    _
  %s6 = ssub.s32 1, %s4
  %s7 = scalar_select 0, %s6, %s4
  // Predicated region
  $region2: #{actor_critic_forward.6} parent=0 // pred_check
    _
  $region3: #{actor_critic_forward.6} parent=0 // pred_check_branch
    %9 = sbr.rel (0) target = $region5
  $region4: #{actor_critic_forward.6} parent=0 // pred_region
    _
  $region5: #{actor_critic_forward.6} parent=0 // pred_fallthru
    _
  // Predicated region
  $region6: #{actor_critic_forward.6} parent=0 // pred_check
    _
  $region7: #{actor_critic_forward.6} parent=0 // pred_check_branch
    %11 = sbr.rel (0) target = $region9
  $region8: #{actor_critic_forward.6} parent=0 // pred_region
    _
  $region9: #{actor_critic_forward.6} parent=0 // pred_fallthru
    _
  // Predicated region
  $region10: #{actor_critic_forward.6} parent=0 // pred_check
    _
  $region11: #{actor_critic_forward.6} parent=0 // pred_check_branch
    %13 = sbr.rel (0) target = $region13
  $region12: #{actor_critic_forward.6} parent=0 // pred_region
    _
  $region13: #{actor_critic_forward.6} parent=0 // pred_fallthru
    _
  %v15 = vld [vmem:[%s0] sm:$0xff]
  %v16 = vld [vmem:[%s0 + $0x8] sm:$0xff]
  %v17 = vld [vmem:[%s0 + $0x10] sm:$0xf]
  %v18 = vld [vmem:[%s0 + $0x14] sm:$0xff]
  %v19 = vld [vmem:[%s0 + $0x1c] sm:$0xff]
  %v20 = vld [vmem:[%s0 + $0x24] sm:$0xf]
  %v21 = vld [vmem:[%s0 + $0x28] sm:$0xff]
  %v22 = vld [vmem:[%s0 + $0x30] sm:$0xff]
  %v23 = vld [vmem:[%s0 + $0x38] sm:$0xf]
  %v24 = vld [vmem:[%s0 + $0x3c] sm:$0xff]
  %v25 = vld [vmem:[%s0 + $0x44] sm:$0xff]
  %v26 = vld [vmem:[%s0 + $0x4c] sm:$0xf]
  %v27 = vld [vmem:[%s0 + $0x50] sm:$0xff]
  %v28 = vld [vmem:[%s0 + $0x58] sm:$0xff]
  %v29 = vld [vmem:[%s0 + $0x60] sm:$0xf]
  %v30 = vld [vmem:[%s0 + $0x64] sm:$0xff]
  %v31 = vld [vmem:[%s0 + $0x6c] sm:$0xff]
  %v32 = vld [vmem:[%s0 + $0x74] sm:$0xf]
  %v33 = vld [vmem:[%s0 + $0x78] sm:$0xff]
  %v34 = vld [vmem:[%s0 + $0x80] sm:$0xff]
  %v35 = vld [vmem:[%s0 + $0x88] sm:$0xf]
  %v36 = vld [vmem:[%s1] sm:$0xf]
  %v37 = vld [vmem:[%s1 + $0x4] sm:$0xf]
  %v38 = vld [vmem:[%s1 + $0x8] sm:$0xf]
  %v39 = vld [vmem:[%s1 + $0xc] sm:$0xf]
  %v40 = vld [vmem:[%s1 + $0x10] sm:$0xf]
  %v41 = vld [vmem:[%s1 + $0x14] sm:$0xf]
  %v42 = vld [vmem:[%s1 + $0x18] sm:$0xf]
  %v43 = vld [vmem:[%s1 + $0x1c] sm:$0xf]
  %v44 = vld [vmem:[%s1 + $0x20] sm:$0xf]
  %v45 = vld [vmem:[%s1 + $0x24] sm:$0xf]
  %v46 = vld [vmem:[%s1 + $0x28] sm:$0xf]
  %v47 = vld [vmem:[%s1 + $0x2c] sm:$0xf]
  %v48 = vld [vmem:[%s1 + $0x30] sm:$0xf]
  %v49 = vld [vmem:[%s1 + $0x34] sm:$0xf]
  %v50 = vld [vmem:[%s1 + $0x38] sm:$0xf]
  %v51 = vld [vmem:[%s1 + $0x3c] sm:$0xf]
  %v52 = vld [vmem:[%s1 + $0x40] sm:$0xf]
  %v53 = vld [vmem:[%s1 + $0x44] sm:$0xf]
  %v54 = vld [vmem:[%s1 + $0x48] sm:$0xf]
  %v55 = vld [vmem:[%s1 + $0x4c] sm:$0xf]
  %v56 = vld [vmem:[%s1 + $0x50] sm:$0xf]
  %v57 = vld [vmem:[%s1 + $0x54] sm:$0xf]
  %v58 = vld [vmem:[%s1 + $0x58] sm:$0xf]
  %v59 = vld [vmem:[%s1 + $0x5c] sm:$0xf]
  %v60 = vld [vmem:[%s1 + $0x60] sm:$0xf]
  %v61 = vld [vmem:[%s1 + $0x64] sm:$0xf]
  %v62 = vld [vmem:[%s1 + $0x68] sm:$0xf]
  %v63 = vld [vmem:[%s1 + $0x6c] sm:$0xf]
  %v64 = vld [vmem:[%s1 + $0x70] sm:$0xf]
  %v65 = vld [vmem:[%s1 + $0x74] sm:$0xf]
  %v66 = vld [vmem:[%s1 + $0x78] sm:$0xf]
  %v67 = vld [vmem:[%s1 + $0x7c] sm:$0xf]
  %v68 = vld [vmem:[%s1 + $0x80] sm:$0xf]
  %v69 = vld [vmem:[%s1 + $0x84] sm:$0xf]
  %v70 = vld [vmem:[%s1 + $0x88] sm:$0xf]
  %v71 = vld [vmem:[%s1 + $0x8c] sm:$0xf]
  %v72 = vld [vmem:[%s1 + $0x90] sm:$0xf]
  %v73 = vld [vmem:[%s1 + $0x94] sm:$0xf]
  %v74 = vld [vmem:[%s1 + $0x98] sm:$0xf]
  %v75 = vld [vmem:[%s1 + $0x9c] sm:$0xf]
  %v76 = vld [vmem:[%s1 + $0xa0] sm:$0xf]
  %v77 = vld [vmem:[%s1 + $0xa4] sm:$0xf]
  %v78 = vld [vmem:[%s1 + $0xa8] sm:$0xf]
  %v79 = vld [vmem:[%s1 + $0xac] sm:$0xf]
  %v80 = vld [vmem:[%s1 + $0xb0] sm:$0xf]
  %v81 = vld [vmem:[%s1 + $0xb4] sm:$0xf]
  %v82 = vld [vmem:[%s1 + $0xb8] sm:$0xf]
  %v83 = vld [vmem:[%s1 + $0xbc] sm:$0xf]
  %v84 = vld [vmem:[%s1 + $0xc0] sm:$0xf]
  %v85 = vld [vmem:[%s1 + $0xc4] sm:$0xf]
  %v86 = vld [vmem:[%s1 + $0xc8] sm:$0xf]
  %v87 = vld [vmem:[%s1 + $0xcc] sm:$0xf]
  %v88 = vld [vmem:[%s1 + $0xd0] sm:$0xf]
  %v89 = vld [vmem:[%s1 + $0xd4] sm:$0xf]
  %v90 = vld [vmem:[%s1 + $0xd8] sm:$0xf]
  %v91 = vld [vmem:[%s1 + $0xdc] sm:$0xf]
  %v92 = vld [vmem:[%s1 + $0xe0] sm:$0xf]
  %v93 = vld [vmem:[%s1 + $0xe4] sm:$0xf]
  %v94 = vld [vmem:[%s1 + $0xe8] sm:$0xf]
  %v95 = vld [vmem:[%s1 + $0xec] sm:$0xf]
  %v96 = vld [vmem:[%s1 + $0xf0] sm:$0xf]
  %v97 = vld [vmem:[%s1 + $0xf4] sm:$0xf]
  %v98 = vld [vmem:[%s1 + $0xf8] sm:$0xf]
  %v99 = vld [vmem:[%s1 + $0xfc] sm:$0xf]
  %v100 = vld [vmem:[%s1 + $0x100] sm:$0xf]
  %v101 = vld [vmem:[%s1 + $0x104] sm:$0xf]
  %v102 = vld [vmem:[%s1 + $0x108] sm:$0xf]
  %v103 = vld [vmem:[%s1 + $0x10c] sm:$0xf]
  %v104 = vld [vmem:[%s1 + $0x110] sm:$0xf]
  %v105 = vld [vmem:[%s1 + $0x114] sm:$0xf]
  %v106 = vld [vmem:[%s1 + $0x118] sm:$0xf]
  %v107 = vld [vmem:[%s1 + $0x11c] sm:$0xf]
  %v108 = vld [vmem:[%s2] sm:$0x1]
  %v110 = vperm.slane %v108, 0
  %v133 = vunpack.c.l.b16 %v15
  %v134 = vunpack.c.h.b16 %v15
  %v135 = vunpack.c.l.b16 %v16
  %v136 = vunpack.c.h.b16 %v16
  %v137 = vunpack.c.l.b16 %v17
  %v138 = vunpack.c.l.b16 %v18
  %v139 = vunpack.c.h.b16 %v18
  %v140 = vunpack.c.l.b16 %v19
  %v141 = vunpack.c.h.b16 %v19
  %v142 = vunpack.c.l.b16 %v20
  %v143 = vunpack.c.l.b16 %v21
  %v144 = vunpack.c.h.b16 %v21
  %v145 = vunpack.c.l.b16 %v22
  %v146 = vunpack.c.h.b16 %v22
  %v147 = vunpack.c.l.b16 %v23
  %v148 = vunpack.c.l.b16 %v24
  %v149 = vunpack.c.h.b16 %v24
  %v150 = vunpack.c.l.b16 %v25
  %v151 = vunpack.c.h.b16 %v25
  %v152 = vunpack.c.l.b16 %v26
  %v153 = vunpack.c.l.b16 %v27
  %v154 = vunpack.c.h.b16 %v27
  %v155 = vunpack.c.l.b16 %v28
  %v156 = vunpack.c.h.b16 %v28
  %v157 = vunpack.c.l.b16 %v29
  %v158 = vunpack.c.l.b16 %v30
  %v159 = vunpack.c.h.b16 %v30
  %v160 = vunpack.c.l.b16 %v31
  %v161 = vunpack.c.h.b16 %v31
  %v162 = vunpack.c.l.b16 %v32
  %v163 = vunpack.c.l.b16 %v33
  %v164 = vunpack.c.h.b16 %v33
  %v165 = vunpack.c.l.b16 %v34
  %v166 = vunpack.c.h.b16 %v34
  %v167 = vunpack.c.l.b16 %v35
  %v168 = vpack.c.b16 %v138, %v133
  %v169 = vpack.c.b16 %v139, %v134
  %v170 = vpack.c.b16 %v140, %v135
  %v171 = vpack.c.b16 %v141, %v136
  %v172 = vpack.c.b16 %v142, %v137
  %v173 = vpack.c.b16 %v148, %v143
  %v174 = vpack.c.b16 %v149, %v144
  %v175 = vpack.c.b16 %v150, %v145
  %v176 = vpack.c.b16 %v151, %v146
  %v177 = vpack.c.b16 %v152, %v147
  %v178 = vpack.c.b16 %v158, %v153
  %v179 = vpack.c.b16 %v159, %v154
  %v180 = vpack.c.b16 %v160, %v155
  %v181 = vpack.c.b16 %v161, %v156
  %v182 = vpack.c.b16 %v162, %v157
  %v183 = vpack.c.b16 %v163, %v163
  %v184 = vpack.c.b16 %v164, %v164
  %v185 = vpack.c.b16 %v165, %v165
  %v186 = vpack.c.b16 %v166, %v166
  %v187 = vpack.c.b16 %v167, %v167
  %v276 = vunpack.c.l.b16 %v36
  %v277 = vunpack.c.l.b16 %v37
  %v278 = vunpack.c.l.b16 %v38
  %v279 = vunpack.c.l.b16 %v39
  %v280 = vunpack.c.l.b16 %v40
  %v281 = vunpack.c.l.b16 %v41
  %v282 = vunpack.c.l.b16 %v42
  %v283 = vunpack.c.l.b16 %v43
  %v284 = vunpack.c.l.b16 %v44
  %v285 = vunpack.c.l.b16 %v45
  %v286 = vunpack.c.l.b16 %v46
  %v287 = vunpack.c.l.b16 %v47
  %v288 = vunpack.c.l.b16 %v48
  %v289 = vunpack.c.l.b16 %v49
  %v290 = vunpack.c.l.b16 %v50
  %v291 = vunpack.c.l.b16 %v51
  %v292 = vunpack.c.l.b16 %v52
  %v293 = vunpack.c.l.b16 %v53
  %v294 = vunpack.c.l.b16 %v54
  %v295 = vunpack.c.l.b16 %v55
  %v296 = vunpack.c.l.b16 %v56
  %v297 = vunpack.c.l.b16 %v57
  %v298 = vunpack.c.l.b16 %v58
  %v299 = vunpack.c.l.b16 %v59
  %v300 = vunpack.c.l.b16 %v60
  %v301 = vunpack.c.l.b16 %v61
  %v302 = vunpack.c.l.b16 %v62
  %v303 = vunpack.c.l.b16 %v63
  %v304 = vunpack.c.l.b16 %v64
  %v305 = vunpack.c.l.b16 %v65
  %v306 = vunpack.c.l.b16 %v66
  %v307 = vunpack.c.l.b16 %v67
  %v308 = vunpack.c.l.b16 %v68
  %v309 = vunpack.c.l.b16 %v69
  %v310 = vunpack.c.l.b16 %v70
  %v311 = vunpack.c.l.b16 %v71
  %v312 = vunpack.c.l.b16 %v72
  %v313 = vunpack.c.l.b16 %v73
  %v314 = vunpack.c.l.b16 %v74
  %v315 = vunpack.c.l.b16 %v75
  %v316 = vunpack.c.l.b16 %v76
  %v317 = vunpack.c.l.b16 %v77
  %v318 = vunpack.c.l.b16 %v78
  %v319 = vunpack.c.l.b16 %v79
  %v320 = vunpack.c.l.b16 %v80
  %v321 = vunpack.c.l.b16 %v81
  %v322 = vunpack.c.l.b16 %v82
  %v323 = vunpack.c.l.b16 %v83
  %v324 = vunpack.c.l.b16 %v84
  %v325 = vunpack.c.l.b16 %v85
  %v326 = vunpack.c.l.b16 %v86
  %v327 = vunpack.c.l.b16 %v87
  %v328 = vunpack.c.l.b16 %v88
  %v329 = vunpack.c.l.b16 %v89
  %v330 = vunpack.c.l.b16 %v90
  %v331 = vunpack.c.l.b16 %v91
  %v332 = vunpack.c.l.b16 %v92
  %v333 = vunpack.c.l.b16 %v93
  %v334 = vunpack.c.l.b16 %v94
  %v335 = vunpack.c.l.b16 %v95
  %v336 = vunpack.c.l.b16 %v96
  %v337 = vunpack.c.l.b16 %v97
  %v338 = vunpack.c.l.b16 %v98
  %v339 = vunpack.c.l.b16 %v99
  %v340 = vunpack.c.l.b16 %v100
  %v341 = vunpack.c.l.b16 %v101
  %v342 = vunpack.c.l.b16 %v102
  %v343 = vunpack.c.l.b16 %v103
  %v344 = vunpack.c.l.b16 %v104
  %v345 = vunpack.c.l.b16 %v105
  %v346 = vunpack.c.l.b16 %v106
  %v347 = vunpack.c.l.b16 %v107
  %v348 = vpack.c.b16 %v277, %v276
  %v349 = vpack.c.b16 %v279, %v278
  %v350 = vpack.c.b16 %v281, %v280
  %v351 = vpack.c.b16 %v283, %v282
  %v352 = vpack.c.b16 %v285, %v284
  %v353 = vpack.c.b16 %v287, %v286
  %v354 = vpack.c.b16 %v289, %v288
  %v355 = vpack.c.b16 %v291, %v290
  %v356 = vpack.c.b16 %v293, %v292
  %v357 = vpack.c.b16 %v295, %v294
  %v358 = vpack.c.b16 %v297, %v296
  %v359 = vpack.c.b16 %v299, %v298
  %v360 = vpack.c.b16 %v301, %v300
  %v361 = vpack.c.b16 %v303, %v302
  %v362 = vpack.c.b16 %v305, %v304
  %v363 = vpack.c.b16 %v307, %v306
  %v364 = vpack.c.b16 %v309, %v308
  %v365 = vpack.c.b16 %v311, %v310
  %v366 = vpack.c.b16 %v313, %v312
  %v367 = vpack.c.b16 %v315, %v314
  %v368 = vpack.c.b16 %v317, %v316
  %v369 = vpack.c.b16 %v319, %v318
  %v370 = vpack.c.b16 %v321, %v320
  %v371 = vpack.c.b16 %v323, %v322
  %v372 = vpack.c.b16 %v325, %v324
  %v373 = vpack.c.b16 %v327, %v326
  %v374 = vpack.c.b16 %v329, %v328
  %v375 = vpack.c.b16 %v331, %v330
  %v376 = vpack.c.b16 %v333, %v332
  %v377 = vpack.c.b16 %v335, %v334
  %v378 = vpack.c.b16 %v337, %v336
  %v379 = vpack.c.b16 %v339, %v338
  %v380 = vpack.c.b16 %v341, %v340
  %v381 = vpack.c.b16 %v343, %v342
  %v382 = vpack.c.b16 %v345, %v344
  %v383 = vpack.c.b16 %v347, %v346
  %vm420 = vcmask 523264
  %v422 = vsel %vm420, %v172, 0
  %v425 = vsel %vm420, %v177, 0
  %v428 = vsel %vm420, %v182, 0
  %v431 = vsel %vm420, %v187, 0
  %433 = vmatpush.bf16.msra.mxu0 %v355
  %434 = vmatpush.bf16.msra.mxu0 %v354
  %435 = vmatpush.bf16.msra.mxu0 %v353
  %436 = vmatpush.bf16.msra.mxu0 %v352
  %437 = vmatpush.bf16.msra.mxu0 %v351
  %438 = vmatpush.bf16.msra.mxu0 %v350
  %439 = vmatpush.bf16.msra.mxu0 %v349
  %440 = vmatpush.bf16.msra.mxu0 %v348
  %441 = vmatmul.bf16.gmra.mxu0 %v168
  %v442 = vpop.f32.mrf.mxu0
  %v443 = vadd.f32 %v110, %v442
  %v444 = vpop.f32.mrf.mxu0
  %v445 = vadd.f32 %v110, %v444
  %446 = vmatmul.bf16.gmra.mxu0 %v173
  %v447 = vpop.f32.mrf.mxu0
  %v448 = vadd.f32 %v110, %v447
  %v449 = vpop.f32.mrf.mxu0
  %v450 = vadd.f32 %v110, %v449
  %451 = vmatmul.bf16.gmra.mxu0 %v178
  %v452 = vpop.f32.mrf.mxu0
  %v453 = vadd.f32 %v110, %v452
  %v454 = vpop.f32.mrf.mxu0
  %v455 = vadd.f32 %v110, %v454
  %456 = vmatmul.bf16.gmra.mxu0 %v183
  %v457 = vpop.f32.mrf.mxu0
  %v458 = vadd.f32 %v110, %v457
  %v459 = vpop.f32.mrf.mxu0
  %460 = vdwg.mxu0
  %461 = vmatpush.bf16.msra.mxu0 %v363
  %462 = vmatpush.bf16.msra.mxu0 %v362
  %463 = vmatpush.bf16.msra.mxu0 %v361
  %464 = vmatpush.bf16.msra.mxu0 %v360
  %465 = vmatpush.bf16.msra.mxu0 %v359
  %466 = vmatpush.bf16.msra.mxu0 %v358
  %467 = vmatpush.bf16.msra.mxu0 %v357
  %468 = vmatpush.bf16.msra.mxu0 %v356
  %469 = vmatmul.bf16.gmra.mxu0 %v169
  %v470 = vpop.f32.mrf.mxu0
  %v471 = vadd.f32 %v443, %v470
  %v472 = vpop.f32.mrf.mxu0
  %v473 = vadd.f32 %v445, %v472
  %474 = vmatmul.bf16.gmra.mxu0 %v174
  %v475 = vpop.f32.mrf.mxu0
  %v476 = vadd.f32 %v448, %v475
  %v477 = vpop.f32.mrf.mxu0
  %v478 = vadd.f32 %v450, %v477
  %479 = vmatmul.bf16.gmra.mxu0 %v179
  %v480 = vpop.f32.mrf.mxu0
  %v481 = vadd.f32 %v453, %v480
  %v482 = vpop.f32.mrf.mxu0
  %v483 = vadd.f32 %v455, %v482
  %484 = vmatmul.bf16.gmra.mxu0 %v184
  %v485 = vpop.f32.mrf.mxu0
  %v486 = vadd.f32 %v458, %v485
  %v487 = vpop.f32.mrf.mxu0
  %488 = vdwg.mxu0
  %489 = vmatpush.bf16.msra.mxu0 %v371
  %490 = vmatpush.bf16.msra.mxu0 %v370
  %491 = vmatpush.bf16.msra.mxu0 %v369
  %492 = vmatpush.bf16.msra.mxu0 %v368
  %493 = vmatpush.bf16.msra.mxu0 %v367
  %494 = vmatpush.bf16.msra.mxu0 %v366
  %495 = vmatpush.bf16.msra.mxu0 %v365
  %496 = vmatpush.bf16.msra.mxu0 %v364
  %497 = vmatmul.bf16.gmra.mxu0 %v170
  %v498 = vpop.f32.mrf.mxu0
  %v499 = vadd.f32 %v471, %v498
  %v500 = vpop.f32.mrf.mxu0
  %v501 = vadd.f32 %v473, %v500
  %502 = vmatmul.bf16.gmra.mxu0 %v175
  %v503 = vpop.f32.mrf.mxu0
  %v504 = vadd.f32 %v476, %v503
  %v505 = vpop.f32.mrf.mxu0
  %v506 = vadd.f32 %v478, %v505
  %507 = vmatmul.bf16.gmra.mxu0 %v180
  %v508 = vpop.f32.mrf.mxu0
  %v509 = vadd.f32 %v481, %v508
  %v510 = vpop.f32.mrf.mxu0
  %v511 = vadd.f32 %v483, %v510
  %512 = vmatmul.bf16.gmra.mxu0 %v185
  %v513 = vpop.f32.mrf.mxu0
  %v514 = vadd.f32 %v486, %v513
  %v515 = vpop.f32.mrf.mxu0
  %516 = vdwg.mxu0
  %517 = vmatpush.bf16.msra.mxu0 %v379
  %518 = vmatpush.bf16.msra.mxu0 %v378
  %519 = vmatpush.bf16.msra.mxu0 %v377
  %520 = vmatpush.bf16.msra.mxu0 %v376
  %521 = vmatpush.bf16.msra.mxu0 %v375
  %522 = vmatpush.bf16.msra.mxu0 %v374
  %523 = vmatpush.bf16.msra.mxu0 %v373
  %524 = vmatpush.bf16.msra.mxu0 %v372
  %525 = vmatmul.bf16.gmra.mxu0 %v171
  %v526 = vpop.f32.mrf.mxu0
  %v527 = vadd.f32 %v499, %v526
  %v528 = vpop.f32.mrf.mxu0
  %v529 = vadd.f32 %v501, %v528
  %530 = vmatmul.bf16.gmra.mxu0 %v176
  %v531 = vpop.f32.mrf.mxu0
  %v532 = vadd.f32 %v504, %v531
  %v533 = vpop.f32.mrf.mxu0
  %v534 = vadd.f32 %v506, %v533
  %535 = vmatmul.bf16.gmra.mxu0 %v181
  %v536 = vpop.f32.mrf.mxu0
  %v537 = vadd.f32 %v509, %v536
  %v538 = vpop.f32.mrf.mxu0
  %v539 = vadd.f32 %v511, %v538
  %540 = vmatmul.bf16.gmra.mxu0 %v186
  %v541 = vpop.f32.mrf.mxu0
  %v542 = vadd.f32 %v514, %v541
  %v543 = vpop.f32.mrf.mxu0
  %544 = vdwg.mxu0
  %545 = vmatpush.bf16.msra.mxu0 0
  %546 = vmatpush.bf16.msra.mxu0 0
  %547 = vmatpush.bf16.msra.mxu0 0
  %548 = vmatpush.bf16.msra.mxu0 0
  %549 = vmatpush.bf16.msra.mxu0 %v383
  %550 = vmatpush.bf16.msra.mxu0 %v382
  %551 = vmatpush.bf16.msra.mxu0 %v381
  %552 = vmatpush.bf16.msra.mxu0 %v380
  %553 = vmatmul.bf16.gmra.mxu0 %v422
  %v554 = vpop.f32.mrf.mxu0
  %v555 = vadd.f32 %v527, %v554
  %v556 = vpop.f32.mrf.mxu0
  %v557 = vadd.f32 %v529, %v556
  %558 = vmatmul.bf16.gmra.mxu0 %v425
  %v559 = vpop.f32.mrf.mxu0
  %v560 = vadd.f32 %v532, %v559
  %v561 = vpop.f32.mrf.mxu0
  %v562 = vadd.f32 %v534, %v561
  %563 = vmatmul.bf16.gmra.mxu0 %v428
  %v564 = vpop.f32.mrf.mxu0
  %v565 = vadd.f32 %v537, %v564
  %v566 = vpop.f32.mrf.mxu0
  %v567 = vadd.f32 %v539, %v566
  %568 = vmatmul.bf16.gmra.mxu0 %v431
  %v569 = vpop.f32.mrf.mxu0
  %v570 = vadd.f32 %v542, %v569
  %v571 = vpop.f32.mrf.mxu0
  %572 = vdwg.mxu0
  %v573 = vmax.f32 %v555, 0.0
  %v574 = vmax.f32 %v557, 0.0
  %v575 = vmax.f32 %v560, 0.0
  %v576 = vmax.f32 %v562, 0.0
  %v577 = vmax.f32 %v565, 0.0
  %v578 = vmax.f32 %v567, 0.0
  %v579 = vmax.f32 %v570, 0.0
  %v580 = vpack.c.bf16 %v573, %v573
  %v581 = vpack.c.bf16 %v574, %v574
  %v582 = vpack.c.bf16 %v575, %v575
  %v583 = vpack.c.bf16 %v576, %v576
  %v584 = vpack.c.bf16 %v577, %v577
  %v585 = vpack.c.bf16 %v578, %v578
  %v586 = vpack.c.bf16 %v579, %v579
  %vm587 = vcmask 519168
  %588 = vst.msk [vmem:[%s3] sm:$0xf] %vm587, %v580
  %589 = vst.msk [vmem:[%s3 + $0x4] sm:$0xf] %vm587, %v581
  %590 = vst.msk [vmem:[%s3 + $0x8] sm:$0xf] %vm587, %v582
  %591 = vst.msk [vmem:[%s3 + $0xc] sm:$0xf] %vm587, %v583
  %592 = vst.msk [vmem:[%s3 + $0x10] sm:$0xf] %vm587, %v584
  %593 = vst.msk [vmem:[%s3 + $0x14] sm:$0xf] %vm587, %v585
  %594 = vst.msk [vmem:[%s3 + $0x18] sm:$0xf] %vm587, %v586
  // Predicated region
  $region14: #{actor_critic_forward.6} parent=0 // pred_check
    _
  $region15: #{actor_critic_forward.6} parent=0 // pred_check_branch
    %596 = sbr.rel (0) target = $region17
  $region16: #{actor_critic_forward.6} parent=0 // pred_region
    _
  $region17: #{actor_critic_forward.6} parent=0 // pred_fallthru
    _
  // Predicated region
  $region18: #{actor_critic_forward.6} parent=0 // pred_check
    _
  $region19: #{actor_critic_forward.6} parent=0 // pred_check_branch
    %598 = sbr.rel (0) target = $region21
  $region20: #{actor_critic_forward.6} parent=0 // pred_region
    _
  $region21: #{actor_critic_forward.6} parent=0 // pred_fallthru
    _

// kernel: actor_critic_forward.7
$region0: #{actor_critic_forward.7}
  #allocation0 [shape = 'u32[]', space=smem, size = 0x4, offset = 0x4, fixed_abs, tag = 'smem constant byte address 0x4 - core index']
  #allocation1 [shape = 'u32[72,128]{1,0:T(1,128)}', space=vmem, size = 0x9000, scoped, tag = 'internal scratch']
  #allocation2 [shape = 'f32[1,1]{1,0:T(1,128)S(1)}', space=vmem, size = 0x200, scoped, tag = 'scoped memory for actor_critic_forward.7']
  %s0 = inlined_call_operand.vmem [shape: bf16[2,1792], index: 0, kind: input, shape index: {}]
  %s1 = inlined_call_operand.vmem [shape: bf16[1792,512], index: 1, kind: input, shape index: {}]
  %s2 = inlined_call_operand.vmem [shape: f32[1,512], index: 2, kind: input, shape index: {}]
  %s3 = inlined_call_operand.vmem [shape: bf16[256,3], index: 3, kind: input, shape index: {}]
  %s4 = inlined_call_operand.vmem [shape: f32[1,3], index: 4, kind: input, shape index: {}]
  %s5 = inlined_call_operand.vmem [shape: bf16[256,1], index: 5, kind: input, shape index: {}]
  %s6 = inlined_call_operand.<no memory space> [shape: f32[1,1], index: 6, kind: input, shape index: {}]
  %s7 = inlined_call_operand.hbm [shape: f32[2,3], index: 7, kind: output, shape index: {0}]
  %s8 = inlined_call_operand.vmem [shape: f32[2,1], index: 8, kind: output, shape index: {1}]
  %9 = xla_tuple %s7, %s8
  %s10 = sld [smem:[#allocation0]]
  $region46: #{actor_critic_forward.7} parent=0
    _
  %s12 = ssub.s32 1, %s10
  %s13 = scalar_select 0, %s12, %s10
  %v14 = vstv %s6
  %15 = vst [vmem:[#allocation2] sm:$0x1] %v14
  $region1: #{actor_critic_forward.7} parent=0
    #allocation3 [shape = 'u8[1024]{0}', space=vmem, size = 0x400, scoped, tag = 'output window, operand 0, single buffered']
    #allocation4 [shape = 's32[1]{0}', space=sflag, size = 0x4, scoped, tag = 'scoped memory for actor_critic_forward.7']
    %16 = vsyncpa [#allocation4], 0
    // Predicated region
    $region2: #{actor_critic_forward.7} parent=1 // pred_check
      _
    $region3: #{actor_critic_forward.7} parent=1 // pred_check_branch
      %18 = sbr.rel (0) target = $region5
    $region4: #{actor_critic_forward.7} parent=1 // pred_region
      _
    $region5: #{actor_critic_forward.7} parent=1 // pred_fallthru
      _
    // Predicated region
    $region6: #{actor_critic_forward.7} parent=1 // pred_check
      _
    $region7: #{actor_critic_forward.7} parent=1 // pred_check_branch
      %20 = sbr.rel (0) target = $region9
    $region8: #{actor_critic_forward.7} parent=1 // pred_region
      _
    $region9: #{actor_critic_forward.7} parent=1 // pred_fallthru
      _
    // Predicated region
    $region10: #{actor_critic_forward.7} parent=1 // pred_check
      _
    $region11: #{actor_critic_forward.7} parent=1 // pred_check_branch
      %22 = sbr.rel (0) target = $region13
    $region12: #{actor_critic_forward.7} parent=1 // pred_region
      _
    $region13: #{actor_critic_forward.7} parent=1 // pred_fallthru
      _
    // Predicated region
    $region14: #{actor_critic_forward.7} parent=1 // pred_check
      _
    $region15: #{actor_critic_forward.7} parent=1 // pred_check_branch
      %24 = sbr.rel (0) target = $region17
    $region16: #{actor_critic_forward.7} parent=1 // pred_region
      _
    $region17: #{actor_critic_forward.7} parent=1 // pred_fallthru
      _
    // Predicated region
    $region18: #{actor_critic_forward.7} parent=1 // pred_check
      _
    $region19: #{actor_critic_forward.7} parent=1 // pred_check_branch
      %26 = sbr.rel (0) target = $region21
    $region20: #{actor_critic_forward.7} parent=1 // pred_region
      _
    $region21: #{actor_critic_forward.7} parent=1 // pred_fallthru
      _
    // Predicated region
    $region22: #{actor_critic_forward.7} parent=1 // pred_check
      _
    $region23: #{actor_critic_forward.7} parent=1 // pred_check_branch
      %28 = sbr.rel (0) target = $region25
    $region24: #{actor_critic_forward.7} parent=1 // pred_region
      _
    $region25: #{actor_critic_forward.7} parent=1 // pred_fallthru
      _
    // Predicated region
    $region26: #{actor_critic_forward.7} parent=1 // pred_check
      _
    $region27: #{actor_critic_forward.7} parent=1 // pred_check_branch
      %30 = sbr.rel (0) target = $region29
    $region28: #{actor_critic_forward.7} parent=1 // pred_region
      _
    $region29: #{actor_critic_forward.7} parent=1 // pred_fallthru
      _
    %v31 = vld [vmem:[%s0] sm:$0xff]
    %v32 = vld [vmem:[%s0 + $0x8] sm:$0x3f]
    %v33 = vld [vmem:[%s1] sm:$0xff]
    %v34 = vld [vmem:[%s1 + $0x8] sm:$0xff]
    %v35 = vld [vmem:[%s1 + $0x10] sm:$0xff]
    %v36 = vld [vmem:[%s1 + $0x18] sm:$0xff]
    %v37 = vld [vmem:[%s1 + $0x20] sm:$0xff]
    %v38 = vld [vmem:[%s1 + $0x28] sm:$0xff]
    %v39 = vld [vmem:[%s1 + $0x30] sm:$0xff]
    %v40 = vld [vmem:[%s1 + $0x38] sm:$0xff]
    %v41 = vld [vmem:[%s1 + $0x40] sm:$0xff]
    %v42 = vld [vmem:[%s1 + $0x48] sm:$0xff]
    %v43 = vld [vmem:[%s1 + $0x50] sm:$0xff]
    %v44 = vld [vmem:[%s1 + $0x58] sm:$0xff]
    %v45 = vld [vmem:[%s1 + $0x60] sm:$0xff]
    %v46 = vld [vmem:[%s1 + $0x68] sm:$0xff]
    %v47 = vld [vmem:[%s1 + $0x70] sm:$0xff]
    %v48 = vld [vmem:[%s1 + $0x78] sm:$0xff]
    %v49 = vld [vmem:[%s1 + $0x80] sm:$0xff]
    %v50 = vld [vmem:[%s1 + $0x88] sm:$0xff]
    %v51 = vld [vmem:[%s1 + $0x90] sm:$0xff]
    %v52 = vld [vmem:[%s1 + $0x98] sm:$0xff]
    %v53 = vld [vmem:[%s1 + $0xa0] sm:$0xff]
    %v54 = vld [vmem:[%s1 + $0xa8] sm:$0xff]
    %v55 = vld [vmem:[%s1 + $0xb0] sm:$0xff]
    %v56 = vld [vmem:[%s1 + $0xb8] sm:$0xff]
    %v57 = vld [vmem:[%s1 + $0xc0] sm:$0xff]
    %v58 = vld [vmem:[%s1 + $0xc8] sm:$0xff]
    %v59 = vld [vmem:[%s1 + $0xd0] sm:$0xff]
    %v60 = vld [vmem:[%s1 + $0xd8] sm:$0xff]
    %v61 = vld [vmem:[%s1 + $0xe0] sm:$0xff]
    %v62 = vld [vmem:[%s1 + $0xe8] sm:$0xff]
    %v63 = vld [vmem:[%s1 + $0xf0] sm:$0xff]
    %v64 = vld [vmem:[%s1 + $0xf8] sm:$0xff]
    %v65 = vld [vmem:[%s1 + $0x100] sm:$0xff]
    %v66 = vld [vmem:[%s1 + $0x108] sm:$0xff]
    %v67 = vld [vmem:[%s1 + $0x110] sm:$0xff]
    %v68 = vld [vmem:[%s1 + $0x118] sm:$0xff]
    %v69 = vld [vmem:[%s1 + $0x120] sm:$0xff]
    %v70 = vld [vmem:[%s1 + $0x128] sm:$0xff]
    %v71 = vld [vmem:[%s1 + $0x130] sm:$0xff]
    %v72 = vld [vmem:[%s1 + $0x138] sm:$0xff]
    %v73 = vld [vmem:[%s1 + $0x140] sm:$0xff]
    %v74 = vld [vmem:[%s1 + $0x148] sm:$0xff]
    %v75 = vld [vmem:[%s1 + $0x150] sm:$0xff]
    %v76 = vld [vmem:[%s1 + $0x158] sm:$0xff]
    %v77 = vld [vmem:[%s1 + $0x160] sm:$0xff]
    %v78 = vld [vmem:[%s1 + $0x168] sm:$0xff]
    %v79 = vld [vmem:[%s1 + $0x170] sm:$0xff]
    %v80 = vld [vmem:[%s1 + $0x178] sm:$0xff]
    %v81 = vld [vmem:[%s1 + $0x180] sm:$0xff]
    %v82 = vld [vmem:[%s1 + $0x188] sm:$0xff]
    %v83 = vld [vmem:[%s1 + $0x190] sm:$0xff]
    %v84 = vld [vmem:[%s1 + $0x198] sm:$0xff]
    %v85 = vld [vmem:[%s1 + $0x1a0] sm:$0xff]
    %v86 = vld [vmem:[%s1 + $0x1a8] sm:$0xff]
    %v87 = vld [vmem:[%s1 + $0x1b0] sm:$0xff]
    %v88 = vld [vmem:[%s1 + $0x1b8] sm:$0xff]
    %v89 = vld [vmem:[%s1 + $0x1c0] sm:$0xff]
    %v90 = vld [vmem:[%s1 + $0x1c8] sm:$0xff]
    %v91 = vld [vmem:[%s1 + $0x1d0] sm:$0xff]
    %v92 = vld [vmem:[%s1 + $0x1d8] sm:$0xff]
    %v93 = vld [vmem:[%s1 + $0x1e0] sm:$0xff]
    %v94 = vld [vmem:[%s1 + $0x1e8] sm:$0xff]
    %v95 = vld [vmem:[%s1 + $0x1f0] sm:$0xff]
    %v96 = vld [vmem:[%s1 + $0x1f8] sm:$0xff]
    %v97 = vld [vmem:[%s1 + $0x200] sm:$0xff]
    %v98 = vld [vmem:[%s1 + $0x208] sm:$0xff]
    %v99 = vld [vmem:[%s1 + $0x210] sm:$0xff]
    %v100 = vld [vmem:[%s1 + $0x218] sm:$0xff]
    %v101 = vld [vmem:[%s1 + $0x220] sm:$0xff]
    %v102 = vld [vmem:[%s1 + $0x228] sm:$0xff]
    %v103 = vld [vmem:[%s1 + $0x230] sm:$0xff]
    %v104 = vld [vmem:[%s1 + $0x238] sm:$0xff]
    %v105 = vld [vmem:[%s1 + $0x240] sm:$0xff]
    %v106 = vld [vmem:[%s1 + $0x248] sm:$0xff]
    %v107 = vld [vmem:[%s1 + $0x250] sm:$0xff]
    %v108 = vld [vmem:[%s1 + $0x258] sm:$0xff]
    %v109 = vld [vmem:[%s1 + $0x260] sm:$0xff]
    %v110 = vld [vmem:[%s1 + $0x268] sm:$0xff]
    %v111 = vld [vmem:[%s1 + $0x270] sm:$0xff]
    %v112 = vld [vmem:[%s1 + $0x278] sm:$0xff]
    %v113 = vld [vmem:[%s1 + $0x280] sm:$0xff]
    %v114 = vld [vmem:[%s1 + $0x288] sm:$0xff]
    %v115 = vld [vmem:[%s1 + $0x290] sm:$0xff]
    %v116 = vld [vmem:[%s1 + $0x298] sm:$0xff]
    %v117 = vld [vmem:[%s1 + $0x2a0] sm:$0xff]
    %v118 = vld [vmem:[%s1 + $0x2a8] sm:$0xff]
    %v119 = vld [vmem:[%s1 + $0x2b0] sm:$0xff]
    %v120 = vld [vmem:[%s1 + $0x2b8] sm:$0xff]
    %v121 = vld [vmem:[%s1 + $0x2c0] sm:$0xff]
    %v122 = vld [vmem:[%s1 + $0x2c8] sm:$0xff]
    %v123 = vld [vmem:[%s1 + $0x2d0] sm:$0xff]
    %v124 = vld [vmem:[%s1 + $0x2d8] sm:$0xff]
    %v125 = vld [vmem:[%s1 + $0x2e0] sm:$0xff]
    %v126 = vld [vmem:[%s1 + $0x2e8] sm:$0xff]
    %v127 = vld [vmem:[%s1 + $0x2f0] sm:$0xff]
    %v128 = vld [vmem:[%s1 + $0x2f8] sm:$0xff]
    %v129 = vld [vmem:[%s1 + $0x300] sm:$0xff]
    %v130 = vld [vmem:[%s1 + $0x308] sm:$0xff]
    %v131 = vld [vmem:[%s1 + $0x310] sm:$0xff]
    %v132 = vld [vmem:[%s1 + $0x318] sm:$0xff]
    %v133 = vld [vmem:[%s1 + $0x320] sm:$0xff]
    %v134 = vld [vmem:[%s1 + $0x328] sm:$0xff]
    %v135 = vld [vmem:[%s1 + $0x330] sm:$0xff]
    %v136 = vld [vmem:[%s1 + $0x338] sm:$0xff]
    %v137 = vld [vmem:[%s1 + $0x340] sm:$0xff]
    %v138 = vld [vmem:[%s1 + $0x348] sm:$0xff]
    %v139 = vld [vmem:[%s1 + $0x350] sm:$0xff]
    %v140 = vld [vmem:[%s1 + $0x358] sm:$0xff]
    %v141 = vld [vmem:[%s1 + $0x360] sm:$0xff]
    %v142 = vld [vmem:[%s1 + $0x368] sm:$0xff]
    %v143 = vld [vmem:[%s1 + $0x370] sm:$0xff]
    %v144 = vld [vmem:[%s1 + $0x378] sm:$0xff]
    %v145 = vld [vmem:[%s1 + $0x380] sm:$0xff]
    %v146 = vld [vmem:[%s1 + $0x388] sm:$0xff]
    %v147 = vld [vmem:[%s1 + $0x390] sm:$0xff]
    %v148 = vld [vmem:[%s1 + $0x398] sm:$0xff]
    %v149 = vld [vmem:[%s1 + $0x3a0] sm:$0xff]
    %v150 = vld [vmem:[%s1 + $0x3a8] sm:$0xff]
    %v151 = vld [vmem:[%s1 + $0x3b0] sm:$0xff]
    %v152 = vld [vmem:[%s1 + $0x3b8] sm:$0xff]
    %v153 = vld [vmem:[%s1 + $0x3c0] sm:$0xff]
    %v154 = vld [vmem:[%s1 + $0x3c8] sm:$0xff]
    %v155 = vld [vmem:[%s1 + $0x3d0] sm:$0xff]
    %v156 = vld [vmem:[%s1 + $0x3d8] sm:$0xff]
    %v157 = vld [vmem:[%s1 + $0x3e0] sm:$0xff]
    %v158 = vld [vmem:[%s1 + $0x3e8] sm:$0xff]
    %v159 = vld [vmem:[%s1 + $0x3f0] sm:$0xff]
    %v160 = vld [vmem:[%s1 + $0x3f8] sm:$0xff]
    %v161 = vld [vmem:[%s1 + $0x400] sm:$0xff]
    %v162 = vld [vmem:[%s1 + $0x408] sm:$0xff]
    %v163 = vld [vmem:[%s1 + $0x410] sm:$0xff]
    %v164 = vld [vmem:[%s1 + $0x418] sm:$0xff]
    %v165 = vld [vmem:[%s1 + $0x420] sm:$0xff]
    %v166 = vld [vmem:[%s1 + $0x428] sm:$0xff]
    %v167 = vld [vmem:[%s1 + $0x430] sm:$0xff]
    %v168 = vld [vmem:[%s1 + $0x438] sm:$0xff]
    %v169 = vld [vmem:[%s1 + $0x440] sm:$0xff]
    %v170 = vld [vmem:[%s1 + $0x448] sm:$0xff]
    %v171 = vld [vmem:[%s1 + $0x450] sm:$0xff]
    %v172 = vld [vmem:[%s1 + $0x458] sm:$0xff]
    %v173 = vld [vmem:[%s1 + $0x460] sm:$0xff]
    %v174 = vld [vmem:[%s1 + $0x468] sm:$0xff]
    %v175 = vld [vmem:[%s1 + $0x470] sm:$0xff]
    %v176 = vld [vmem:[%s1 + $0x478] sm:$0xff]
    %v177 = vld [vmem:[%s1 + $0x480] sm:$0xff]
    %v178 = vld [vmem:[%s1 + $0x488] sm:$0xff]
    %v179 = vld [vmem:[%s1 + $0x490] sm:$0xff]
    %v180 = vld [vmem:[%s1 + $0x498] sm:$0xff]
    %v181 = vld [vmem:[%s1 + $0x4a0] sm:$0xff]
    %v182 = vld [vmem:[%s1 + $0x4a8] sm:$0xff]
    %v183 = vld [vmem:[%s1 + $0x4b0] sm:$0xff]
    %v184 = vld [vmem:[%s1 + $0x4b8] sm:$0xff]
    %v185 = vld [vmem:[%s1 + $0x4c0] sm:$0xff]
    %v186 = vld [vmem:[%s1 + $0x4c8] sm:$0xff]
    %v187 = vld [vmem:[%s1 + $0x4d0] sm:$0xff]
    %v188 = vld [vmem:[%s1 + $0x4d8] sm:$0xff]
    %v189 = vld [vmem:[%s1 + $0x4e0] sm:$0xff]
    %v190 = vld [vmem:[%s1 + $0x4e8] sm:$0xff]
    %v191 = vld [vmem:[%s1 + $0x4f0] sm:$0xff]
    %v192 = vld [vmem:[%s1 + $0x4f8] sm:$0xff]
    %v193 = vld [vmem:[%s1 + $0x500] sm:$0xff]
    %v194 = vld [vmem:[%s1 + $0x508] sm:$0xff]
    %v195 = vld [vmem:[%s1 + $0x510] sm:$0xff]
    %v196 = vld [vmem:[%s1 + $0x518] sm:$0xff]
    %v197 = vld [vmem:[%s1 + $0x520] sm:$0xff]
    %v198 = vld [vmem:[%s1 + $0x528] sm:$0xff]
    %v199 = vld [vmem:[%s1 + $0x530] sm:$0xff]
    %v200 = vld [vmem:[%s1 + $0x538] sm:$0xff]
    %v201 = vld [vmem:[%s1 + $0x540] sm:$0xff]
    %v202 = vld [vmem:[%s1 + $0x548] sm:$0xff]
    %v203 = vld [vmem:[%s1 + $0x550] sm:$0xff]
    %v204 = vld [vmem:[%s1 + $0x558] sm:$0xff]
    %v205 = vld [vmem:[%s1 + $0x560] sm:$0xff]
    %v206 = vld [vmem:[%s1 + $0x568] sm:$0xff]
    %v207 = vld [vmem:[%s1 + $0x570] sm:$0xff]
    %v208 = vld [vmem:[%s1 + $0x578] sm:$0xff]
    %v209 = vld [vmem:[%s1 + $0x580] sm:$0xff]
    %v210 = vld [vmem:[%s1 + $0x588] sm:$0xff]
    %v211 = vld [vmem:[%s1 + $0x590] sm:$0xff]
    %v212 = vld [vmem:[%s1 + $0x598] sm:$0xff]
    %v213 = vld [vmem:[%s1 + $0x5a0] sm:$0xff]
    %v214 = vld [vmem:[%s1 + $0x5a8] sm:$0xff]
    %v215 = vld [vmem:[%s1 + $0x5b0] sm:$0xff]
    %v216 = vld [vmem:[%s1 + $0x5b8] sm:$0xff]
    %v217 = vld [vmem:[%s1 + $0x5c0] sm:$0xff]
    %v218 = vld [vmem:[%s1 + $0x5c8] sm:$0xff]
    %v219 = vld [vmem:[%s1 + $0x5d0] sm:$0xff]
    %v220 = vld [vmem:[%s1 + $0x5d8] sm:$0xff]
    %v221 = vld [vmem:[%s1 + $0x5e0] sm:$0xff]
    %v222 = vld [vmem:[%s1 + $0x5e8] sm:$0xff]
    %v223 = vld [vmem:[%s1 + $0x5f0] sm:$0xff]
    %v224 = vld [vmem:[%s1 + $0x5f8] sm:$0xff]
    %v225 = vld [vmem:[%s1 + $0x600] sm:$0xff]
    %v226 = vld [vmem:[%s1 + $0x608] sm:$0xff]
    %v227 = vld [vmem:[%s1 + $0x610] sm:$0xff]
    %v228 = vld [vmem:[%s1 + $0x618] sm:$0xff]
    %v229 = vld [vmem:[%s1 + $0x620] sm:$0xff]
    %v230 = vld [vmem:[%s1 + $0x628] sm:$0xff]
    %v231 = vld [vmem:[%s1 + $0x630] sm:$0xff]
    %v232 = vld [vmem:[%s1 + $0x638] sm:$0xff]
    %v233 = vld [vmem:[%s1 + $0x640] sm:$0xff]
    %v234 = vld [vmem:[%s1 + $0x648] sm:$0xff]
    %v235 = vld [vmem:[%s1 + $0x650] sm:$0xff]
    %v236 = vld [vmem:[%s1 + $0x658] sm:$0xff]
    %v237 = vld [vmem:[%s1 + $0x660] sm:$0xff]
    %v238 = vld [vmem:[%s1 + $0x668] sm:$0xff]
    %v239 = vld [vmem:[%s1 + $0x670] sm:$0xff]
    %v240 = vld [vmem:[%s1 + $0x678] sm:$0xff]
    %v241 = vld [vmem:[%s1 + $0x680] sm:$0xff]
    %v242 = vld [vmem:[%s1 + $0x688] sm:$0xff]
    %v243 = vld [vmem:[%s1 + $0x690] sm:$0xff]
    %v244 = vld [vmem:[%s1 + $0x698] sm:$0xff]
    %v245 = vld [vmem:[%s1 + $0x6a0] sm:$0xff]
    %v246 = vld [vmem:[%s1 + $0x6a8] sm:$0xff]
    %v247 = vld [vmem:[%s1 + $0x6b0] sm:$0xff]
    %v248 = vld [vmem:[%s1 + $0x6b8] sm:$0xff]
    %v249 = vld [vmem:[%s1 + $0x6c0] sm:$0xff]
    %v250 = vld [vmem:[%s1 + $0x6c8] sm:$0xff]
    %v251 = vld [vmem:[%s1 + $0x6d0] sm:$0xff]
    %v252 = vld [vmem:[%s1 + $0x6d8] sm:$0xff]
    %v253 = vld [vmem:[%s1 + $0x6e0] sm:$0xff]
    %v254 = vld [vmem:[%s1 + $0x6e8] sm:$0xff]
    %v255 = vld [vmem:[%s1 + $0x6f0] sm:$0xff]
    %v256 = vld [vmem:[%s1 + $0x6f8] sm:$0xff]
    %v257 = vld [vmem:[%s1 + $0x700] sm:$0xff]
    %v258 = vld [vmem:[%s1 + $0x708] sm:$0xff]
    %v259 = vld [vmem:[%s1 + $0x710] sm:$0xff]
    %v260 = vld [vmem:[%s1 + $0x718] sm:$0xff]
    %v261 = vld [vmem:[%s1 + $0x720] sm:$0xff]
    %v262 = vld [vmem:[%s1 + $0x728] sm:$0xff]
    %v263 = vld [vmem:[%s1 + $0x730] sm:$0xff]
    %v264 = vld [vmem:[%s1 + $0x738] sm:$0xff]
    %v265 = vld [vmem:[%s1 + $0x740] sm:$0xff]
    %v266 = vld [vmem:[%s1 + $0x748] sm:$0xff]
    %v267 = vld [vmem:[%s1 + $0x750] sm:$0xff]
    %v268 = vld [vmem:[%s1 + $0x758] sm:$0xff]
    %v269 = vld [vmem:[%s1 + $0x760] sm:$0xff]
    %v270 = vld [vmem:[%s1 + $0x768] sm:$0xff]
    %v271 = vld [vmem:[%s1 + $0x770] sm:$0xff]
    %v272 = vld [vmem:[%s1 + $0x778] sm:$0xff]
    %v273 = vld [vmem:[%s1 + $0x780] sm:$0xff]
    %v274 = vld [vmem:[%s1 + $0x788] sm:$0xff]
    %v275 = vld [vmem:[%s1 + $0x790] sm:$0xff]
    %v276 = vld [vmem:[%s1 + $0x798] sm:$0xff]
    %v277 = vld [vmem:[%s1 + $0x7a0] sm:$0xff]
    %v278 = vld [vmem:[%s1 + $0x7a8] sm:$0xff]
    %v279 = vld [vmem:[%s1 + $0x7b0] sm:$0xff]
    %v280 = vld [vmem:[%s1 + $0x7b8] sm:$0xff]
    %v281 = vld [vmem:[%s1 + $0x7c0] sm:$0xff]
    %v282 = vld [vmem:[%s1 + $0x7c8] sm:$0xff]
    %v283 = vld [vmem:[%s1 + $0x7d0] sm:$0xff]
    %v284 = vld [vmem:[%s1 + $0x7d8] sm:$0xff]
    %v285 = vld [vmem:[%s1 + $0x7e0] sm:$0xff]
    %v286 = vld [vmem:[%s1 + $0x7e8] sm:$0xff]
    %v287 = vld [vmem:[%s1 + $0x7f0] sm:$0xff]
    %v288 = vld [vmem:[%s1 + $0x7f8] sm:$0xff]
    %v289 = vld [vmem:[%s1 + $0x800] sm:$0xff]
    %v290 = vld [vmem:[%s1 + $0x808] sm:$0xff]
    %v291 = vld [vmem:[%s1 + $0x810] sm:$0xff]
    %v292 = vld [vmem:[%s1 + $0x818] sm:$0xff]
    %v293 = vld [vmem:[%s1 + $0x820] sm:$0xff]
    %v294 = vld [vmem:[%s1 + $0x828] sm:$0xff]
    %v295 = vld [vmem:[%s1 + $0x830] sm:$0xff]
    %v296 = vld [vmem:[%s1 + $0x838] sm:$0xff]
    %v297 = vld [vmem:[%s1 + $0x840] sm:$0xff]
    %v298 = vld [vmem:[%s1 + $0x848] sm:$0xff]
    %v299 = vld [vmem:[%s1 + $0x850] sm:$0xff]
    %v300 = vld [vmem:[%s1 + $0x858] sm:$0xff]
    %v301 = vld [vmem:[%s1 + $0x860] sm:$0xff]
    %v302 = vld [vmem:[%s1 + $0x868] sm:$0xff]
    %v303 = vld [vmem:[%s1 + $0x870] sm:$0xff]
    %v304 = vld [vmem:[%s1 + $0x878] sm:$0xff]
    %v305 = vld [vmem:[%s1 + $0x880] sm:$0xff]
    %v306 = vld [vmem:[%s1 + $0x888] sm:$0xff]
    %v307 = vld [vmem:[%s1 + $0x890] sm:$0xff]
    %v308 = vld [vmem:[%s1 + $0x898] sm:$0xff]
    %v309 = vld [vmem:[%s1 + $0x8a0] sm:$0xff]
    %v310 = vld [vmem:[%s1 + $0x8a8] sm:$0xff]
    %v311 = vld [vmem:[%s1 + $0x8b0] sm:$0xff]
    %v312 = vld [vmem:[%s1 + $0x8b8] sm:$0xff]
    %v313 = vld [vmem:[%s1 + $0x8c0] sm:$0xff]
    %v314 = vld [vmem:[%s1 + $0x8c8] sm:$0xff]
    %v315 = vld [vmem:[%s1 + $0x8d0] sm:$0xff]
    %v316 = vld [vmem:[%s1 + $0x8d8] sm:$0xff]
    %v317 = vld [vmem:[%s1 + $0x8e0] sm:$0xff]
    %v318 = vld [vmem:[%s1 + $0x8e8] sm:$0xff]
    %v319 = vld [vmem:[%s1 + $0x8f0] sm:$0xff]
    %v320 = vld [vmem:[%s1 + $0x8f8] sm:$0xff]
    %v321 = vld [vmem:[%s1 + $0x900] sm:$0xff]
    %v322 = vld [vmem:[%s1 + $0x908] sm:$0xff]
    %v323 = vld [vmem:[%s1 + $0x910] sm:$0xff]
    %v324 = vld [vmem:[%s1 + $0x918] sm:$0xff]
    %v325 = vld [vmem:[%s1 + $0x920] sm:$0xff]
    %v326 = vld [vmem:[%s1 + $0x928] sm:$0xff]
    %v327 = vld [vmem:[%s1 + $0x930] sm:$0xff]
    %v328 = vld [vmem:[%s1 + $0x938] sm:$0xff]
    %v329 = vld [vmem:[%s1 + $0x940] sm:$0xff]
    %v330 = vld [vmem:[%s1 + $0x948] sm:$0xff]
    %v331 = vld [vmem:[%s1 + $0x950] sm:$0xff]
    %v332 = vld [vmem:[%s1 + $0x958] sm:$0xff]
    %v333 = vld [vmem:[%s1 + $0x960] sm:$0xff]
    %v334 = vld [vmem:[%s1 + $0x968] sm:$0xff]
    %v335 = vld [vmem:[%s1 + $0x970] sm:$0xff]
    %v336 = vld [vmem:[%s1 + $0x978] sm:$0xff]
    %v337 = vld [vmem:[%s1 + $0x980] sm:$0xff]
    %v338 = vld [vmem:[%s1 + $0x988] sm:$0xff]
    %v339 = vld [vmem:[%s1 + $0x990] sm:$0xff]
    %v340 = vld [vmem:[%s1 + $0x998] sm:$0xff]
    %v341 = vld [vmem:[%s1 + $0x9a0] sm:$0xff]
    %v342 = vld [vmem:[%s1 + $0x9a8] sm:$0xff]
    %v343 = vld [vmem:[%s1 + $0x9b0] sm:$0xff]
    %v344 = vld [vmem:[%s1 + $0x9b8] sm:$0xff]
    %v345 = vld [vmem:[%s1 + $0x9c0] sm:$0xff]
    %v346 = vld [vmem:[%s1 + $0x9c8] sm:$0xff]
    %v347 = vld [vmem:[%s1 + $0x9d0] sm:$0xff]
    %v348 = vld [vmem:[%s1 + $0x9d8] sm:$0xff]
    %v349 = vld [vmem:[%s1 + $0x9e0] sm:$0xff]
    %v350 = vld [vmem:[%s1 + $0x9e8] sm:$0xff]
    %v351 = vld [vmem:[%s1 + $0x9f0] sm:$0xff]
    %v352 = vld [vmem:[%s1 + $0x9f8] sm:$0xff]
    %v353 = vld [vmem:[%s1 + $0xa00] sm:$0xff]
    %v354 = vld [vmem:[%s1 + $0xa08] sm:$0xff]
    %v355 = vld [vmem:[%s1 + $0xa10] sm:$0xff]
    %v356 = vld [vmem:[%s1 + $0xa18] sm:$0xff]
    %v357 = vld [vmem:[%s1 + $0xa20] sm:$0xff]
    %v358 = vld [vmem:[%s1 + $0xa28] sm:$0xff]
    %v359 = vld [vmem:[%s1 + $0xa30] sm:$0xff]
    %v360 = vld [vmem:[%s1 + $0xa38] sm:$0xff]
    %v361 = vld [vmem:[%s1 + $0xa40] sm:$0xff]
    %v362 = vld [vmem:[%s1 + $0xa48] sm:$0xff]
    %v363 = vld [vmem:[%s1 + $0xa50] sm:$0xff]
    %v364 = vld [vmem:[%s1 + $0xa58] sm:$0xff]
    %v365 = vld [vmem:[%s1 + $0xa60] sm:$0xff]
    %v366 = vld [vmem:[%s1 + $0xa68] sm:$0xff]
    %v367 = vld [vmem:[%s1 + $0xa70] sm:$0xff]
    %v368 = vld [vmem:[%s1 + $0xa78] sm:$0xff]
    %v369 = vld [vmem:[%s1 + $0xa80] sm:$0xff]
    %v370 = vld [vmem:[%s1 + $0xa88] sm:$0xff]
    %v371 = vld [vmem:[%s1 + $0xa90] sm:$0xff]
    %v372 = vld [vmem:[%s1 + $0xa98] sm:$0xff]
    %v373 = vld [vmem:[%s1 + $0xaa0] sm:$0xff]
    %v374 = vld [vmem:[%s1 + $0xaa8] sm:$0xff]
    %v375 = vld [vmem:[%s1 + $0xab0] sm:$0xff]
    %v376 = vld [vmem:[%s1 + $0xab8] sm:$0xff]
    %v377 = vld [vmem:[%s1 + $0xac0] sm:$0xff]
    %v378 = vld [vmem:[%s1 + $0xac8] sm:$0xff]
    %v379 = vld [vmem:[%s1 + $0xad0] sm:$0xff]
    %v380 = vld [vmem:[%s1 + $0xad8] sm:$0xff]
    %v381 = vld [vmem:[%s1 + $0xae0] sm:$0xff]
    %v382 = vld [vmem:[%s1 + $0xae8] sm:$0xff]
    %v383 = vld [vmem:[%s1 + $0xaf0] sm:$0xff]
    %v384 = vld [vmem:[%s1 + $0xaf8] sm:$0xff]
    %v385 = vld [vmem:[%s1 + $0xb00] sm:$0xff]
    %v386 = vld [vmem:[%s1 + $0xb08] sm:$0xff]
    %v387 = vld [vmem:[%s1 + $0xb10] sm:$0xff]
    %v388 = vld [vmem:[%s1 + $0xb18] sm:$0xff]
    %v389 = vld [vmem:[%s1 + $0xb20] sm:$0xff]
    %v390 = vld [vmem:[%s1 + $0xb28] sm:$0xff]
    %v391 = vld [vmem:[%s1 + $0xb30] sm:$0xff]
    %v392 = vld [vmem:[%s1 + $0xb38] sm:$0xff]
    %v393 = vld [vmem:[%s1 + $0xb40] sm:$0xff]
    %v394 = vld [vmem:[%s1 + $0xb48] sm:$0xff]
    %v395 = vld [vmem:[%s1 + $0xb50] sm:$0xff]
    %v396 = vld [vmem:[%s1 + $0xb58] sm:$0xff]
    %v397 = vld [vmem:[%s1 + $0xb60] sm:$0xff]
    %v398 = vld [vmem:[%s1 + $0xb68] sm:$0xff]
    %v399 = vld [vmem:[%s1 + $0xb70] sm:$0xff]
    %v400 = vld [vmem:[%s1 + $0xb78] sm:$0xff]
    %v401 = vld [vmem:[%s1 + $0xb80] sm:$0xff]
    %v402 = vld [vmem:[%s1 + $0xb88] sm:$0xff]
    %v403 = vld [vmem:[%s1 + $0xb90] sm:$0xff]
    %v404 = vld [vmem:[%s1 + $0xb98] sm:$0xff]
    %v405 = vld [vmem:[%s1 + $0xba0] sm:$0xff]
    %v406 = vld [vmem:[%s1 + $0xba8] sm:$0xff]
    %v407 = vld [vmem:[%s1 + $0xbb0] sm:$0xff]
    %v408 = vld [vmem:[%s1 + $0xbb8] sm:$0xff]
    %v409 = vld [vmem:[%s1 + $0xbc0] sm:$0xff]
    %v410 = vld [vmem:[%s1 + $0xbc8] sm:$0xff]
    %v411 = vld [vmem:[%s1 + $0xbd0] sm:$0xff]
    %v412 = vld [vmem:[%s1 + $0xbd8] sm:$0xff]
    %v413 = vld [vmem:[%s1 + $0xbe0] sm:$0xff]
    %v414 = vld [vmem:[%s1 + $0xbe8] sm:$0xff]
    %v415 = vld [vmem:[%s1 + $0xbf0] sm:$0xff]
    %v416 = vld [vmem:[%s1 + $0xbf8] sm:$0xff]
    %v417 = vld [vmem:[%s1 + $0xc00] sm:$0xff]
    %v418 = vld [vmem:[%s1 + $0xc08] sm:$0xff]
    %v419 = vld [vmem:[%s1 + $0xc10] sm:$0xff]
    %v420 = vld [vmem:[%s1 + $0xc18] sm:$0xff]
    %v421 = vld [vmem:[%s1 + $0xc20] sm:$0xff]
    %v422 = vld [vmem:[%s1 + $0xc28] sm:$0xff]
    %v423 = vld [vmem:[%s1 + $0xc30] sm:$0xff]
    %v424 = vld [vmem:[%s1 + $0xc38] sm:$0xff]
    %v425 = vld [vmem:[%s1 + $0xc40] sm:$0xff]
    %v426 = vld [vmem:[%s1 + $0xc48] sm:$0xff]
    %v427 = vld [vmem:[%s1 + $0xc50] sm:$0xff]
    %v428 = vld [vmem:[%s1 + $0xc58] sm:$0xff]
    %v429 = vld [vmem:[%s1 + $0xc60] sm:$0xff]
    %v430 = vld [vmem:[%s1 + $0xc68] sm:$0xff]
    %v431 = vld [vmem:[%s1 + $0xc70] sm:$0xff]
    %v432 = vld [vmem:[%s1 + $0xc78] sm:$0xff]
    %v433 = vld [vmem:[%s1 + $0xc80] sm:$0xff]
    %v434 = vld [vmem:[%s1 + $0xc88] sm:$0xff]
    %v435 = vld [vmem:[%s1 + $0xc90] sm:$0xff]
    %v436 = vld [vmem:[%s1 + $0xc98] sm:$0xff]
    %v437 = vld [vmem:[%s1 + $0xca0] sm:$0xff]
    %v438 = vld [vmem:[%s1 + $0xca8] sm:$0xff]
    %v439 = vld [vmem:[%s1 + $0xcb0] sm:$0xff]
    %v440 = vld [vmem:[%s1 + $0xcb8] sm:$0xff]
    %v441 = vld [vmem:[%s1 + $0xcc0] sm:$0xff]
    %v442 = vld [vmem:[%s1 + $0xcc8] sm:$0xff]
    %v443 = vld [vmem:[%s1 + $0xcd0] sm:$0xff]
    %v444 = vld [vmem:[%s1 + $0xcd8] sm:$0xff]
    %v445 = vld [vmem:[%s1 + $0xce0] sm:$0xff]
    %v446 = vld [vmem:[%s1 + $0xce8] sm:$0xff]
    %v447 = vld [vmem:[%s1 + $0xcf0] sm:$0xff]
    %v448 = vld [vmem:[%s1 + $0xcf8] sm:$0xff]
    %v449 = vld [vmem:[%s1 + $0xd00] sm:$0xff]
    %v450 = vld [vmem:[%s1 + $0xd08] sm:$0xff]
    %v451 = vld [vmem:[%s1 + $0xd10] sm:$0xff]
    %v452 = vld [vmem:[%s1 + $0xd18] sm:$0xff]
    %v453 = vld [vmem:[%s1 + $0xd20] sm:$0xff]
    %v454 = vld [vmem:[%s1 + $0xd28] sm:$0xff]
    %v455 = vld [vmem:[%s1 + $0xd30] sm:$0xff]
    %v456 = vld [vmem:[%s1 + $0xd38] sm:$0xff]
    %v457 = vld [vmem:[%s1 + $0xd40] sm:$0xff]
    %v458 = vld [vmem:[%s1 + $0xd48] sm:$0xff]
    %v459 = vld [vmem:[%s1 + $0xd50] sm:$0xff]
    %v460 = vld [vmem:[%s1 + $0xd58] sm:$0xff]
    %v461 = vld [vmem:[%s1 + $0xd60] sm:$0xff]
    %v462 = vld [vmem:[%s1 + $0xd68] sm:$0xff]
    %v463 = vld [vmem:[%s1 + $0xd70] sm:$0xff]
    %v464 = vld [vmem:[%s1 + $0xd78] sm:$0xff]
    %v465 = vld [vmem:[%s1 + $0xd80] sm:$0xff]
    %v466 = vld [vmem:[%s1 + $0xd88] sm:$0xff]
    %v467 = vld [vmem:[%s1 + $0xd90] sm:$0xff]
    %v468 = vld [vmem:[%s1 + $0xd98] sm:$0xff]
    %v469 = vld [vmem:[%s1 + $0xda0] sm:$0xff]
    %v470 = vld [vmem:[%s1 + $0xda8] sm:$0xff]
    %v471 = vld [vmem:[%s1 + $0xdb0] sm:$0xff]
    %v472 = vld [vmem:[%s1 + $0xdb8] sm:$0xff]
    %v473 = vld [vmem:[%s1 + $0xdc0] sm:$0xff]
    %v474 = vld [vmem:[%s1 + $0xdc8] sm:$0xff]
    %v475 = vld [vmem:[%s1 + $0xdd0] sm:$0xff]
    %v476 = vld [vmem:[%s1 + $0xdd8] sm:$0xff]
    %v477 = vld [vmem:[%s1 + $0xde0] sm:$0xff]
    %v478 = vld [vmem:[%s1 + $0xde8] sm:$0xff]
    %v479 = vld [vmem:[%s1 + $0xdf0] sm:$0xff]
    %v480 = vld [vmem:[%s1 + $0xdf8] sm:$0xff]
    %v481 = vld [vmem:[%s2] sm:$0xf]
    %v483 = vperm.slane %v481, 0
    %v484 = vperm.slane %v481, 1
    %v485 = vperm.slane %v481, 2
    %v486 = vperm.slane %v481, 3
    %492 = vst [vmem:[#allocation1] ss:$9 sm:$0xff] %v31
    %v493 = vld [vmem:[#allocation1] sm:$0xff]
    %v494 = vld [vmem:[#allocation1 + $0x9] sm:$0xff]
    %v495 = vld [vmem:[#allocation1 + $0x12] sm:$0xff]
    %v496 = vld [vmem:[#allocation1 + $0x1b] sm:$0xff]
    %v497 = vld [vmem:[#allocation1 + $0x24] sm:$0xff]
    %v498 = vld [vmem:[#allocation1 + $0x2d] sm:$0xff]
    %v499 = vld [vmem:[#allocation1 + $0x36] sm:$0xff]
    %v500 = vld [vmem:[#allocation1 + $0x3f] sm:$0xff]
    %502 = vst [vmem:[#allocation1] ss:$9 sm:$0xff] %v32
    %v503 = vld [vmem:[#allocation1] sm:$0xff]
    %v504 = vld [vmem:[#allocation1 + $0x9] sm:$0xff]
    %v505 = vld [vmem:[#allocation1 + $0x12] sm:$0xff]
    %v506 = vld [vmem:[#allocation1 + $0x1b] sm:$0xff]
    %v507 = vld [vmem:[#allocation1 + $0x24] sm:$0xff]
    %v508 = vld [vmem:[#allocation1 + $0x2d] sm:$0xff]
    %v971 = vunpack.c.l.b16 %v33
    %v972 = vunpack.c.h.b16 %v33
    %v973 = vunpack.c.l.b16 %v34
    %v974 = vunpack.c.h.b16 %v34
    %v975 = vunpack.c.l.b16 %v35
    %v976 = vunpack.c.h.b16 %v35
    %v977 = vunpack.c.l.b16 %v36
    %v978 = vunpack.c.h.b16 %v36
    %v979 = vunpack.c.l.b16 %v37
    %v980 = vunpack.c.h.b16 %v37
    %v981 = vunpack.c.l.b16 %v38
    %v982 = vunpack.c.h.b16 %v38
    %v983 = vunpack.c.l.b16 %v39
    %v984 = vunpack.c.h.b16 %v39
    %v985 = vunpack.c.l.b16 %v40
    %v986 = vunpack.c.h.b16 %v40
    %v987 = vunpack.c.l.b16 %v41
    %v988 = vunpack.c.h.b16 %v41
    %v989 = vunpack.c.l.b16 %v42
    %v990 = vunpack.c.h.b16 %v42
    %v991 = vunpack.c.l.b16 %v43
    %v992 = vunpack.c.h.b16 %v43
    %v993 = vunpack.c.l.b16 %v44
    %v994 = vunpack.c.h.b16 %v44
    %v995 = vunpack.c.l.b16 %v45
    %v996 = vunpack.c.h.b16 %v45
    %v997 = vunpack.c.l.b16 %v46
    %v998 = vunpack.c.h.b16 %v46
    %v999 = vunpack.c.l.b16 %v47
    %v1000 = vunpack.c.h.b16 %v47
    %v1001 = vunpack.c.l.b16 %v48
    %v1002 = vunpack.c.h.b16 %v48
    %v1003 = vunpack.c.l.b16 %v49
    %v1004 = vunpack.c.h.b16 %v49
    %v1005 = vunpack.c.l.b16 %v50
    %v1006 = vunpack.c.h.b16 %v50
    %v1007 = vunpack.c.l.b16 %v51
    %v1008 = vunpack.c.h.b16 %v51
    %v1009 = vunpack.c.l.b16 %v52
    %v1010 = vunpack.c.h.b16 %v52
    %v1011 = vunpack.c.l.b16 %v53
    %v1012 = vunpack.c.h.b16 %v53
    %v1013 = vunpack.c.l.b16 %v54
    %v1014 = vunpack.c.h.b16 %v54
    %v1015 = vunpack.c.l.b16 %v55
    %v1016 = vunpack.c.h.b16 %v55
    %v1017 = vunpack.c.l.b16 %v56
    %v1018 = vunpack.c.h.b16 %v56
    %v1019 = vunpack.c.l.b16 %v57
    %v1020 = vunpack.c.h.b16 %v57
    %v1021 = vunpack.c.l.b16 %v58
    %v1022 = vunpack.c.h.b16 %v58
    %v1023 = vunpack.c.l.b16 %v59
    %v1024 = vunpack.c.h.b16 %v59
    %v1025 = vunpack.c.l.b16 %v60
    %v1026 = vunpack.c.h.b16 %v60
    %v1027 = vunpack.c.l.b16 %v61
    %v1028 = vunpack.c.h.b16 %v61
    %v1029 = vunpack.c.l.b16 %v62
    %v1030 = vunpack.c.h.b16 %v62
    %v1031 = vunpack.c.l.b16 %v63
    %v1032 = vunpack.c.h.b16 %v63
    %v1033 = vunpack.c.l.b16 %v64
    %v1034 = vunpack.c.h.b16 %v64
    %v1035 = vunpack.c.l.b16 %v65
    %v1036 = vunpack.c.h.b16 %v65
    %v1037 = vunpack.c.l.b16 %v66
    %v1038 = vunpack.c.h.b16 %v66
    %v1039 = vunpack.c.l.b16 %v67
    %v1040 = vunpack.c.h.b16 %v67
    %v1041 = vunpack.c.l.b16 %v68
    %v1042 = vunpack.c.h.b16 %v68
    %v1043 = vunpack.c.l.b16 %v69
    %v1044 = vunpack.c.h.b16 %v69
    %v1045 = vunpack.c.l.b16 %v70
    %v1046 = vunpack.c.h.b16 %v70
    %v1047 = vunpack.c.l.b16 %v71
    %v1048 = vunpack.c.h.b16 %v71
    %v1049 = vunpack.c.l.b16 %v72
    %v1050 = vunpack.c.h.b16 %v72
    %v1051 = vunpack.c.l.b16 %v73
    %v1052 = vunpack.c.h.b16 %v73
    %v1053 = vunpack.c.l.b16 %v74
    %v1054 = vunpack.c.h.b16 %v74
    %v1055 = vunpack.c.l.b16 %v75
    %v1056 = vunpack.c.h.b16 %v75
    %v1057 = vunpack.c.l.b16 %v76
    %v1058 = vunpack.c.h.b16 %v76
    %v1059 = vunpack.c.l.b16 %v77
    %v1060 = vunpack.c.h.b16 %v77
    %v1061 = vunpack.c.l.b16 %v78
    %v1062 = vunpack.c.h.b16 %v78
    %v1063 = vunpack.c.l.b16 %v79
    %v1064 = vunpack.c.h.b16 %v79
    %v1065 = vunpack.c.l.b16 %v80
    %v1066 = vunpack.c.h.b16 %v80
    %v1067 = vunpack.c.l.b16 %v81
    %v1068 = vunpack.c.h.b16 %v81
    %v1069 = vunpack.c.l.b16 %v82
    %v1070 = vunpack.c.h.b16 %v82
    %v1071 = vunpack.c.l.b16 %v83
    %v1072 = vunpack.c.h.b16 %v83
    %v1073 = vunpack.c.l.b16 %v84
    %v1074 = vunpack.c.h.b16 %v84
    %v1075 = vunpack.c.l.b16 %v85
    %v1076 = vunpack.c.h.b16 %v85
    %v1077 = vunpack.c.l.b16 %v86
    %v1078 = vunpack.c.h.b16 %v86
    %v1079 = vunpack.c.l.b16 %v87
    %v1080 = vunpack.c.h.b16 %v87
    %v1081 = vunpack.c.l.b16 %v88
    %v1082 = vunpack.c.h.b16 %v88
    %v1083 = vunpack.c.l.b16 %v89
    %v1084 = vunpack.c.h.b16 %v89
    %v1085 = vunpack.c.l.b16 %v90
    %v1086 = vunpack.c.h.b16 %v90
    %v1087 = vunpack.c.l.b16 %v91
    %v1088 = vunpack.c.h.b16 %v91
    %v1089 = vunpack.c.l.b16 %v92
    %v1090 = vunpack.c.h.b16 %v92
    %v1091 = vunpack.c.l.b16 %v93
    %v1092 = vunpack.c.h.b16 %v93
    %v1093 = vunpack.c.l.b16 %v94
    %v1094 = vunpack.c.h.b16 %v94
    %v1095 = vunpack.c.l.b16 %v95
    %v1096 = vunpack.c.h.b16 %v95
    %v1097 = vunpack.c.l.b16 %v96
    %v1098 = vunpack.c.h.b16 %v96
    %v1099 = vunpack.c.l.b16 %v97
    %v1100 = vunpack.c.h.b16 %v97
    %v1101 = vunpack.c.l.b16 %v98
    %v1102 = vunpack.c.h.b16 %v98
    %v1103 = vunpack.c.l.b16 %v99
    %v1104 = vunpack.c.h.b16 %v99
    %v1105 = vunpack.c.l.b16 %v100
    %v1106 = vunpack.c.h.b16 %v100
    %v1107 = vunpack.c.l.b16 %v101
    %v1108 = vunpack.c.h.b16 %v101
    %v1109 = vunpack.c.l.b16 %v102
    %v1110 = vunpack.c.h.b16 %v102
    %v1111 = vunpack.c.l.b16 %v103
    %v1112 = vunpack.c.h.b16 %v103
    %v1113 = vunpack.c.l.b16 %v104
    %v1114 = vunpack.c.h.b16 %v104
    %v1115 = vunpack.c.l.b16 %v105
    %v1116 = vunpack.c.h.b16 %v105
    %v1117 = vunpack.c.l.b16 %v106
    %v1118 = vunpack.c.h.b16 %v106
    %v1119 = vunpack.c.l.b16 %v107
    %v1120 = vunpack.c.h.b16 %v107
    %v1121 = vunpack.c.l.b16 %v108
    %v1122 = vunpack.c.h.b16 %v108
    %v1123 = vunpack.c.l.b16 %v109
    %v1124 = vunpack.c.h.b16 %v109
    %v1125 = vunpack.c.l.b16 %v110
    %v1126 = vunpack.c.h.b16 %v110
    %v1127 = vunpack.c.l.b16 %v111
    %v1128 = vunpack.c.h.b16 %v111
    %v1129 = vunpack.c.l.b16 %v112
    %v1130 = vunpack.c.h.b16 %v112
    %v1131 = vunpack.c.l.b16 %v113
    %v1132 = vunpack.c.h.b16 %v113
    %v1133 = vunpack.c.l.b16 %v114
    %v1134 = vunpack.c.h.b16 %v114
    %v1135 = vunpack.c.l.b16 %v115
    %v1136 = vunpack.c.h.b16 %v115
    %v1137 = vunpack.c.l.b16 %v116
    %v1138 = vunpack.c.h.b16 %v116
    %v1139 = vunpack.c.l.b16 %v117
    %v1140 = vunpack.c.h.b16 %v117
    %v1141 = vunpack.c.l.b16 %v118
    %v1142 = vunpack.c.h.b16 %v118
    %v1143 = vunpack.c.l.b16 %v119
    %v1144 = vunpack.c.h.b16 %v119
    %v1145 = vunpack.c.l.b16 %v120
    %v1146 = vunpack.c.h.b16 %v120
    %v1147 = vunpack.c.l.b16 %v121
    %v1148 = vunpack.c.h.b16 %v121
    %v1149 = vunpack.c.l.b16 %v122
    %v1150 = vunpack.c.h.b16 %v122
    %v1151 = vunpack.c.l.b16 %v123
    %v1152 = vunpack.c.h.b16 %v123
    %v1153 = vunpack.c.l.b16 %v124
    %v1154 = vunpack.c.h.b16 %v124
    %v1155 = vunpack.c.l.b16 %v125
    %v1156 = vunpack.c.h.b16 %v125
    %v1157 = vunpack.c.l.b16 %v126
    %v1158 = vunpack.c.h.b16 %v126
    %v1159 = vunpack.c.l.b16 %v127
    %v1160 = vunpack.c.h.b16 %v127
    %v1161 = vunpack.c.l.b16 %v128
    %v1162 = vunpack.c.h.b16 %v128
    %v1163 = vunpack.c.l.b16 %v129
    %v1164 = vunpack.c.h.b16 %v129
    %v1165 = vunpack.c.l.b16 %v130
    %v1166 = vunpack.c.h.b16 %v130
    %v1167 = vunpack.c.l.b16 %v131
    %v1168 = vunpack.c.h.b16 %v131
    %v1169 = vunpack.c.l.b16 %v132
    %v1170 = vunpack.c.h.b16 %v132
    %v1171 = vunpack.c.l.b16 %v133
    %v1172 = vunpack.c.h.b16 %v133
    %v1173 = vunpack.c.l.b16 %v134
    %v1174 = vunpack.c.h.b16 %v134
    %v1175 = vunpack.c.l.b16 %v135
    %v1176 = vunpack.c.h.b16 %v135
    %v1177 = vunpack.c.l.b16 %v136
    %v1178 = vunpack.c.h.b16 %v136
    %v1179 = vunpack.c.l.b16 %v137
    %v1180 = vunpack.c.h.b16 %v137
    %v1181 = vunpack.c.l.b16 %v138
    %v1182 = vunpack.c.h.b16 %v138
    %v1183 = vunpack.c.l.b16 %v139
    %v1184 = vunpack.c.h.b16 %v139
    %v1185 = vunpack.c.l.b16 %v140
    %v1186 = vunpack.c.h.b16 %v140
    %v1187 = vunpack.c.l.b16 %v141
    %v1188 = vunpack.c.h.b16 %v141
    %v1189 = vunpack.c.l.b16 %v142
    %v1190 = vunpack.c.h.b16 %v142
    %v1191 = vunpack.c.l.b16 %v143
    %v1192 = vunpack.c.h.b16 %v143
    %v1193 = vunpack.c.l.b16 %v144
    %v1194 = vunpack.c.h.b16 %v144
    %v1195 = vunpack.c.l.b16 %v145
    %v1196 = vunpack.c.h.b16 %v145
    %v1197 = vunpack.c.l.b16 %v146
    %v1198 = vunpack.c.h.b16 %v146
    %v1199 = vunpack.c.l.b16 %v147
    %v1200 = vunpack.c.h.b16 %v147
    %v1201 = vunpack.c.l.b16 %v148
    %v1202 = vunpack.c.h.b16 %v148
    %v1203 = vunpack.c.l.b16 %v149
    %v1204 = vunpack.c.h.b16 %v149
    %v1205 = vunpack.c.l.b16 %v150
    %v1206 = vunpack.c.h.b16 %v150
    %v1207 = vunpack.c.l.b16 %v151
    %v1208 = vunpack.c.h.b16 %v151
    %v1209 = vunpack.c.l.b16 %v152
    %v1210 = vunpack.c.h.b16 %v152
    %v1211 = vunpack.c.l.b16 %v153
    %v1212 = vunpack.c.h.b16 %v153
    %v1213 = vunpack.c.l.b16 %v154
    %v1214 = vunpack.c.h.b16 %v154
    %v1215 = vunpack.c.l.b16 %v155
    %v1216 = vunpack.c.h.b16 %v155
    %v1217 = vunpack.c.l.b16 %v156
    %v1218 = vunpack.c.h.b16 %v156
    %v1219 = vunpack.c.l.b16 %v157
    %v1220 = vunpack.c.h.b16 %v157
    %v1221 = vunpack.c.l.b16 %v158
    %v1222 = vunpack.c.h.b16 %v158
    %v1223 = vunpack.c.l.b16 %v159
    %v1224 = vunpack.c.h.b16 %v159
    %v1225 = vunpack.c.l.b16 %v160
    %v1226 = vunpack.c.h.b16 %v160
    %v1227 = vunpack.c.l.b16 %v161
    %v1228 = vunpack.c.h.b16 %v161
    %v1229 = vunpack.c.l.b16 %v162
    %v1230 = vunpack.c.h.b16 %v162
    %v1231 = vunpack.c.l.b16 %v163
    %v1232 = vunpack.c.h.b16 %v163
    %v1233 = vunpack.c.l.b16 %v164
    %v1234 = vunpack.c.h.b16 %v164
    %v1235 = vunpack.c.l.b16 %v165
    %v1236 = vunpack.c.h.b16 %v165
    %v1237 = vunpack.c.l.b16 %v166
    %v1238 = vunpack.c.h.b16 %v166
    %v1239 = vunpack.c.l.b16 %v167
    %v1240 = vunpack.c.h.b16 %v167
    %v1241 = vunpack.c.l.b16 %v168
    %v1242 = vunpack.c.h.b16 %v168
    %v1243 = vunpack.c.l.b16 %v169
    %v1244 = vunpack.c.h.b16 %v169
    %v1245 = vunpack.c.l.b16 %v170
    %v1246 = vunpack.c.h.b16 %v170
    %v1247 = vunpack.c.l.b16 %v171
    %v1248 = vunpack.c.h.b16 %v171
    %v1249 = vunpack.c.l.b16 %v172
    %v1250 = vunpack.c.h.b16 %v172
    %v1251 = vunpack.c.l.b16 %v173
    %v1252 = vunpack.c.h.b16 %v173
    %v1253 = vunpack.c.l.b16 %v174
    %v1254 = vunpack.c.h.b16 %v174
    %v1255 = vunpack.c.l.b16 %v175
    %v1256 = vunpack.c.h.b16 %v175
    %v1257 = vunpack.c.l.b16 %v176
    %v1258 = vunpack.c.h.b16 %v176
    %v1259 = vunpack.c.l.b16 %v177
    %v1260 = vunpack.c.h.b16 %v177
    %v1261 = vunpack.c.l.b16 %v178
    %v1262 = vunpack.c.h.b16 %v178
    %v1263 = vunpack.c.l.b16 %v179
    %v1264 = vunpack.c.h.b16 %v179
    %v1265 = vunpack.c.l.b16 %v180
    %v1266 = vunpack.c.h.b16 %v180
    %v1267 = vunpack.c.l.b16 %v181
    %v1268 = vunpack.c.h.b16 %v181
    %v1269 = vunpack.c.l.b16 %v182
    %v1270 = vunpack.c.h.b16 %v182
    %v1271 = vunpack.c.l.b16 %v183
    %v1272 = vunpack.c.h.b16 %v183
    %v1273 = vunpack.c.l.b16 %v184
    %v1274 = vunpack.c.h.b16 %v184
    %v1275 = vunpack.c.l.b16 %v185
    %v1276 = vunpack.c.h.b16 %v185
    %v1277 = vunpack.c.l.b16 %v186
    %v1278 = vunpack.c.h.b16 %v186
    %v1279 = vunpack.c.l.b16 %v187
    %v1280 = vunpack.c.h.b16 %v187
    %v1281 = vunpack.c.l.b16 %v188
    %v1282 = vunpack.c.h.b16 %v188
    %v1283 = vunpack.c.l.b16 %v189
    %v1284 = vunpack.c.h.b16 %v189
    %v1285 = vunpack.c.l.b16 %v190
    %v1286 = vunpack.c.h.b16 %v190
    %v1287 = vunpack.c.l.b16 %v191
    %v1288 = vunpack.c.h.b16 %v191
    %v1289 = vunpack.c.l.b16 %v192
    %v1290 = vunpack.c.h.b16 %v192
    %v1291 = vunpack.c.l.b16 %v193
    %v1292 = vunpack.c.h.b16 %v193
    %v1293 = vunpack.c.l.b16 %v194
    %v1294 = vunpack.c.h.b16 %v194
    %v1295 = vunpack.c.l.b16 %v195
    %v1296 = vunpack.c.h.b16 %v195
    %v1297 = vunpack.c.l.b16 %v196
    %v1298 = vunpack.c.h.b16 %v196
    %v1299 = vunpack.c.l.b16 %v197
    %v1300 = vunpack.c.h.b16 %v197
    %v1301 = vunpack.c.l.b16 %v198
    %v1302 = vunpack.c.h.b16 %v198
    %v1303 = vunpack.c.l.b16 %v199
    %v1304 = vunpack.c.h.b16 %v199
    %v1305 = vunpack.c.l.b16 %v200
    %v1306 = vunpack.c.h.b16 %v200
    %v1307 = vunpack.c.l.b16 %v201
    %v1308 = vunpack.c.h.b16 %v201
    %v1309 = vunpack.c.l.b16 %v202
    %v1310 = vunpack.c.h.b16 %v202
    %v1311 = vunpack.c.l.b16 %v203
    %v1312 = vunpack.c.h.b16 %v203
    %v1313 = vunpack.c.l.b16 %v204
    %v1314 = vunpack.c.h.b16 %v204
    %v1315 = vunpack.c.l.b16 %v205
    %v1316 = vunpack.c.h.b16 %v205
    %v1317 = vunpack.c.l.b16 %v206
    %v1318 = vunpack.c.h.b16 %v206
    %v1319 = vunpack.c.l.b16 %v207
    %v1320 = vunpack.c.h.b16 %v207
    %v1321 = vunpack.c.l.b16 %v208
    %v1322 = vunpack.c.h.b16 %v208
    %v1323 = vunpack.c.l.b16 %v209
    %v1324 = vunpack.c.h.b16 %v209
    %v1325 = vunpack.c.l.b16 %v210
    %v1326 = vunpack.c.h.b16 %v210
    %v1327 = vunpack.c.l.b16 %v211
    %v1328 = vunpack.c.h.b16 %v211
    %v1329 = vunpack.c.l.b16 %v212
    %v1330 = vunpack.c.h.b16 %v212
    %v1331 = vunpack.c.l.b16 %v213
    %v1332 = vunpack.c.h.b16 %v213
    %v1333 = vunpack.c.l.b16 %v214
    %v1334 = vunpack.c.h.b16 %v214
    %v1335 = vunpack.c.l.b16 %v215
    %v1336 = vunpack.c.h.b16 %v215
    %v1337 = vunpack.c.l.b16 %v216
    %v1338 = vunpack.c.h.b16 %v216
    %v1339 = vunpack.c.l.b16 %v217
    %v1340 = vunpack.c.h.b16 %v217
    %v1341 = vunpack.c.l.b16 %v218
    %v1342 = vunpack.c.h.b16 %v218
    %v1343 = vunpack.c.l.b16 %v219
    %v1344 = vunpack.c.h.b16 %v219
    %v1345 = vunpack.c.l.b16 %v220
    %v1346 = vunpack.c.h.b16 %v220
    %v1347 = vunpack.c.l.b16 %v221
    %v1348 = vunpack.c.h.b16 %v221
    %v1349 = vunpack.c.l.b16 %v222
    %v1350 = vunpack.c.h.b16 %v222
    %v1351 = vunpack.c.l.b16 %v223
    %v1352 = vunpack.c.h.b16 %v223
    %v1353 = vunpack.c.l.b16 %v224
    %v1354 = vunpack.c.h.b16 %v224
    %v1355 = vunpack.c.l.b16 %v225
    %v1356 = vunpack.c.h.b16 %v225
    %v1357 = vunpack.c.l.b16 %v226
    %v1358 = vunpack.c.h.b16 %v226
    %v1359 = vunpack.c.l.b16 %v227
    %v1360 = vunpack.c.h.b16 %v227
    %v1361 = vunpack.c.l.b16 %v228
    %v1362 = vunpack.c.h.b16 %v228
    %v1363 = vunpack.c.l.b16 %v229
    %v1364 = vunpack.c.h.b16 %v229
    %v1365 = vunpack.c.l.b16 %v230
    %v1366 = vunpack.c.h.b16 %v230
    %v1367 = vunpack.c.l.b16 %v231
    %v1368 = vunpack.c.h.b16 %v231
    %v1369 = vunpack.c.l.b16 %v232
    %v1370 = vunpack.c.h.b16 %v232
    %v1371 = vunpack.c.l.b16 %v233
    %v1372 = vunpack.c.h.b16 %v233
    %v1373 = vunpack.c.l.b16 %v234
    %v1374 = vunpack.c.h.b16 %v234
    %v1375 = vunpack.c.l.b16 %v235
    %v1376 = vunpack.c.h.b16 %v235
    %v1377 = vunpack.c.l.b16 %v236
    %v1378 = vunpack.c.h.b16 %v236
    %v1379 = vunpack.c.l.b16 %v237
    %v1380 = vunpack.c.h.b16 %v237
    %v1381 = vunpack.c.l.b16 %v238
    %v1382 = vunpack.c.h.b16 %v238
    %v1383 = vunpack.c.l.b16 %v239
    %v1384 = vunpack.c.h.b16 %v239
    %v1385 = vunpack.c.l.b16 %v240
    %v1386 = vunpack.c.h.b16 %v240
    %v1387 = vunpack.c.l.b16 %v241
    %v1388 = vunpack.c.h.b16 %v241
    %v1389 = vunpack.c.l.b16 %v242
    %v1390 = vunpack.c.h.b16 %v242
    %v1391 = vunpack.c.l.b16 %v243
    %v1392 = vunpack.c.h.b16 %v243
    %v1393 = vunpack.c.l.b16 %v244
    %v1394 = vunpack.c.h.b16 %v244
    %v1395 = vunpack.c.l.b16 %v245
    %v1396 = vunpack.c.h.b16 %v245
    %v1397 = vunpack.c.l.b16 %v246
    %v1398 = vunpack.c.h.b16 %v246
    %v1399 = vunpack.c.l.b16 %v247
    %v1400 = vunpack.c.h.b16 %v247
    %v1401 = vunpack.c.l.b16 %v248
    %v1402 = vunpack.c.h.b16 %v248
    %v1403 = vunpack.c.l.b16 %v249
    %v1404 = vunpack.c.h.b16 %v249
    %v1405 = vunpack.c.l.b16 %v250
    %v1406 = vunpack.c.h.b16 %v250
    %v1407 = vunpack.c.l.b16 %v251
    %v1408 = vunpack.c.h.b16 %v251
    %v1409 = vunpack.c.l.b16 %v252
    %v1410 = vunpack.c.h.b16 %v252
    %v1411 = vunpack.c.l.b16 %v253
    %v1412 = vunpack.c.h.b16 %v253
    %v1413 = vunpack.c.l.b16 %v254
    %v1414 = vunpack.c.h.b16 %v254
    %v1415 = vunpack.c.l.b16 %v255
    %v1416 = vunpack.c.h.b16 %v255
    %v1417 = vunpack.c.l.b16 %v256
    %v1418 = vunpack.c.h.b16 %v256
    %v1419 = vunpack.c.l.b16 %v257
    %v1420 = vunpack.c.h.b16 %v257
    %v1421 = vunpack.c.l.b16 %v258
    %v1422 = vunpack.c.h.b16 %v258
    %v1423 = vunpack.c.l.b16 %v259
    %v1424 = vunpack.c.h.b16 %v259
    %v1425 = vunpack.c.l.b16 %v260
    %v1426 = vunpack.c.h.b16 %v260
    %v1427 = vunpack.c.l.b16 %v261
    %v1428 = vunpack.c.h.b16 %v261
    %v1429 = vunpack.c.l.b16 %v262
    %v1430 = vunpack.c.h.b16 %v262
    %v1431 = vunpack.c.l.b16 %v263
    %v1432 = vunpack.c.h.b16 %v263
    %v1433 = vunpack.c.l.b16 %v264
    %v1434 = vunpack.c.h.b16 %v264
    %v1435 = vunpack.c.l.b16 %v265
    %v1436 = vunpack.c.h.b16 %v265
    %v1437 = vunpack.c.l.b16 %v266
    %v1438 = vunpack.c.h.b16 %v266
    %v1439 = vunpack.c.l.b16 %v267
    %v1440 = vunpack.c.h.b16 %v267
    %v1441 = vunpack.c.l.b16 %v268
    %v1442 = vunpack.c.h.b16 %v268
    %v1443 = vunpack.c.l.b16 %v269
    %v1444 = vunpack.c.h.b16 %v269
    %v1445 = vunpack.c.l.b16 %v270
    %v1446 = vunpack.c.h.b16 %v270
    %v1447 = vunpack.c.l.b16 %v271
    %v1448 = vunpack.c.h.b16 %v271
    %v1449 = vunpack.c.l.b16 %v272
    %v1450 = vunpack.c.h.b16 %v272
    %v1451 = vunpack.c.l.b16 %v273
    %v1452 = vunpack.c.h.b16 %v273
    %v1453 = vunpack.c.l.b16 %v274
    %v1454 = vunpack.c.h.b16 %v274
    %v1455 = vunpack.c.l.b16 %v275
    %v1456 = vunpack.c.h.b16 %v275
    %v1457 = vunpack.c.l.b16 %v276
    %v1458 = vunpack.c.h.b16 %v276
    %v1459 = vunpack.c.l.b16 %v277
    %v1460 = vunpack.c.h.b16 %v277
    %v1461 = vunpack.c.l.b16 %v278
    %v1462 = vunpack.c.h.b16 %v278
    %v1463 = vunpack.c.l.b16 %v279
    %v1464 = vunpack.c.h.b16 %v279
    %v1465 = vunpack.c.l.b16 %v280
    %v1466 = vunpack.c.h.b16 %v280
    %v1467 = vunpack.c.l.b16 %v281
    %v1468 = vunpack.c.h.b16 %v281
    %v1469 = vunpack.c.l.b16 %v282
    %v1470 = vunpack.c.h.b16 %v282
    %v1471 = vunpack.c.l.b16 %v283
    %v1472 = vunpack.c.h.b16 %v283
    %v1473 = vunpack.c.l.b16 %v284
    %v1474 = vunpack.c.h.b16 %v284
    %v1475 = vunpack.c.l.b16 %v285
    %v1476 = vunpack.c.h.b16 %v285
    %v1477 = vunpack.c.l.b16 %v286
    %v1478 = vunpack.c.h.b16 %v286
    %v1479 = vunpack.c.l.b16 %v287
    %v1480 = vunpack.c.h.b16 %v287
    %v1481 = vunpack.c.l.b16 %v288
    %v1482 = vunpack.c.h.b16 %v288
    %v1483 = vunpack.c.l.b16 %v289
    %v1484 = vunpack.c.h.b16 %v289
    %v1485 = vunpack.c.l.b16 %v290
    %v1486 = vunpack.c.h.b16 %v290
    %v1487 = vunpack.c.l.b16 %v291
    %v1488 = vunpack.c.h.b16 %v291
    %v1489 = vunpack.c.l.b16 %v292
    %v1490 = vunpack.c.h.b16 %v292
    %v1491 = vunpack.c.l.b16 %v293
    %v1492 = vunpack.c.h.b16 %v293
    %v1493 = vunpack.c.l.b16 %v294
    %v1494 = vunpack.c.h.b16 %v294
    %v1495 = vunpack.c.l.b16 %v295
    %v1496 = vunpack.c.h.b16 %v295
    %v1497 = vunpack.c.l.b16 %v296
    %v1498 = vunpack.c.h.b16 %v296
    %v1499 = vunpack.c.l.b16 %v297
    %v1500 = vunpack.c.h.b16 %v297
    %v1501 = vunpack.c.l.b16 %v298
    %v1502 = vunpack.c.h.b16 %v298
    %v1503 = vunpack.c.l.b16 %v299
    %v1504 = vunpack.c.h.b16 %v299
    %v1505 = vunpack.c.l.b16 %v300
    %v1506 = vunpack.c.h.b16 %v300
    %v1507 = vunpack.c.l.b16 %v301
    %v1508 = vunpack.c.h.b16 %v301
    %v1509 = vunpack.c.l.b16 %v302
    %v1510 = vunpack.c.h.b16 %v302
    %v1511 = vunpack.c.l.b16 %v303
    %v1512 = vunpack.c.h.b16 %v303
    %v1513 = vunpack.c.l.b16 %v304
    %v1514 = vunpack.c.h.b16 %v304
    %v1515 = vunpack.c.l.b16 %v305
    %v1516 = vunpack.c.h.b16 %v305
    %v1517 = vunpack.c.l.b16 %v306
    %v1518 = vunpack.c.h.b16 %v306
    %v1519 = vunpack.c.l.b16 %v307
    %v1520 = vunpack.c.h.b16 %v307
    %v1521 = vunpack.c.l.b16 %v308
    %v1522 = vunpack.c.h.b16 %v308
    %v1523 = vunpack.c.l.b16 %v309
    %v1524 = vunpack.c.h.b16 %v309
    %v1525 = vunpack.c.l.b16 %v310
    %v1526 = vunpack.c.h.b16 %v310
    %v1527 = vunpack.c.l.b16 %v311
    %v1528 = vunpack.c.h.b16 %v311
    %v1529 = vunpack.c.l.b16 %v312
    %v1530 = vunpack.c.h.b16 %v312
    %v1531 = vunpack.c.l.b16 %v313
    %v1532 = vunpack.c.h.b16 %v313
    %v1533 = vunpack.c.l.b16 %v314
    %v1534 = vunpack.c.h.b16 %v314
    %v1535 = vunpack.c.l.b16 %v315
    %v1536 = vunpack.c.h.b16 %v315
    %v1537 = vunpack.c.l.b16 %v316
    %v1538 = vunpack.c.h.b16 %v316
    %v1539 = vunpack.c.l.b16 %v317
    %v1540 = vunpack.c.h.b16 %v317
    %v1541 = vunpack.c.l.b16 %v318
    %v1542 = vunpack.c.h.b16 %v318
    %v1543 = vunpack.c.l.b16 %v319
    %v1544 = vunpack.c.h.b16 %v319
    %v1545 = vunpack.c.l.b16 %v320
    %v1546 = vunpack.c.h.b16 %v320
    %v1547 = vunpack.c.l.b16 %v321
    %v1548 = vunpack.c.h.b16 %v321
    %v1549 = vunpack.c.l.b16 %v322
    %v1550 = vunpack.c.h.b16 %v322
    %v1551 = vunpack.c.l.b16 %v323
    %v1552 = vunpack.c.h.b16 %v323
    %v1553 = vunpack.c.l.b16 %v324
    %v1554 = vunpack.c.h.b16 %v324
    %v1555 = vunpack.c.l.b16 %v325
    %v1556 = vunpack.c.h.b16 %v325
    %v1557 = vunpack.c.l.b16 %v326
    %v1558 = vunpack.c.h.b16 %v326
    %v1559 = vunpack.c.l.b16 %v327
    %v1560 = vunpack.c.h.b16 %v327
    %v1561 = vunpack.c.l.b16 %v328
    %v1562 = vunpack.c.h.b16 %v328
    %v1563 = vunpack.c.l.b16 %v329
    %v1564 = vunpack.c.h.b16 %v329
    %v1565 = vunpack.c.l.b16 %v330
    %v1566 = vunpack.c.h.b16 %v330
    %v1567 = vunpack.c.l.b16 %v331
    %v1568 = vunpack.c.h.b16 %v331
    %v1569 = vunpack.c.l.b16 %v332
    %v1570 = vunpack.c.h.b16 %v332
    %v1571 = vunpack.c.l.b16 %v333
    %v1572 = vunpack.c.h.b16 %v333
    %v1573 = vunpack.c.l.b16 %v334
    %v1574 = vunpack.c.h.b16 %v334
    %v1575 = vunpack.c.l.b16 %v335
    %v1576 = vunpack.c.h.b16 %v335
    %v1577 = vunpack.c.l.b16 %v336
    %v1578 = vunpack.c.h.b16 %v336
    %v1579 = vunpack.c.l.b16 %v337
    %v1580 = vunpack.c.h.b16 %v337
    %v1581 = vunpack.c.l.b16 %v338
    %v1582 = vunpack.c.h.b16 %v338
    %v1583 = vunpack.c.l.b16 %v339
    %v1584 = vunpack.c.h.b16 %v339
    %v1585 = vunpack.c.l.b16 %v340
    %v1586 = vunpack.c.h.b16 %v340
    %v1587 = vunpack.c.l.b16 %v341
    %v1588 = vunpack.c.h.b16 %v341
    %v1589 = vunpack.c.l.b16 %v342
    %v1590 = vunpack.c.h.b16 %v342
    %v1591 = vunpack.c.l.b16 %v343
    %v1592 = vunpack.c.h.b16 %v343
    %v1593 = vunpack.c.l.b16 %v344
    %v1594 = vunpack.c.h.b16 %v344
    %v1595 = vunpack.c.l.b16 %v345
    %v1596 = vunpack.c.h.b16 %v345
    %v1597 = vunpack.c.l.b16 %v346
    %v1598 = vunpack.c.h.b16 %v346
    %v1599 = vunpack.c.l.b16 %v347
    %v1600 = vunpack.c.h.b16 %v347
    %v1601 = vunpack.c.l.b16 %v348
    %v1602 = vunpack.c.h.b16 %v348
    %v1603 = vunpack.c.l.b16 %v349
    %v1604 = vunpack.c.h.b16 %v349
    %v1605 = vunpack.c.l.b16 %v350
    %v1606 = vunpack.c.h.b16 %v350
    %v1607 = vunpack.c.l.b16 %v351
    %v1608 = vunpack.c.h.b16 %v351
    %v1609 = vunpack.c.l.b16 %v352
    %v1610 = vunpack.c.h.b16 %v352
    %v1611 = vunpack.c.l.b16 %v353
    %v1612 = vunpack.c.h.b16 %v353
    %v1613 = vunpack.c.l.b16 %v354
    %v1614 = vunpack.c.h.b16 %v354
    %v1615 = vunpack.c.l.b16 %v355
    %v1616 = vunpack.c.h.b16 %v355
    %v1617 = vunpack.c.l.b16 %v356
    %v1618 = vunpack.c.h.b16 %v356
    %v1619 = vunpack.c.l.b16 %v357
    %v1620 = vunpack.c.h.b16 %v357
    %v1621 = vunpack.c.l.b16 %v358
    %v1622 = vunpack.c.h.b16 %v358
    %v1623 = vunpack.c.l.b16 %v359
    %v1624 = vunpack.c.h.b16 %v359
    %v1625 = vunpack.c.l.b16 %v360
    %v1626 = vunpack.c.h.b16 %v360
    %v1627 = vunpack.c.l.b16 %v361
    %v1628 = vunpack.c.h.b16 %v361
    %v1629 = vunpack.c.l.b16 %v362
    %v1630 = vunpack.c.h.b16 %v362
    %v1631 = vunpack.c.l.b16 %v363
    %v1632 = vunpack.c.h.b16 %v363
    %v1633 = vunpack.c.l.b16 %v364
    %v1634 = vunpack.c.h.b16 %v364
    %v1635 = vunpack.c.l.b16 %v365
    %v1636 = vunpack.c.h.b16 %v365
    %v1637 = vunpack.c.l.b16 %v366
    %v1638 = vunpack.c.h.b16 %v366
    %v1639 = vunpack.c.l.b16 %v367
    %v1640 = vunpack.c.h.b16 %v367
    %v1641 = vunpack.c.l.b16 %v368
    %v1642 = vunpack.c.h.b16 %v368
    %v1643 = vunpack.c.l.b16 %v369
    %v1644 = vunpack.c.h.b16 %v369
    %v1645 = vunpack.c.l.b16 %v370
    %v1646 = vunpack.c.h.b16 %v370
    %v1647 = vunpack.c.l.b16 %v371
    %v1648 = vunpack.c.h.b16 %v371
    %v1649 = vunpack.c.l.b16 %v372
    %v1650 = vunpack.c.h.b16 %v372
    %v1651 = vunpack.c.l.b16 %v373
    %v1652 = vunpack.c.h.b16 %v373
    %v1653 = vunpack.c.l.b16 %v374
    %v1654 = vunpack.c.h.b16 %v374
    %v1655 = vunpack.c.l.b16 %v375
    %v1656 = vunpack.c.h.b16 %v375
    %v1657 = vunpack.c.l.b16 %v376
    %v1658 = vunpack.c.h.b16 %v376
    %v1659 = vunpack.c.l.b16 %v377
    %v1660 = vunpack.c.h.b16 %v377
    %v1661 = vunpack.c.l.b16 %v378
    %v1662 = vunpack.c.h.b16 %v378
    %v1663 = vunpack.c.l.b16 %v379
    %v1664 = vunpack.c.h.b16 %v379
    %v1665 = vunpack.c.l.b16 %v380
    %v1666 = vunpack.c.h.b16 %v380
    %v1667 = vunpack.c.l.b16 %v381
    %v1668 = vunpack.c.h.b16 %v381
    %v1669 = vunpack.c.l.b16 %v382
    %v1670 = vunpack.c.h.b16 %v382
    %v1671 = vunpack.c.l.b16 %v383
    %v1672 = vunpack.c.h.b16 %v383
    %v1673 = vunpack.c.l.b16 %v384
    %v1674 = vunpack.c.h.b16 %v384
    %v1675 = vunpack.c.l.b16 %v385
    %v1676 = vunpack.c.h.b16 %v385
    %v1677 = vunpack.c.l.b16 %v386
    %v1678 = vunpack.c.h.b16 %v386
    %v1679 = vunpack.c.l.b16 %v387
    %v1680 = vunpack.c.h.b16 %v387
    %v1681 = vunpack.c.l.b16 %v388
    %v1682 = vunpack.c.h.b16 %v388
    %v1683 = vunpack.c.l.b16 %v389
    %v1684 = vunpack.c.h.b16 %v389
    %v1685 = vunpack.c.l.b16 %v390
    %v1686 = vunpack.c.h.b16 %v390
    %v1687 = vunpack.c.l.b16 %v391
    %v1688 = vunpack.c.h.b16 %v391
    %v1689 = vunpack.c.l.b16 %v392
    %v1690 = vunpack.c.h.b16 %v392
    %v1691 = vunpack.c.l.b16 %v393
    %v1692 = vunpack.c.h.b16 %v393
    %v1693 = vunpack.c.l.b16 %v394
    %v1694 = vunpack.c.h.b16 %v394
    %v1695 = vunpack.c.l.b16 %v395
    %v1696 = vunpack.c.h.b16 %v395
    %v1697 = vunpack.c.l.b16 %v396
    %v1698 = vunpack.c.h.b16 %v396
    %v1699 = vunpack.c.l.b16 %v397
    %v1700 = vunpack.c.h.b16 %v397
    %v1701 = vunpack.c.l.b16 %v398
    %v1702 = vunpack.c.h.b16 %v398
    %v1703 = vunpack.c.l.b16 %v399
    %v1704 = vunpack.c.h.b16 %v399
    %v1705 = vunpack.c.l.b16 %v400
    %v1706 = vunpack.c.h.b16 %v400
    %v1707 = vunpack.c.l.b16 %v401
    %v1708 = vunpack.c.h.b16 %v401
    %v1709 = vunpack.c.l.b16 %v402
    %v1710 = vunpack.c.h.b16 %v402
    %v1711 = vunpack.c.l.b16 %v403
    %v1712 = vunpack.c.h.b16 %v403
    %v1713 = vunpack.c.l.b16 %v404
    %v1714 = vunpack.c.h.b16 %v404
    %v1715 = vunpack.c.l.b16 %v405
    %v1716 = vunpack.c.h.b16 %v405
    %v1717 = vunpack.c.l.b16 %v406
    %v1718 = vunpack.c.h.b16 %v406
    %v1719 = vunpack.c.l.b16 %v407
    %v1720 = vunpack.c.h.b16 %v407
    %v1721 = vunpack.c.l.b16 %v408
    %v1722 = vunpack.c.h.b16 %v408
    %v1723 = vunpack.c.l.b16 %v409
    %v1724 = vunpack.c.h.b16 %v409
    %v1725 = vunpack.c.l.b16 %v410
    %v1726 = vunpack.c.h.b16 %v410
    %v1727 = vunpack.c.l.b16 %v411
    %v1728 = vunpack.c.h.b16 %v411
    %v1729 = vunpack.c.l.b16 %v412
    %v1730 = vunpack.c.h.b16 %v412
    %v1731 = vunpack.c.l.b16 %v413
    %v1732 = vunpack.c.h.b16 %v413
    %v1733 = vunpack.c.l.b16 %v414
    %v1734 = vunpack.c.h.b16 %v414
    %v1735 = vunpack.c.l.b16 %v415
    %v1736 = vunpack.c.h.b16 %v415
    %v1737 = vunpack.c.l.b16 %v416
    %v1738 = vunpack.c.h.b16 %v416
    %v1739 = vunpack.c.l.b16 %v417
    %v1740 = vunpack.c.h.b16 %v417
    %v1741 = vunpack.c.l.b16 %v418
    %v1742 = vunpack.c.h.b16 %v418
    %v1743 = vunpack.c.l.b16 %v419
    %v1744 = vunpack.c.h.b16 %v419
    %v1745 = vunpack.c.l.b16 %v420
    %v1746 = vunpack.c.h.b16 %v420
    %v1747 = vunpack.c.l.b16 %v421
    %v1748 = vunpack.c.h.b16 %v421
    %v1749 = vunpack.c.l.b16 %v422
    %v1750 = vunpack.c.h.b16 %v422
    %v1751 = vunpack.c.l.b16 %v423
    %v1752 = vunpack.c.h.b16 %v423
    %v1753 = vunpack.c.l.b16 %v424
    %v1754 = vunpack.c.h.b16 %v424
    %v1755 = vunpack.c.l.b16 %v425
    %v1756 = vunpack.c.h.b16 %v425
    %v1757 = vunpack.c.l.b16 %v426
    %v1758 = vunpack.c.h.b16 %v426
    %v1759 = vunpack.c.l.b16 %v427
    %v1760 = vunpack.c.h.b16 %v427
    %v1761 = vunpack.c.l.b16 %v428
    %v1762 = vunpack.c.h.b16 %v428
    %v1763 = vunpack.c.l.b16 %v429
    %v1764 = vunpack.c.h.b16 %v429
    %v1765 = vunpack.c.l.b16 %v430
    %v1766 = vunpack.c.h.b16 %v430
    %v1767 = vunpack.c.l.b16 %v431
    %v1768 = vunpack.c.h.b16 %v431
    %v1769 = vunpack.c.l.b16 %v432
    %v1770 = vunpack.c.h.b16 %v432
    %v1771 = vunpack.c.l.b16 %v433
    %v1772 = vunpack.c.h.b16 %v433
    %v1773 = vunpack.c.l.b16 %v434
    %v1774 = vunpack.c.h.b16 %v434
    %v1775 = vunpack.c.l.b16 %v435
    %v1776 = vunpack.c.h.b16 %v435
    %v1777 = vunpack.c.l.b16 %v436
    %v1778 = vunpack.c.h.b16 %v436
    %v1779 = vunpack.c.l.b16 %v437
    %v1780 = vunpack.c.h.b16 %v437
    %v1781 = vunpack.c.l.b16 %v438
    %v1782 = vunpack.c.h.b16 %v438
    %v1783 = vunpack.c.l.b16 %v439
    %v1784 = vunpack.c.h.b16 %v439
    %v1785 = vunpack.c.l.b16 %v440
    %v1786 = vunpack.c.h.b16 %v440
    %v1787 = vunpack.c.l.b16 %v441
    %v1788 = vunpack.c.h.b16 %v441
    %v1789 = vunpack.c.l.b16 %v442
    %v1790 = vunpack.c.h.b16 %v442
    %v1791 = vunpack.c.l.b16 %v443
    %v1792 = vunpack.c.h.b16 %v443
    %v1793 = vunpack.c.l.b16 %v444
    %v1794 = vunpack.c.h.b16 %v444
    %v1795 = vunpack.c.l.b16 %v445
    %v1796 = vunpack.c.h.b16 %v445
    %v1797 = vunpack.c.l.b16 %v446
    %v1798 = vunpack.c.h.b16 %v446
    %v1799 = vunpack.c.l.b16 %v447
    %v1800 = vunpack.c.h.b16 %v447
    %v1801 = vunpack.c.l.b16 %v448
    %v1802 = vunpack.c.h.b16 %v448
    %v1803 = vunpack.c.l.b16 %v449
    %v1804 = vunpack.c.h.b16 %v449
    %v1805 = vunpack.c.l.b16 %v450
    %v1806 = vunpack.c.h.b16 %v450
    %v1807 = vunpack.c.l.b16 %v451
    %v1808 = vunpack.c.h.b16 %v451
    %v1809 = vunpack.c.l.b16 %v452
    %v1810 = vunpack.c.h.b16 %v452
    %v1811 = vunpack.c.l.b16 %v453
    %v1812 = vunpack.c.h.b16 %v453
    %v1813 = vunpack.c.l.b16 %v454
    %v1814 = vunpack.c.h.b16 %v454
    %v1815 = vunpack.c.l.b16 %v455
    %v1816 = vunpack.c.h.b16 %v455
    %v1817 = vunpack.c.l.b16 %v456
    %v1818 = vunpack.c.h.b16 %v456
    %v1819 = vunpack.c.l.b16 %v457
    %v1820 = vunpack.c.h.b16 %v457
    %v1821 = vunpack.c.l.b16 %v458
    %v1822 = vunpack.c.h.b16 %v458
    %v1823 = vunpack.c.l.b16 %v459
    %v1824 = vunpack.c.h.b16 %v459
    %v1825 = vunpack.c.l.b16 %v460
    %v1826 = vunpack.c.h.b16 %v460
    %v1827 = vunpack.c.l.b16 %v461
    %v1828 = vunpack.c.h.b16 %v461
    %v1829 = vunpack.c.l.b16 %v462
    %v1830 = vunpack.c.h.b16 %v462
    %v1831 = vunpack.c.l.b16 %v463
    %v1832 = vunpack.c.h.b16 %v463
    %v1833 = vunpack.c.l.b16 %v464
    %v1834 = vunpack.c.h.b16 %v464
    %v1835 = vunpack.c.l.b16 %v465
    %v1836 = vunpack.c.h.b16 %v465
    %v1837 = vunpack.c.l.b16 %v466
    %v1838 = vunpack.c.h.b16 %v466
    %v1839 = vunpack.c.l.b16 %v467
    %v1840 = vunpack.c.h.b16 %v467
    %v1841 = vunpack.c.l.b16 %v468
    %v1842 = vunpack.c.h.b16 %v468
    %v1843 = vunpack.c.l.b16 %v469
    %v1844 = vunpack.c.h.b16 %v469
    %v1845 = vunpack.c.l.b16 %v470
    %v1846 = vunpack.c.h.b16 %v470
    %v1847 = vunpack.c.l.b16 %v471
    %v1848 = vunpack.c.h.b16 %v471
    %v1849 = vunpack.c.l.b16 %v472
    %v1850 = vunpack.c.h.b16 %v472
    %v1851 = vunpack.c.l.b16 %v473
    %v1852 = vunpack.c.h.b16 %v473
    %v1853 = vunpack.c.l.b16 %v474
    %v1854 = vunpack.c.h.b16 %v474
    %v1855 = vunpack.c.l.b16 %v475
    %v1856 = vunpack.c.h.b16 %v475
    %v1857 = vunpack.c.l.b16 %v476
    %v1858 = vunpack.c.h.b16 %v476
    %v1859 = vunpack.c.l.b16 %v477
    %v1860 = vunpack.c.h.b16 %v477
    %v1861 = vunpack.c.l.b16 %v478
    %v1862 = vunpack.c.h.b16 %v478
    %v1863 = vunpack.c.l.b16 %v479
    %v1864 = vunpack.c.h.b16 %v479
    %v1865 = vunpack.c.l.b16 %v480
    %v1866 = vunpack.c.h.b16 %v480
    %v1867 = vpack.c.b16 %v975, %v971
    %v1868 = vpack.c.b16 %v976, %v972
    %v1869 = vpack.c.b16 %v977, %v973
    %v1870 = vpack.c.b16 %v978, %v974
    %v1871 = vpack.c.b16 %v983, %v979
    %v1872 = vpack.c.b16 %v984, %v980
    %v1873 = vpack.c.b16 %v985, %v981
    %v1874 = vpack.c.b16 %v986, %v982
    %v1875 = vpack.c.b16 %v991, %v987
    %v1876 = vpack.c.b16 %v992, %v988
    %v1877 = vpack.c.b16 %v993, %v989
    %v1878 = vpack.c.b16 %v994, %v990
    %v1879 = vpack.c.b16 %v999, %v995
    %v1880 = vpack.c.b16 %v1000, %v996
    %v1881 = vpack.c.b16 %v1001, %v997
    %v1882 = vpack.c.b16 %v1002, %v998
    %v1883 = vpack.c.b16 %v1007, %v1003
    %v1884 = vpack.c.b16 %v1008, %v1004
    %v1885 = vpack.c.b16 %v1009, %v1005
    %v1886 = vpack.c.b16 %v1010, %v1006
    %v1887 = vpack.c.b16 %v1015, %v1011
    %v1888 = vpack.c.b16 %v1016, %v1012
    %v1889 = vpack.c.b16 %v1017, %v1013
    %v1890 = vpack.c.b16 %v1018, %v1014
    %v1891 = vpack.c.b16 %v1023, %v1019
    %v1892 = vpack.c.b16 %v1024, %v1020
    %v1893 = vpack.c.b16 %v1025, %v1021
    %v1894 = vpack.c.b16 %v1026, %v1022
    %v1895 = vpack.c.b16 %v1031, %v1027
    %v1896 = vpack.c.b16 %v1032, %v1028
    %v1897 = vpack.c.b16 %v1033, %v1029
    %v1898 = vpack.c.b16 %v1034, %v1030
    %v1899 = vpack.c.b16 %v1039, %v1035
    %v1900 = vpack.c.b16 %v1040, %v1036
    %v1901 = vpack.c.b16 %v1041, %v1037
    %v1902 = vpack.c.b16 %v1042, %v1038
    %v1903 = vpack.c.b16 %v1047, %v1043
    %v1904 = vpack.c.b16 %v1048, %v1044
    %v1905 = vpack.c.b16 %v1049, %v1045
    %v1906 = vpack.c.b16 %v1050, %v1046
    %v1907 = vpack.c.b16 %v1055, %v1051
    %v1908 = vpack.c.b16 %v1056, %v1052
    %v1909 = vpack.c.b16 %v1057, %v1053
    %v1910 = vpack.c.b16 %v1058, %v1054
    %v1911 = vpack.c.b16 %v1063, %v1059
    %v1912 = vpack.c.b16 %v1064, %v1060
    %v1913 = vpack.c.b16 %v1065, %v1061
    %v1914 = vpack.c.b16 %v1066, %v1062
    %v1915 = vpack.c.b16 %v1071, %v1067
    %v1916 = vpack.c.b16 %v1072, %v1068
    %v1917 = vpack.c.b16 %v1073, %v1069
    %v1918 = vpack.c.b16 %v1074, %v1070
    %v1919 = vpack.c.b16 %v1079, %v1075
    %v1920 = vpack.c.b16 %v1080, %v1076
    %v1921 = vpack.c.b16 %v1081, %v1077
    %v1922 = vpack.c.b16 %v1082, %v1078
    %v1923 = vpack.c.b16 %v1087, %v1083
    %v1924 = vpack.c.b16 %v1088, %v1084
    %v1925 = vpack.c.b16 %v1089, %v1085
    %v1926 = vpack.c.b16 %v1090, %v1086
    %v1927 = vpack.c.b16 %v1095, %v1091
    %v1928 = vpack.c.b16 %v1096, %v1092
    %v1929 = vpack.c.b16 %v1097, %v1093
    %v1930 = vpack.c.b16 %v1098, %v1094
    %v1931 = vpack.c.b16 %v1103, %v1099
    %v1932 = vpack.c.b16 %v1104, %v1100
    %v1933 = vpack.c.b16 %v1105, %v1101
    %v1934 = vpack.c.b16 %v1106, %v1102
    %v1935 = vpack.c.b16 %v1111, %v1107
    %v1936 = vpack.c.b16 %v1112, %v1108
    %v1937 = vpack.c.b16 %v1113, %v1109
    %v1938 = vpack.c.b16 %v1114, %v1110
    %v1939 = vpack.c.b16 %v1119, %v1115
    %v1940 = vpack.c.b16 %v1120, %v1116
    %v1941 = vpack.c.b16 %v1121, %v1117
    %v1942 = vpack.c.b16 %v1122, %v1118
    %v1943 = vpack.c.b16 %v1127, %v1123
    %v1944 = vpack.c.b16 %v1128, %v1124
    %v1945 = vpack.c.b16 %v1129, %v1125
    %v1946 = vpack.c.b16 %v1130, %v1126
    %v1947 = vpack.c.b16 %v1135, %v1131
    %v1948 = vpack.c.b16 %v1136, %v1132
    %v1949 = vpack.c.b16 %v1137, %v1133
    %v1950 = vpack.c.b16 %v1138, %v1134
    %v1951 = vpack.c.b16 %v1143, %v1139
    %v1952 = vpack.c.b16 %v1144, %v1140
    %v1953 = vpack.c.b16 %v1145, %v1141
    %v1954 = vpack.c.b16 %v1146, %v1142
    %v1955 = vpack.c.b16 %v1151, %v1147
    %v1956 = vpack.c.b16 %v1152, %v1148
    %v1957 = vpack.c.b16 %v1153, %v1149
    %v1958 = vpack.c.b16 %v1154, %v1150
    %v1959 = vpack.c.b16 %v1159, %v1155
    %v1960 = vpack.c.b16 %v1160, %v1156
    %v1961 = vpack.c.b16 %v1161, %v1157
    %v1962 = vpack.c.b16 %v1162, %v1158
    %v1963 = vpack.c.b16 %v1167, %v1163
    %v1964 = vpack.c.b16 %v1168, %v1164
    %v1965 = vpack.c.b16 %v1169, %v1165
    %v1966 = vpack.c.b16 %v1170, %v1166
    %v1967 = vpack.c.b16 %v1175, %v1171
    %v1968 = vpack.c.b16 %v1176, %v1172
    %v1969 = vpack.c.b16 %v1177, %v1173
    %v1970 = vpack.c.b16 %v1178, %v1174
    %v1971 = vpack.c.b16 %v1183, %v1179
    %v1972 = vpack.c.b16 %v1184, %v1180
    %v1973 = vpack.c.b16 %v1185, %v1181
    %v1974 = vpack.c.b16 %v1186, %v1182
    %v1975 = vpack.c.b16 %v1191, %v1187
    %v1976 = vpack.c.b16 %v1192, %v1188
    %v1977 = vpack.c.b16 %v1193, %v1189
    %v1978 = vpack.c.b16 %v1194, %v1190
    %v1979 = vpack.c.b16 %v1199, %v1195
    %v1980 = vpack.c.b16 %v1200, %v1196
    %v1981 = vpack.c.b16 %v1201, %v1197
    %v1982 = vpack.c.b16 %v1202, %v1198
    %v1983 = vpack.c.b16 %v1207, %v1203
    %v1984 = vpack.c.b16 %v1208, %v1204
    %v1985 = vpack.c.b16 %v1209, %v1205
    %v1986 = vpack.c.b16 %v1210, %v1206
    %v1987 = vpack.c.b16 %v1215, %v1211
    %v1988 = vpack.c.b16 %v1216, %v1212
    %v1989 = vpack.c.b16 %v1217, %v1213
    %v1990 = vpack.c.b16 %v1218, %v1214
    %v1991 = vpack.c.b16 %v1223, %v1219
    %v1992 = vpack.c.b16 %v1224, %v1220
    %v1993 = vpack.c.b16 %v1225, %v1221
    %v1994 = vpack.c.b16 %v1226, %v1222
    %v1995 = vpack.c.b16 %v1231, %v1227
    %v1996 = vpack.c.b16 %v1232, %v1228
    %v1997 = vpack.c.b16 %v1233, %v1229
    %v1998 = vpack.c.b16 %v1234, %v1230
    %v1999 = vpack.c.b16 %v1239, %v1235
    %v2000 = vpack.c.b16 %v1240, %v1236
    %v2001 = vpack.c.b16 %v1241, %v1237
    %v2002 = vpack.c.b16 %v1242, %v1238
    %v2003 = vpack.c.b16 %v1247, %v1243
    %v2004 = vpack.c.b16 %v1248, %v1244
    %v2005 = vpack.c.b16 %v1249, %v1245
    %v2006 = vpack.c.b16 %v1250, %v1246
    %v2007 = vpack.c.b16 %v1255, %v1251
    %v2008 = vpack.c.b16 %v1256, %v1252
    %v2009 = vpack.c.b16 %v1257, %v1253
    %v2010 = vpack.c.b16 %v1258, %v1254
    %v2011 = vpack.c.b16 %v1263, %v1259
    %v2012 = vpack.c.b16 %v1264, %v1260
    %v2013 = vpack.c.b16 %v1265, %v1261
    %v2014 = vpack.c.b16 %v1266, %v1262
    %v2015 = vpack.c.b16 %v1271, %v1267
    %v2016 = vpack.c.b16 %v1272, %v1268
    %v2017 = vpack.c.b16 %v1273, %v1269
    %v2018 = vpack.c.b16 %v1274, %v1270
    %v2019 = vpack.c.b16 %v1279, %v1275
    %v2020 = vpack.c.b16 %v1280, %v1276
    %v2021 = vpack.c.b16 %v1281, %v1277
    %v2022 = vpack.c.b16 %v1282, %v1278
    %v2023 = vpack.c.b16 %v1287, %v1283
    %v2024 = vpack.c.b16 %v1288, %v1284
    %v2025 = vpack.c.b16 %v1289, %v1285
    %v2026 = vpack.c.b16 %v1290, %v1286
    %v2027 = vpack.c.b16 %v1295, %v1291
    %v2028 = vpack.c.b16 %v1296, %v1292
    %v2029 = vpack.c.b16 %v1297, %v1293
    %v2030 = vpack.c.b16 %v1298, %v1294
    %v2031 = vpack.c.b16 %v1303, %v1299
    %v2032 = vpack.c.b16 %v1304, %v1300
    %v2033 = vpack.c.b16 %v1305, %v1301
    %v2034 = vpack.c.b16 %v1306, %v1302
    %v2035 = vpack.c.b16 %v1311, %v1307
    %v2036 = vpack.c.b16 %v1312, %v1308
    %v2037 = vpack.c.b16 %v1313, %v1309
    %v2038 = vpack.c.b16 %v1314, %v1310
    %v2039 = vpack.c.b16 %v1319, %v1315
    %v2040 = vpack.c.b16 %v1320, %v1316
    %v2041 = vpack.c.b16 %v1321, %v1317
    %v2042 = vpack.c.b16 %v1322, %v1318
    %v2043 = vpack.c.b16 %v1327, %v1323
    %v2044 = vpack.c.b16 %v1328, %v1324
    %v2045 = vpack.c.b16 %v1329, %v1325
    %v2046 = vpack.c.b16 %v1330, %v1326
    %v2047 = vpack.c.b16 %v1335, %v1331
    %v2048 = vpack.c.b16 %v1336, %v1332
    %v2049 = vpack.c.b16 %v1337, %v1333
    %v2050 = vpack.c.b16 %v1338, %v1334
    %v2051 = vpack.c.b16 %v1343, %v1339
    %v2052 = vpack.c.b16 %v1344, %v1340
    %v2053 = vpack.c.b16 %v1345, %v1341
    %v2054 = vpack.c.b16 %v1346, %v1342
    %v2055 = vpack.c.b16 %v1351, %v1347
    %v2056 = vpack.c.b16 %v1352, %v1348
    %v2057 = vpack.c.b16 %v1353, %v1349
    %v2058 = vpack.c.b16 %v1354, %v1350
    %v2059 = vpack.c.b16 %v1359, %v1355
    %v2060 = vpack.c.b16 %v1360, %v1356
    %v2061 = vpack.c.b16 %v1361, %v1357
    %v2062 = vpack.c.b16 %v1362, %v1358
    %v2063 = vpack.c.b16 %v1367, %v1363
    %v2064 = vpack.c.b16 %v1368, %v1364
    %v2065 = vpack.c.b16 %v1369, %v1365
    %v2066 = vpack.c.b16 %v1370, %v1366
    %v2067 = vpack.c.b16 %v1375, %v1371
    %v2068 = vpack.c.b16 %v1376, %v1372
    %v2069 = vpack.c.b16 %v1377, %v1373
    %v2070 = vpack.c.b16 %v1378, %v1374
    %v2071 = vpack.c.b16 %v1383, %v1379
    %v2072 = vpack.c.b16 %v1384, %v1380
    %v2073 = vpack.c.b16 %v1385, %v1381
    %v2074 = vpack.c.b16 %v1386, %v1382
    %v2075 = vpack.c.b16 %v1391, %v1387
    %v2076 = vpack.c.b16 %v1392, %v1388
    %v2077 = vpack.c.b16 %v1393, %v1389
    %v2078 = vpack.c.b16 %v1394, %v1390
    %v2079 = vpack.c.b16 %v1399, %v1395
    %v2080 = vpack.c.b16 %v1400, %v1396
    %v2081 = vpack.c.b16 %v1401, %v1397
    %v2082 = vpack.c.b16 %v1402, %v1398
    %v2083 = vpack.c.b16 %v1407, %v1403
    %v2084 = vpack.c.b16 %v1408, %v1404
    %v2085 = vpack.c.b16 %v1409, %v1405
    %v2086 = vpack.c.b16 %v1410, %v1406
    %v2087 = vpack.c.b16 %v1415, %v1411
    %v2088 = vpack.c.b16 %v1416, %v1412
    %v2089 = vpack.c.b16 %v1417, %v1413
    %v2090 = vpack.c.b16 %v1418, %v1414
    %v2091 = vpack.c.b16 %v1423, %v1419
    %v2092 = vpack.c.b16 %v1424, %v1420
    %v2093 = vpack.c.b16 %v1425, %v1421
    %v2094 = vpack.c.b16 %v1426, %v1422
    %v2095 = vpack.c.b16 %v1431, %v1427
    %v2096 = vpack.c.b16 %v1432, %v1428
    %v2097 = vpack.c.b16 %v1433, %v1429
    %v2098 = vpack.c.b16 %v1434, %v1430
    %v2099 = vpack.c.b16 %v1439, %v1435
    %v2100 = vpack.c.b16 %v1440, %v1436
    %v2101 = vpack.c.b16 %v1441, %v1437
    %v2102 = vpack.c.b16 %v1442, %v1438
    %v2103 = vpack.c.b16 %v1447, %v1443
    %v2104 = vpack.c.b16 %v1448, %v1444
    %v2105 = vpack.c.b16 %v1449, %v1445
    %v2106 = vpack.c.b16 %v1450, %v1446
    %v2107 = vpack.c.b16 %v1455, %v1451
    %v2108 = vpack.c.b16 %v1456, %v1452
    %v2109 = vpack.c.b16 %v1457, %v1453
    %v2110 = vpack.c.b16 %v1458, %v1454
    %v2111 = vpack.c.b16 %v1463, %v1459
    %v2112 = vpack.c.b16 %v1464, %v1460
    %v2113 = vpack.c.b16 %v1465, %v1461
    %v2114 = vpack.c.b16 %v1466, %v1462
    %v2115 = vpack.c.b16 %v1471, %v1467
    %v2116 = vpack.c.b16 %v1472, %v1468
    %v2117 = vpack.c.b16 %v1473, %v1469
    %v2118 = vpack.c.b16 %v1474, %v1470
    %v2119 = vpack.c.b16 %v1479, %v1475
    %v2120 = vpack.c.b16 %v1480, %v1476
    %v2121 = vpack.c.b16 %v1481, %v1477
    %v2122 = vpack.c.b16 %v1482, %v1478
    %v2123 = vpack.c.b16 %v1487, %v1483
    %v2124 = vpack.c.b16 %v1488, %v1484
    %v2125 = vpack.c.b16 %v1489, %v1485
    %v2126 = vpack.c.b16 %v1490, %v1486
    %v2127 = vpack.c.b16 %v1495, %v1491
    %v2128 = vpack.c.b16 %v1496, %v1492
    %v2129 = vpack.c.b16 %v1497, %v1493
    %v2130 = vpack.c.b16 %v1498, %v1494
    %v2131 = vpack.c.b16 %v1503, %v1499
    %v2132 = vpack.c.b16 %v1504, %v1500
    %v2133 = vpack.c.b16 %v1505, %v1501
    %v2134 = vpack.c.b16 %v1506, %v1502
    %v2135 = vpack.c.b16 %v1511, %v1507
    %v2136 = vpack.c.b16 %v1512, %v1508
    %v2137 = vpack.c.b16 %v1513, %v1509
    %v2138 = vpack.c.b16 %v1514, %v1510
    %v2139 = vpack.c.b16 %v1519, %v1515
    %v2140 = vpack.c.b16 %v1520, %v1516
    %v2141 = vpack.c.b16 %v1521, %v1517
    %v2142 = vpack.c.b16 %v1522, %v1518
    %v2143 = vpack.c.b16 %v1527, %v1523
    %v2144 = vpack.c.b16 %v1528, %v1524
    %v2145 = vpack.c.b16 %v1529, %v1525
    %v2146 = vpack.c.b16 %v1530, %v1526
    %v2147 = vpack.c.b16 %v1535, %v1531
    %v2148 = vpack.c.b16 %v1536, %v1532
    %v2149 = vpack.c.b16 %v1537, %v1533
    %v2150 = vpack.c.b16 %v1538, %v1534
    %v2151 = vpack.c.b16 %v1543, %v1539
    %v2152 = vpack.c.b16 %v1544, %v1540
    %v2153 = vpack.c.b16 %v1545, %v1541
    %v2154 = vpack.c.b16 %v1546, %v1542
    %v2155 = vpack.c.b16 %v1551, %v1547
    %v2156 = vpack.c.b16 %v1552, %v1548
    %v2157 = vpack.c.b16 %v1553, %v1549
    %v2158 = vpack.c.b16 %v1554, %v1550
    %v2159 = vpack.c.b16 %v1559, %v1555
    %v2160 = vpack.c.b16 %v1560, %v1556
    %v2161 = vpack.c.b16 %v1561, %v1557
    %v2162 = vpack.c.b16 %v1562, %v1558
    %v2163 = vpack.c.b16 %v1567, %v1563
    %v2164 = vpack.c.b16 %v1568, %v1564
    %v2165 = vpack.c.b16 %v1569, %v1565
    %v2166 = vpack.c.b16 %v1570, %v1566
    %v2167 = vpack.c.b16 %v1575, %v1571
    %v2168 = vpack.c.b16 %v1576, %v1572
    %v2169 = vpack.c.b16 %v1577, %v1573
    %v2170 = vpack.c.b16 %v1578, %v1574
    %v2171 = vpack.c.b16 %v1583, %v1579
    %v2172 = vpack.c.b16 %v1584, %v1580
    %v2173 = vpack.c.b16 %v1585, %v1581
    %v2174 = vpack.c.b16 %v1586, %v1582
    %v2175 = vpack.c.b16 %v1591, %v1587
    %v2176 = vpack.c.b16 %v1592, %v1588
    %v2177 = vpack.c.b16 %v1593, %v1589
    %v2178 = vpack.c.b16 %v1594, %v1590
    %v2179 = vpack.c.b16 %v1599, %v1595
    %v2180 = vpack.c.b16 %v1600, %v1596
    %v2181 = vpack.c.b16 %v1601, %v1597
    %v2182 = vpack.c.b16 %v1602, %v1598
    %v2183 = vpack.c.b16 %v1607, %v1603
    %v2184 = vpack.c.b16 %v1608, %v1604
    %v2185 = vpack.c.b16 %v1609, %v1605
    %v2186 = vpack.c.b16 %v1610, %v1606
    %v2187 = vpack.c.b16 %v1615, %v1611
    %v2188 = vpack.c.b16 %v1616, %v1612
    %v2189 = vpack.c.b16 %v1617, %v1613
    %v2190 = vpack.c.b16 %v1618, %v1614
    %v2191 = vpack.c.b16 %v1623, %v1619
    %v2192 = vpack.c.b16 %v1624, %v1620
    %v2193 = vpack.c.b16 %v1625, %v1621
    %v2194 = vpack.c.b16 %v1626, %v1622
    %v2195 = vpack.c.b16 %v1631, %v1627
    %v2196 = vpack.c.b16 %v1632, %v1628
    %v2197 = vpack.c.b16 %v1633, %v1629
    %v2198 = vpack.c.b16 %v1634, %v1630
    %v2199 = vpack.c.b16 %v1639, %v1635
    %v2200 = vpack.c.b16 %v1640, %v1636
    %v2201 = vpack.c.b16 %v1641, %v1637
    %v2202 = vpack.c.b16 %v1642, %v1638
    %v2203 = vpack.c.b16 %v1647, %v1643
    %v2204 = vpack.c.b16 %v1648, %v1644
    %v2205 = vpack.c.b16 %v1649, %v1645
    %v2206 = vpack.c.b16 %v1650, %v1646
    %v2207 = vpack.c.b16 %v1655, %v1651
    %v2208 = vpack.c.b16 %v1656, %v1652
    %v2209 = vpack.c.b16 %v1657, %v1653
    %v2210 = vpack.c.b16 %v1658, %v1654
    %v2211 = vpack.c.b16 %v1663, %v1659
    %v2212 = vpack.c.b16 %v1664, %v1660
    %v2213 = vpack.c.b16 %v1665, %v1661
    %v2214 = vpack.c.b16 %v1666, %v1662
    %v2215 = vpack.c.b16 %v1671, %v1667
    %v2216 = vpack.c.b16 %v1672, %v1668
    %v2217 = vpack.c.b16 %v1673, %v1669
    %v2218 = vpack.c.b16 %v1674, %v1670
    %v2219 = vpack.c.b16 %v1679, %v1675
    %v2220 = vpack.c.b16 %v1680, %v1676
    %v2221 = vpack.c.b16 %v1681, %v1677
    %v2222 = vpack.c.b16 %v1682, %v1678
    %v2223 = vpack.c.b16 %v1687, %v1683
    %v2224 = vpack.c.b16 %v1688, %v1684
    %v2225 = vpack.c.b16 %v1689, %v1685
    %v2226 = vpack.c.b16 %v1690, %v1686
    %v2227 = vpack.c.b16 %v1695, %v1691
    %v2228 = vpack.c.b16 %v1696, %v1692
    %v2229 = vpack.c.b16 %v1697, %v1693
    %v2230 = vpack.c.b16 %v1698, %v1694
    %v2231 = vpack.c.b16 %v1703, %v1699
    %v2232 = vpack.c.b16 %v1704, %v1700
    %v2233 = vpack.c.b16 %v1705, %v1701
    %v2234 = vpack.c.b16 %v1706, %v1702
    %v2235 = vpack.c.b16 %v1711, %v1707
    %v2236 = vpack.c.b16 %v1712, %v1708
    %v2237 = vpack.c.b16 %v1713, %v1709
    %v2238 = vpack.c.b16 %v1714, %v1710
    %v2239 = vpack.c.b16 %v1719, %v1715
    %v2240 = vpack.c.b16 %v1720, %v1716
    %v2241 = vpack.c.b16 %v1721, %v1717
    %v2242 = vpack.c.b16 %v1722, %v1718
    %v2243 = vpack.c.b16 %v1727, %v1723
    %v2244 = vpack.c.b16 %v1728, %v1724
    %v2245 = vpack.c.b16 %v1729, %v1725
    %v2246 = vpack.c.b16 %v1730, %v1726
    %v2247 = vpack.c.b16 %v1735, %v1731
    %v2248 = vpack.c.b16 %v1736, %v1732
    %v2249 = vpack.c.b16 %v1737, %v1733
    %v2250 = vpack.c.b16 %v1738, %v1734
    %v2251 = vpack.c.b16 %v1743, %v1739
    %v2252 = vpack.c.b16 %v1744, %v1740
    %v2253 = vpack.c.b16 %v1745, %v1741
    %v2254 = vpack.c.b16 %v1746, %v1742
    %v2255 = vpack.c.b16 %v1751, %v1747
    %v2256 = vpack.c.b16 %v1752, %v1748
    %v2257 = vpack.c.b16 %v1753, %v1749
    %v2258 = vpack.c.b16 %v1754, %v1750
    %v2259 = vpack.c.b16 %v1759, %v1755
    %v2260 = vpack.c.b16 %v1760, %v1756
    %v2261 = vpack.c.b16 %v1761, %v1757
    %v2262 = vpack.c.b16 %v1762, %v1758
    %v2263 = vpack.c.b16 %v1767, %v1763
    %v2264 = vpack.c.b16 %v1768, %v1764
    %v2265 = vpack.c.b16 %v1769, %v1765
    %v2266 = vpack.c.b16 %v1770, %v1766
    %v2267 = vpack.c.b16 %v1775, %v1771
    %v2268 = vpack.c.b16 %v1776, %v1772
    %v2269 = vpack.c.b16 %v1777, %v1773
    %v2270 = vpack.c.b16 %v1778, %v1774
    %v2271 = vpack.c.b16 %v1783, %v1779
    %v2272 = vpack.c.b16 %v1784, %v1780
    %v2273 = vpack.c.b16 %v1785, %v1781
    %v2274 = vpack.c.b16 %v1786, %v1782
    %v2275 = vpack.c.b16 %v1791, %v1787
    %v2276 = vpack.c.b16 %v1792, %v1788
    %v2277 = vpack.c.b16 %v1793, %v1789
    %v2278 = vpack.c.b16 %v1794, %v1790
    %v2279 = vpack.c.b16 %v1799, %v1795
    %v2280 = vpack.c.b16 %v1800, %v1796
    %v2281 = vpack.c.b16 %v1801, %v1797
    %v2282 = vpack.c.b16 %v1802, %v1798
    %v2283 = vpack.c.b16 %v1807, %v1803
    %v2284 = vpack.c.b16 %v1808, %v1804
    %v2285 = vpack.c.b16 %v1809, %v1805
    %v2286 = vpack.c.b16 %v1810, %v1806
    %v2287 = vpack.c.b16 %v1815, %v1811
    %v2288 = vpack.c.b16 %v1816, %v1812
    %v2289 = vpack.c.b16 %v1817, %v1813
    %v2290 = vpack.c.b16 %v1818, %v1814
    %v2291 = vpack.c.b16 %v1823, %v1819
    %v2292 = vpack.c.b16 %v1824, %v1820
    %v2293 = vpack.c.b16 %v1825, %v1821
    %v2294 = vpack.c.b16 %v1826, %v1822
    %v2295 = vpack.c.b16 %v1831, %v1827
    %v2296 = vpack.c.b16 %v1832, %v1828
    %v2297 = vpack.c.b16 %v1833, %v1829
    %v2298 = vpack.c.b16 %v1834, %v1830
    %v2299 = vpack.c.b16 %v1839, %v1835
    %v2300 = vpack.c.b16 %v1840, %v1836
    %v2301 = vpack.c.b16 %v1841, %v1837
    %v2302 = vpack.c.b16 %v1842, %v1838
    %v2303 = vpack.c.b16 %v1847, %v1843
    %v2304 = vpack.c.b16 %v1848, %v1844
    %v2305 = vpack.c.b16 %v1849, %v1845
    %v2306 = vpack.c.b16 %v1850, %v1846
    %v2307 = vpack.c.b16 %v1855, %v1851
    %v2308 = vpack.c.b16 %v1856, %v1852
    %v2309 = vpack.c.b16 %v1857, %v1853
    %v2310 = vpack.c.b16 %v1858, %v1854
    %v2311 = vpack.c.b16 %v1863, %v1859
    %v2312 = vpack.c.b16 %v1864, %v1860
    %v2313 = vpack.c.b16 %v1865, %v1861
    %v2314 = vpack.c.b16 %v1866, %v1862
    %2763 = vmatpush.bf16.msra.mxu0 %v1895
    %2764 = vmatpush.bf16.msra.mxu0 %v1891
    %2765 = vmatpush.bf16.msra.mxu0 %v1887
    %2766 = vmatpush.bf16.msra.mxu0 %v1883
    %2767 = vmatpush.bf16.msra.mxu0 %v1879
    %2768 = vmatpush.bf16.msra.mxu0 %v1875
    %2769 = vmatpush.bf16.msra.mxu0 %v1871
    %2770 = vmatpush.bf16.msra.mxu0 %v1867
    %2771 = vmatmul.bf16.gmra.mxu0 %v493
    %v2772 = vpop.f32.mrf.mxu0
    %v2773 = vadd.f32 %v483, %v2772
    %v2774 = vpop.f32.mrf.mxu0
    %2775 = vdwg.mxu0
    %2776 = vmatpush.bf16.msra.mxu0 %v1927
    %2777 = vmatpush.bf16.msra.mxu0 %v1923
    %2778 = vmatpush.bf16.msra.mxu0 %v1919
    %2779 = vmatpush.bf16.msra.mxu0 %v1915
    %2780 = vmatpush.bf16.msra.mxu0 %v1911
    %2781 = vmatpush.bf16.msra.mxu0 %v1907
    %2782 = vmatpush.bf16.msra.mxu0 %v1903
    %2783 = vmatpush.bf16.msra.mxu0 %v1899
    %2784 = vmatmul.bf16.gmra.mxu0 %v494
    %v2785 = vpop.f32.mrf.mxu0
    %v2786 = vadd.f32 %v2773, %v2785
    %v2787 = vpop.f32.mrf.mxu0
    %2788 = vdwg.mxu0
    %2789 = vmatpush.bf16.msra.mxu0 %v1959
    %2790 = vmatpush.bf16.msra.mxu0 %v1955
    %2791 = vmatpush.bf16.msra.mxu0 %v1951
    %2792 = vmatpush.bf16.msra.mxu0 %v1947
    %2793 = vmatpush.bf16.msra.mxu0 %v1943
    %2794 = vmatpush.bf16.msra.mxu0 %v1939
    %2795 = vmatpush.bf16.msra.mxu0 %v1935
    %2796 = vmatpush.bf16.msra.mxu0 %v1931
    %2797 = vmatmul.bf16.gmra.mxu0 %v495
    %v2798 = vpop.f32.mrf.mxu0
    %v2799 = vadd.f32 %v2786, %v2798
    %v2800 = vpop.f32.mrf.mxu0
    %2801 = vdwg.mxu0
    %2802 = vmatpush.bf16.msra.mxu0 %v1991
    %2803 = vmatpush.bf16.msra.mxu0 %v1987
    %2804 = vmatpush.bf16.msra.mxu0 %v1983
    %2805 = vmatpush.bf16.msra.mxu0 %v1979
    %2806 = vmatpush.bf16.msra.mxu0 %v1975
    %2807 = vmatpush.bf16.msra.mxu0 %v1971
    %2808 = vmatpush.bf16.msra.mxu0 %v1967
    %2809 = vmatpush.bf16.msra.mxu0 %v1963
    %2810 = vmatmul.bf16.gmra.mxu0 %v496
    %v2811 = vpop.f32.mrf.mxu0
    %v2812 = vadd.f32 %v2799, %v2811
    %v2813 = vpop.f32.mrf.mxu0
    %2814 = vdwg.mxu0
    %2815 = vmatpush.bf16.msra.mxu0 %v2023
    %2816 = vmatpush.bf16.msra.mxu0 %v2019
    %2817 = vmatpush.bf16.msra.mxu0 %v2015
    %2818 = vmatpush.bf16.msra.mxu0 %v2011
    %2819 = vmatpush.bf16.msra.mxu0 %v2007
    %2820 = vmatpush.bf16.msra.mxu0 %v2003
    %2821 = vmatpush.bf16.msra.mxu0 %v1999
    %2822 = vmatpush.bf16.msra.mxu0 %v1995
    %2823 = vmatmul.bf16.gmra.mxu0 %v497
    %v2824 = vpop.f32.mrf.mxu0
    %v2825 = vadd.f32 %v2812, %v2824
    %v2826 = vpop.f32.mrf.mxu0
    %2827 = vdwg.mxu0
    %2828 = vmatpush.bf16.msra.mxu0 %v2055
    %2829 = vmatpush.bf16.msra.mxu0 %v2051
    %2830 = vmatpush.bf16.msra.mxu0 %v2047
    %2831 = vmatpush.bf16.msra.mxu0 %v2043
    %2832 = vmatpush.bf16.msra.mxu0 %v2039
    %2833 = vmatpush.bf16.msra.mxu0 %v2035
    %2834 = vmatpush.bf16.msra.mxu0 %v2031
    %2835 = vmatpush.bf16.msra.mxu0 %v2027
    %2836 = vmatmul.bf16.gmra.mxu0 %v498
    %v2837 = vpop.f32.mrf.mxu0
    %v2838 = vadd.f32 %v2825, %v2837
    %v2839 = vpop.f32.mrf.mxu0
    %2840 = vdwg.mxu0
    %2841 = vmatpush.bf16.msra.mxu0 %v2087
    %2842 = vmatpush.bf16.msra.mxu0 %v2083
    %2843 = vmatpush.bf16.msra.mxu0 %v2079
    %2844 = vmatpush.bf16.msra.mxu0 %v2075
    %2845 = vmatpush.bf16.msra.mxu0 %v2071
    %2846 = vmatpush.bf16.msra.mxu0 %v2067
    %2847 = vmatpush.bf16.msra.mxu0 %v2063
    %2848 = vmatpush.bf16.msra.mxu0 %v2059
    %2849 = vmatmul.bf16.gmra.mxu0 %v499
    %v2850 = vpop.f32.mrf.mxu0
    %v2851 = vadd.f32 %v2838, %v2850
    %v2852 = vpop.f32.mrf.mxu0
    %2853 = vdwg.mxu0
    %2854 = vmatpush.bf16.msra.mxu0 %v2119
    %2855 = vmatpush.bf16.msra.mxu0 %v2115
    %2856 = vmatpush.bf16.msra.mxu0 %v2111
    %2857 = vmatpush.bf16.msra.mxu0 %v2107
    %2858 = vmatpush.bf16.msra.mxu0 %v2103
    %2859 = vmatpush.bf16.msra.mxu0 %v2099
    %2860 = vmatpush.bf16.msra.mxu0 %v2095
    %2861 = vmatpush.bf16.msra.mxu0 %v2091
    %2862 = vmatmul.bf16.gmra.mxu0 %v500
    %v2863 = vpop.f32.mrf.mxu0
    %v2864 = vadd.f32 %v2851, %v2863
    %v2865 = vpop.f32.mrf.mxu0
    %2866 = vdwg.mxu0
    %2867 = vmatpush.bf16.msra.mxu0 %v2151
    %2868 = vmatpush.bf16.msra.mxu0 %v2147
    %2869 = vmatpush.bf16.msra.mxu0 %v2143
    %2870 = vmatpush.bf16.msra.mxu0 %v2139
    %2871 = vmatpush.bf16.msra.mxu0 %v2135
    %2872 = vmatpush.bf16.msra.mxu0 %v2131
    %2873 = vmatpush.bf16.msra.mxu0 %v2127
    %2874 = vmatpush.bf16.msra.mxu0 %v2123
    %2875 = vmatmul.bf16.gmra.mxu0 %v503
    %v2876 = vpop.f32.mrf.mxu0
    %v2877 = vadd.f32 %v2864, %v2876
    %v2878 = vpop.f32.mrf.mxu0
    %2879 = vdwg.mxu0
    %2880 = vmatpush.bf16.msra.mxu0 %v2183
    %2881 = vmatpush.bf16.msra.mxu0 %v2179
    %2882 = vmatpush.bf16.msra.mxu0 %v2175
    %2883 = vmatpush.bf16.msra.mxu0 %v2171
    %2884 = vmatpush.bf16.msra.mxu0 %v2167
    %2885 = vmatpush.bf16.msra.mxu0 %v2163
    %2886 = vmatpush.bf16.msra.mxu0 %v2159
    %2887 = vmatpush.bf16.msra.mxu0 %v2155
    %2888 = vmatmul.bf16.gmra.mxu0 %v504
    %v2889 = vpop.f32.mrf.mxu0
    %v2890 = vadd.f32 %v2877, %v2889
    %v2891 = vpop.f32.mrf.mxu0
    %2892 = vdwg.mxu0
    %2893 = vmatpush.bf16.msra.mxu0 %v2215
    %2894 = vmatpush.bf16.msra.mxu0 %v2211
    %2895 = vmatpush.bf16.msra.mxu0 %v2207
    %2896 = vmatpush.bf16.msra.mxu0 %v2203
    %2897 = vmatpush.bf16.msra.mxu0 %v2199
    %2898 = vmatpush.bf16.msra.mxu0 %v2195
    %2899 = vmatpush.bf16.msra.mxu0 %v2191
    %2900 = vmatpush.bf16.msra.mxu0 %v2187
    %2901 = vmatmul.bf16.gmra.mxu0 %v505
    %v2902 = vpop.f32.mrf.mxu0
    %v2903 = vadd.f32 %v2890, %v2902
    %v2904 = vpop.f32.mrf.mxu0
    %2905 = vdwg.mxu0
    %2906 = vmatpush.bf16.msra.mxu0 %v2247
    %2907 = vmatpush.bf16.msra.mxu0 %v2243
    %2908 = vmatpush.bf16.msra.mxu0 %v2239
    %2909 = vmatpush.bf16.msra.mxu0 %v2235
    %2910 = vmatpush.bf16.msra.mxu0 %v2231
    %2911 = vmatpush.bf16.msra.mxu0 %v2227
    %2912 = vmatpush.bf16.msra.mxu0 %v2223
    %2913 = vmatpush.bf16.msra.mxu0 %v2219
    %2914 = vmatmul.bf16.gmra.mxu0 %v506
    %v2915 = vpop.f32.mrf.mxu0
    %v2916 = vadd.f32 %v2903, %v2915
    %v2917 = vpop.f32.mrf.mxu0
    %2918 = vdwg.mxu0
    %2919 = vmatpush.bf16.msra.mxu0 %v2279
    %2920 = vmatpush.bf16.msra.mxu0 %v2275
    %2921 = vmatpush.bf16.msra.mxu0 %v2271
    %2922 = vmatpush.bf16.msra.mxu0 %v2267
    %2923 = vmatpush.bf16.msra.mxu0 %v2263
    %2924 = vmatpush.bf16.msra.mxu0 %v2259
    %2925 = vmatpush.bf16.msra.mxu0 %v2255
    %2926 = vmatpush.bf16.msra.mxu0 %v2251
    %2927 = vmatmul.bf16.gmra.mxu0 %v507
    %v2928 = vpop.f32.mrf.mxu0
    %v2929 = vadd.f32 %v2916, %v2928
    %v2930 = vpop.f32.mrf.mxu0
    %2931 = vdwg.mxu0
    %2932 = vmatpush.bf16.msra.mxu0 %v2311
    %2933 = vmatpush.bf16.msra.mxu0 %v2307
    %2934 = vmatpush.bf16.msra.mxu0 %v2303
    %2935 = vmatpush.bf16.msra.mxu0 %v2299
    %2936 = vmatpush.bf16.msra.mxu0 %v2295
    %2937 = vmatpush.bf16.msra.mxu0 %v2291
    %2938 = vmatpush.bf16.msra.mxu0 %v2287
    %2939 = vmatpush.bf16.msra.mxu0 %v2283
    %2940 = vmatmul.bf16.gmra.mxu0 %v508
    %v2941 = vpop.f32.mrf.mxu0
    %v2942 = vadd.f32 %v2929, %v2941
    %v2943 = vpop.f32.mrf.mxu0
    %2944 = vdwg.mxu0
    %2945 = vmatpush.bf16.msra.mxu0 %v1896
    %2946 = vmatpush.bf16.msra.mxu0 %v1892
    %2947 = vmatpush.bf16.msra.mxu0 %v1888
    %2948 = vmatpush.bf16.msra.mxu0 %v1884
    %2949 = vmatpush.bf16.msra.mxu0 %v1880
    %2950 = vmatpush.bf16.msra.mxu0 %v1876
    %2951 = vmatpush.bf16.msra.mxu0 %v1872
    %2952 = vmatpush.bf16.msra.mxu0 %v1868
    %2953 = vmatmul.bf16.gmra.mxu0 %v493
    %v2954 = vpop.f32.mrf.mxu0
    %v2955 = vadd.f32 %v484, %v2954
    %v2956 = vpop.f32.mrf.mxu0
    %2957 = vdwg.mxu0
    %2958 = vmatpush.bf16.msra.mxu0 %v1928
    %2959 = vmatpush.bf16.msra.mxu0 %v1924
    %2960 = vmatpush.bf16.msra.mxu0 %v1920
    %2961 = vmatpush.bf16.msra.mxu0 %v1916
    %2962 = vmatpush.bf16.msra.mxu0 %v1912
    %2963 = vmatpush.bf16.msra.mxu0 %v1908
    %2964 = vmatpush.bf16.msra.mxu0 %v1904
    %2965 = vmatpush.bf16.msra.mxu0 %v1900
    %2966 = vmatmul.bf16.gmra.mxu0 %v494
    %v2967 = vpop.f32.mrf.mxu0
    %v2968 = vadd.f32 %v2955, %v2967
    %v2969 = vpop.f32.mrf.mxu0
    %2970 = vdwg.mxu0
    %2971 = vmatpush.bf16.msra.mxu0 %v1960
    %2972 = vmatpush.bf16.msra.mxu0 %v1956
    %2973 = vmatpush.bf16.msra.mxu0 %v1952
    %2974 = vmatpush.bf16.msra.mxu0 %v1948
    %2975 = vmatpush.bf16.msra.mxu0 %v1944
    %2976 = vmatpush.bf16.msra.mxu0 %v1940
    %2977 = vmatpush.bf16.msra.mxu0 %v1936
    %2978 = vmatpush.bf16.msra.mxu0 %v1932
    %2979 = vmatmul.bf16.gmra.mxu0 %v495
    %v2980 = vpop.f32.mrf.mxu0
    %v2981 = vadd.f32 %v2968, %v2980
    %v2982 = vpop.f32.mrf.mxu0
    %2983 = vdwg.mxu0
    %2984 = vmatpush.bf16.msra.mxu0 %v1992
    %2985 = vmatpush.bf16.msra.mxu0 %v1988
    %2986 = vmatpush.bf16.msra.mxu0 %v1984
    %2987 = vmatpush.bf16.msra.mxu0 %v1980
    %2988 = vmatpush.bf16.msra.mxu0 %v1976
    %2989 = vmatpush.bf16.msra.mxu0 %v1972
    %2990 = vmatpush.bf16.msra.mxu0 %v1968
    %2991 = vmatpush.bf16.msra.mxu0 %v1964
    %2992 = vmatmul.bf16.gmra.mxu0 %v496
    %v2993 = vpop.f32.mrf.mxu0
    %v2994 = vadd.f32 %v2981, %v2993
    %v2995 = vpop.f32.mrf.mxu0
    %2996 = vdwg.mxu0
    %2997 = vmatpush.bf16.msra.mxu0 %v2024
    %2998 = vmatpush.bf16.msra.mxu0 %v2020
    %2999 = vmatpush.bf16.msra.mxu0 %v2016
    %3000 = vmatpush.bf16.msra.mxu0 %v2012
    %3001 = vmatpush.bf16.msra.mxu0 %v2008
    %3002 = vmatpush.bf16.msra.mxu0 %v2004
    %3003 = vmatpush.bf16.msra.mxu0 %v2000
    %3004 = vmatpush.bf16.msra.mxu0 %v1996
    %3005 = vmatmul.bf16.gmra.mxu0 %v497
    %v3006 = vpop.f32.mrf.mxu0
    %v3007 = vadd.f32 %v2994, %v3006
    %v3008 = vpop.f32.mrf.mxu0
    %3009 = vdwg.mxu0
    %3010 = vmatpush.bf16.msra.mxu0 %v2056
    %3011 = vmatpush.bf16.msra.mxu0 %v2052
    %3012 = vmatpush.bf16.msra.mxu0 %v2048
    %3013 = vmatpush.bf16.msra.mxu0 %v2044
    %3014 = vmatpush.bf16.msra.mxu0 %v2040
    %3015 = vmatpush.bf16.msra.mxu0 %v2036
    %3016 = vmatpush.bf16.msra.mxu0 %v2032
    %3017 = vmatpush.bf16.msra.mxu0 %v2028
    %3018 = vmatmul.bf16.gmra.mxu0 %v498
    %v3019 = vpop.f32.mrf.mxu0
    %v3020 = vadd.f32 %v3007, %v3019
    %v3021 = vpop.f32.mrf.mxu0
    %3022 = vdwg.mxu0
    %3023 = vmatpush.bf16.msra.mxu0 %v2088
    %3024 = vmatpush.bf16.msra.mxu0 %v2084
    %3025 = vmatpush.bf16.msra.mxu0 %v2080
    %3026 = vmatpush.bf16.msra.mxu0 %v2076
    %3027 = vmatpush.bf16.msra.mxu0 %v2072
    %3028 = vmatpush.bf16.msra.mxu0 %v2068
    %3029 = vmatpush.bf16.msra.mxu0 %v2064
    %3030 = vmatpush.bf16.msra.mxu0 %v2060
    %3031 = vmatmul.bf16.gmra.mxu0 %v499
    %v3032 = vpop.f32.mrf.mxu0
    %v3033 = vadd.f32 %v3020, %v3032
    %v3034 = vpop.f32.mrf.mxu0
    %3035 = vdwg.mxu0
    %3036 = vmatpush.bf16.msra.mxu0 %v2120
    %3037 = vmatpush.bf16.msra.mxu0 %v2116
    %3038 = vmatpush.bf16.msra.mxu0 %v2112
    %3039 = vmatpush.bf16.msra.mxu0 %v2108
    %3040 = vmatpush.bf16.msra.mxu0 %v2104
    %3041 = vmatpush.bf16.msra.mxu0 %v2100
    %3042 = vmatpush.bf16.msra.mxu0 %v2096
    %3043 = vmatpush.bf16.msra.mxu0 %v2092
    %3044 = vmatmul.bf16.gmra.mxu0 %v500
    %v3045 = vpop.f32.mrf.mxu0
    %v3046 = vadd.f32 %v3033, %v3045
    %v3047 = vpop.f32.mrf.mxu0
    %3048 = vdwg.mxu0
    %3049 = vmatpush.bf16.msra.mxu0 %v2152
    %3050 = vmatpush.bf16.msra.mxu0 %v2148
    %3051 = vmatpush.bf16.msra.mxu0 %v2144
    %3052 = vmatpush.bf16.msra.mxu0 %v2140
    %3053 = vmatpush.bf16.msra.mxu0 %v2136
    %3054 = vmatpush.bf16.msra.mxu0 %v2132
    %3055 = vmatpush.bf16.msra.mxu0 %v2128
    %3056 = vmatpush.bf16.msra.mxu0 %v2124
    %3057 = vmatmul.bf16.gmra.mxu0 %v503
    %v3058 = vpop.f32.mrf.mxu0
    %v3059 = vadd.f32 %v3046, %v3058
    %v3060 = vpop.f32.mrf.mxu0
    %3061 = vdwg.mxu0
    %3062 = vmatpush.bf16.msra.mxu0 %v2184
    %3063 = vmatpush.bf16.msra.mxu0 %v2180
    %3064 = vmatpush.bf16.msra.mxu0 %v2176
    %3065 = vmatpush.bf16.msra.mxu0 %v2172
    %3066 = vmatpush.bf16.msra.mxu0 %v2168
    %3067 = vmatpush.bf16.msra.mxu0 %v2164
    %3068 = vmatpush.bf16.msra.mxu0 %v2160
    %3069 = vmatpush.bf16.msra.mxu0 %v2156
    %3070 = vmatmul.bf16.gmra.mxu0 %v504
    %v3071 = vpop.f32.mrf.mxu0
    %v3072 = vadd.f32 %v3059, %v3071
    %v3073 = vpop.f32.mrf.mxu0
    %3074 = vdwg.mxu0
    %3075 = vmatpush.bf16.msra.mxu0 %v2216
    %3076 = vmatpush.bf16.msra.mxu0 %v2212
    %3077 = vmatpush.bf16.msra.mxu0 %v2208
    %3078 = vmatpush.bf16.msra.mxu0 %v2204
    %3079 = vmatpush.bf16.msra.mxu0 %v2200
    %3080 = vmatpush.bf16.msra.mxu0 %v2196
    %3081 = vmatpush.bf16.msra.mxu0 %v2192
    %3082 = vmatpush.bf16.msra.mxu0 %v2188
    %3083 = vmatmul.bf16.gmra.mxu0 %v505
    %v3084 = vpop.f32.mrf.mxu0
    %v3085 = vadd.f32 %v3072, %v3084
    %v3086 = vpop.f32.mrf.mxu0
    %3087 = vdwg.mxu0
    %3088 = vmatpush.bf16.msra.mxu0 %v2248
    %3089 = vmatpush.bf16.msra.mxu0 %v2244
    %3090 = vmatpush.bf16.msra.mxu0 %v2240
    %3091 = vmatpush.bf16.msra.mxu0 %v2236
    %3092 = vmatpush.bf16.msra.mxu0 %v2232
    %3093 = vmatpush.bf16.msra.mxu0 %v2228
    %3094 = vmatpush.bf16.msra.mxu0 %v2224
    %3095 = vmatpush.bf16.msra.mxu0 %v2220
    %3096 = vmatmul.bf16.gmra.mxu0 %v506
    %v3097 = vpop.f32.mrf.mxu0
    %v3098 = vadd.f32 %v3085, %v3097
    %v3099 = vpop.f32.mrf.mxu0
    %3100 = vdwg.mxu0
    %3101 = vmatpush.bf16.msra.mxu0 %v2280
    %3102 = vmatpush.bf16.msra.mxu0 %v2276
    %3103 = vmatpush.bf16.msra.mxu0 %v2272
    %3104 = vmatpush.bf16.msra.mxu0 %v2268
    %3105 = vmatpush.bf16.msra.mxu0 %v2264
    %3106 = vmatpush.bf16.msra.mxu0 %v2260
    %3107 = vmatpush.bf16.msra.mxu0 %v2256
    %3108 = vmatpush.bf16.msra.mxu0 %v2252
    %3109 = vmatmul.bf16.gmra.mxu0 %v507
    %v3110 = vpop.f32.mrf.mxu0
    %v3111 = vadd.f32 %v3098, %v3110
    %v3112 = vpop.f32.mrf.mxu0
    %3113 = vdwg.mxu0
    %3114 = vmatpush.bf16.msra.mxu0 %v2312
    %3115 = vmatpush.bf16.msra.mxu0 %v2308
    %3116 = vmatpush.bf16.msra.mxu0 %v2304
    %3117 = vmatpush.bf16.msra.mxu0 %v2300
    %3118 = vmatpush.bf16.msra.mxu0 %v2296
    %3119 = vmatpush.bf16.msra.mxu0 %v2292
    %3120 = vmatpush.bf16.msra.mxu0 %v2288
    %3121 = vmatpush.bf16.msra.mxu0 %v2284
    %3122 = vmatmul.bf16.gmra.mxu0 %v508
    %v3123 = vpop.f32.mrf.mxu0
    %v3124 = vadd.f32 %v3111, %v3123
    %v3125 = vpop.f32.mrf.mxu0
    %3126 = vdwg.mxu0
    %3127 = vmatpush.bf16.msra.mxu0 %v1897
    %3128 = vmatpush.bf16.msra.mxu0 %v1893
    %3129 = vmatpush.bf16.msra.mxu0 %v1889
    %3130 = vmatpush.bf16.msra.mxu0 %v1885
    %3131 = vmatpush.bf16.msra.mxu0 %v1881
    %3132 = vmatpush.bf16.msra.mxu0 %v1877
    %3133 = vmatpush.bf16.msra.mxu0 %v1873
    %3134 = vmatpush.bf16.msra.mxu0 %v1869
    %3135 = vmatmul.bf16.gmra.mxu0 %v493
    %v3136 = vpop.f32.mrf.mxu0
    %v3137 = vadd.f32 %v485, %v3136
    %v3138 = vpop.f32.mrf.mxu0
    %3139 = vdwg.mxu0
    %3140 = vmatpush.bf16.msra.mxu0 %v1929
    %3141 = vmatpush.bf16.msra.mxu0 %v1925
    %3142 = vmatpush.bf16.msra.mxu0 %v1921
    %3143 = vmatpush.bf16.msra.mxu0 %v1917
    %3144 = vmatpush.bf16.msra.mxu0 %v1913
    %3145 = vmatpush.bf16.msra.mxu0 %v1909
    %3146 = vmatpush.bf16.msra.mxu0 %v1905
    %3147 = vmatpush.bf16.msra.mxu0 %v1901
    %3148 = vmatmul.bf16.gmra.mxu0 %v494
    %v3149 = vpop.f32.mrf.mxu0
    %v3150 = vadd.f32 %v3137, %v3149
    %v3151 = vpop.f32.mrf.mxu0
    %3152 = vdwg.mxu0
    %3153 = vmatpush.bf16.msra.mxu0 %v1961
    %3154 = vmatpush.bf16.msra.mxu0 %v1957
    %3155 = vmatpush.bf16.msra.mxu0 %v1953
    %3156 = vmatpush.bf16.msra.mxu0 %v1949
    %3157 = vmatpush.bf16.msra.mxu0 %v1945
    %3158 = vmatpush.bf16.msra.mxu0 %v1941
    %3159 = vmatpush.bf16.msra.mxu0 %v1937
    %3160 = vmatpush.bf16.msra.mxu0 %v1933
    %3161 = vmatmul.bf16.gmra.mxu0 %v495
    %v3162 = vpop.f32.mrf.mxu0
    %v3163 = vadd.f32 %v3150, %v3162
    %v3164 = vpop.f32.mrf.mxu0
    %3165 = vdwg.mxu0
    %3166 = vmatpush.bf16.msra.mxu0 %v1993
    %3167 = vmatpush.bf16.msra.mxu0 %v1989
    %3168 = vmatpush.bf16.msra.mxu0 %v1985
    %3169 = vmatpush.bf16.msra.mxu0 %v1981
    %3170 = vmatpush.bf16.msra.mxu0 %v1977
    %3171 = vmatpush.bf16.msra.mxu0 %v1973
    %3172 = vmatpush.bf16.msra.mxu0 %v1969
    %3173 = vmatpush.bf16.msra.mxu0 %v1965
    %3174 = vmatmul.bf16.gmra.mxu0 %v496
    %v3175 = vpop.f32.mrf.mxu0
    %v3176 = vadd.f32 %v3163, %v3175
    %v3177 = vpop.f32.mrf.mxu0
    %3178 = vdwg.mxu0
    %3179 = vmatpush.bf16.msra.mxu0 %v2025
    %3180 = vmatpush.bf16.msra.mxu0 %v2021
    %3181 = vmatpush.bf16.msra.mxu0 %v2017
    %3182 = vmatpush.bf16.msra.mxu0 %v2013
    %3183 = vmatpush.bf16.msra.mxu0 %v2009
    %3184 = vmatpush.bf16.msra.mxu0 %v2005
    %3185 = vmatpush.bf16.msra.mxu0 %v2001
    %3186 = vmatpush.bf16.msra.mxu0 %v1997
    %3187 = vmatmul.bf16.gmra.mxu0 %v497
    %v3188 = vpop.f32.mrf.mxu0
    %v3189 = vadd.f32 %v3176, %v3188
    %v3190 = vpop.f32.mrf.mxu0
    %3191 = vdwg.mxu0
    %3192 = vmatpush.bf16.msra.mxu0 %v2057
    %3193 = vmatpush.bf16.msra.mxu0 %v2053
    %3194 = vmatpush.bf16.msra.mxu0 %v2049
    %3195 = vmatpush.bf16.msra.mxu0 %v2045
    %3196 = vmatpush.bf16.msra.mxu0 %v2041
    %3197 = vmatpush.bf16.msra.mxu0 %v2037
    %3198 = vmatpush.bf16.msra.mxu0 %v2033
    %3199 = vmatpush.bf16.msra.mxu0 %v2029
    %3200 = vmatmul.bf16.gmra.mxu0 %v498
    %v3201 = vpop.f32.mrf.mxu0
    %v3202 = vadd.f32 %v3189, %v3201
    %v3203 = vpop.f32.mrf.mxu0
    %3204 = vdwg.mxu0
    %3205 = vmatpush.bf16.msra.mxu0 %v2089
    %3206 = vmatpush.bf16.msra.mxu0 %v2085
    %3207 = vmatpush.bf16.msra.mxu0 %v2081
    %3208 = vmatpush.bf16.msra.mxu0 %v2077
    %3209 = vmatpush.bf16.msra.mxu0 %v2073
    %3210 = vmatpush.bf16.msra.mxu0 %v2069
    %3211 = vmatpush.bf16.msra.mxu0 %v2065
    %3212 = vmatpush.bf16.msra.mxu0 %v2061
    %3213 = vmatmul.bf16.gmra.mxu0 %v499
    %v3214 = vpop.f32.mrf.mxu0
    %v3215 = vadd.f32 %v3202, %v3214
    %v3216 = vpop.f32.mrf.mxu0
    %3217 = vdwg.mxu0
    %3218 = vmatpush.bf16.msra.mxu0 %v2121
    %3219 = vmatpush.bf16.msra.mxu0 %v2117
    %3220 = vmatpush.bf16.msra.mxu0 %v2113
    %3221 = vmatpush.bf16.msra.mxu0 %v2109
    %3222 = vmatpush.bf16.msra.mxu0 %v2105
    %3223 = vmatpush.bf16.msra.mxu0 %v2101
    %3224 = vmatpush.bf16.msra.mxu0 %v2097
    %3225 = vmatpush.bf16.msra.mxu0 %v2093
    %3226 = vmatmul.bf16.gmra.mxu0 %v500
    %v3227 = vpop.f32.mrf.mxu0
    %v3228 = vadd.f32 %v3215, %v3227
    %v3229 = vpop.f32.mrf.mxu0
    %3230 = vdwg.mxu0
    %3231 = vmatpush.bf16.msra.mxu0 %v2153
    %3232 = vmatpush.bf16.msra.mxu0 %v2149
    %3233 = vmatpush.bf16.msra.mxu0 %v2145
    %3234 = vmatpush.bf16.msra.mxu0 %v2141
    %3235 = vmatpush.bf16.msra.mxu0 %v2137
    %3236 = vmatpush.bf16.msra.mxu0 %v2133
    %3237 = vmatpush.bf16.msra.mxu0 %v2129
    %3238 = vmatpush.bf16.msra.mxu0 %v2125
    %3239 = vmatmul.bf16.gmra.mxu0 %v503
    %v3240 = vpop.f32.mrf.mxu0
    %v3241 = vadd.f32 %v3228, %v3240
    %v3242 = vpop.f32.mrf.mxu0
    %3243 = vdwg.mxu0
    %3244 = vmatpush.bf16.msra.mxu0 %v2185
    %3245 = vmatpush.bf16.msra.mxu0 %v2181
    %3246 = vmatpush.bf16.msra.mxu0 %v2177
    %3247 = vmatpush.bf16.msra.mxu0 %v2173
    %3248 = vmatpush.bf16.msra.mxu0 %v2169
    %3249 = vmatpush.bf16.msra.mxu0 %v2165
    %3250 = vmatpush.bf16.msra.mxu0 %v2161
    %3251 = vmatpush.bf16.msra.mxu0 %v2157
    %3252 = vmatmul.bf16.gmra.mxu0 %v504
    %v3253 = vpop.f32.mrf.mxu0
    %v3254 = vadd.f32 %v3241, %v3253
    %v3255 = vpop.f32.mrf.mxu0
    %3256 = vdwg.mxu0
    %3257 = vmatpush.bf16.msra.mxu0 %v2217
    %3258 = vmatpush.bf16.msra.mxu0 %v2213
    %3259 = vmatpush.bf16.msra.mxu0 %v2209
    %3260 = vmatpush.bf16.msra.mxu0 %v2205
    %3261 = vmatpush.bf16.msra.mxu0 %v2201
    %3262 = vmatpush.bf16.msra.mxu0 %v2197
    %3263 = vmatpush.bf16.msra.mxu0 %v2193
    %3264 = vmatpush.bf16.msra.mxu0 %v2189
    %3265 = vmatmul.bf16.gmra.mxu0 %v505
    %v3266 = vpop.f32.mrf.mxu0
    %v3267 = vadd.f32 %v3254, %v3266
    %v3268 = vpop.f32.mrf.mxu0
    %3269 = vdwg.mxu0
    %3270 = vmatpush.bf16.msra.mxu0 %v2249
    %3271 = vmatpush.bf16.msra.mxu0 %v2245
    %3272 = vmatpush.bf16.msra.mxu0 %v2241
    %3273 = vmatpush.bf16.msra.mxu0 %v2237
    %3274 = vmatpush.bf16.msra.mxu0 %v2233
    %3275 = vmatpush.bf16.msra.mxu0 %v2229
    %3276 = vmatpush.bf16.msra.mxu0 %v2225
    %3277 = vmatpush.bf16.msra.mxu0 %v2221
    %3278 = vmatmul.bf16.gmra.mxu0 %v506
    %v3279 = vpop.f32.mrf.mxu0
    %v3280 = vadd.f32 %v3267, %v3279
    %v3281 = vpop.f32.mrf.mxu0
    %3282 = vdwg.mxu0
    %3283 = vmatpush.bf16.msra.mxu0 %v2281
    %3284 = vmatpush.bf16.msra.mxu0 %v2277
    %3285 = vmatpush.bf16.msra.mxu0 %v2273
    %3286 = vmatpush.bf16.msra.mxu0 %v2269
    %3287 = vmatpush.bf16.msra.mxu0 %v2265
    %3288 = vmatpush.bf16.msra.mxu0 %v2261
    %3289 = vmatpush.bf16.msra.mxu0 %v2257
    %3290 = vmatpush.bf16.msra.mxu0 %v2253
    %3291 = vmatmul.bf16.gmra.mxu0 %v507
    %v3292 = vpop.f32.mrf.mxu0
    %v3293 = vadd.f32 %v3280, %v3292
    %v3294 = vpop.f32.mrf.mxu0
    %3295 = vdwg.mxu0
    %3296 = vmatpush.bf16.msra.mxu0 %v2313
    %3297 = vmatpush.bf16.msra.mxu0 %v2309
    %3298 = vmatpush.bf16.msra.mxu0 %v2305
    %3299 = vmatpush.bf16.msra.mxu0 %v2301
    %3300 = vmatpush.bf16.msra.mxu0 %v2297
    %3301 = vmatpush.bf16.msra.mxu0 %v2293
    %3302 = vmatpush.bf16.msra.mxu0 %v2289
    %3303 = vmatpush.bf16.msra.mxu0 %v2285
    %3304 = vmatmul.bf16.gmra.mxu0 %v508
    %v3305 = vpop.f32.mrf.mxu0
    %v3306 = vadd.f32 %v3293, %v3305
    %v3307 = vpop.f32.mrf.mxu0
    %3308 = vdwg.mxu0
    %3309 = vmatpush.bf16.msra.mxu0 %v1898
    %3310 = vmatpush.bf16.msra.mxu0 %v1894
    %3311 = vmatpush.bf16.msra.mxu0 %v1890
    %3312 = vmatpush.bf16.msra.mxu0 %v1886
    %3313 = vmatpush.bf16.msra.mxu0 %v1882
    %3314 = vmatpush.bf16.msra.mxu0 %v1878
    %3315 = vmatpush.bf16.msra.mxu0 %v1874
    %3316 = vmatpush.bf16.msra.mxu0 %v1870
    %3317 = vmatmul.bf16.gmra.mxu0 %v493
    %v3318 = vpop.f32.mrf.mxu0
    %v3319 = vadd.f32 %v486, %v3318
    %v3320 = vpop.f32.mrf.mxu0
    %3321 = vdwg.mxu0
    %3322 = vmatpush.bf16.msra.mxu0 %v1930
    %3323 = vmatpush.bf16.msra.mxu0 %v1926
    %3324 = vmatpush.bf16.msra.mxu0 %v1922
    %3325 = vmatpush.bf16.msra.mxu0 %v1918
    %3326 = vmatpush.bf16.msra.mxu0 %v1914
    %3327 = vmatpush.bf16.msra.mxu0 %v1910
    %3328 = vmatpush.bf16.msra.mxu0 %v1906
    %3329 = vmatpush.bf16.msra.mxu0 %v1902
    %3330 = vmatmul.bf16.gmra.mxu0 %v494
    %v3331 = vpop.f32.mrf.mxu0
    %v3332 = vadd.f32 %v3319, %v3331
    %v3333 = vpop.f32.mrf.mxu0
    %3334 = vdwg.mxu0
    %3335 = vmatpush.bf16.msra.mxu0 %v1962
    %3336 = vmatpush.bf16.msra.mxu0 %v1958
    %3337 = vmatpush.bf16.msra.mxu0 %v1954
    %3338 = vmatpush.bf16.msra.mxu0 %v1950
    %3339 = vmatpush.bf16.msra.mxu0 %v1946
    %3340 = vmatpush.bf16.msra.mxu0 %v1942
    %3341 = vmatpush.bf16.msra.mxu0 %v1938
    %3342 = vmatpush.bf16.msra.mxu0 %v1934
    %3343 = vmatmul.bf16.gmra.mxu0 %v495
    %v3344 = vpop.f32.mrf.mxu0
    %v3345 = vadd.f32 %v3332, %v3344
    %v3346 = vpop.f32.mrf.mxu0
    %3347 = vdwg.mxu0
    %3348 = vmatpush.bf16.msra.mxu0 %v1994
    %3349 = vmatpush.bf16.msra.mxu0 %v1990
    %3350 = vmatpush.bf16.msra.mxu0 %v1986
    %3351 = vmatpush.bf16.msra.mxu0 %v1982
    %3352 = vmatpush.bf16.msra.mxu0 %v1978
    %3353 = vmatpush.bf16.msra.mxu0 %v1974
    %3354 = vmatpush.bf16.msra.mxu0 %v1970
    %3355 = vmatpush.bf16.msra.mxu0 %v1966
    %3356 = vmatmul.bf16.gmra.mxu0 %v496
    %v3357 = vpop.f32.mrf.mxu0
    %v3358 = vadd.f32 %v3345, %v3357
    %v3359 = vpop.f32.mrf.mxu0
    %3360 = vdwg.mxu0
    %3361 = vmatpush.bf16.msra.mxu0 %v2026
    %3362 = vmatpush.bf16.msra.mxu0 %v2022
    %3363 = vmatpush.bf16.msra.mxu0 %v2018
    %3364 = vmatpush.bf16.msra.mxu0 %v2014
    %3365 = vmatpush.bf16.msra.mxu0 %v2010
    %3366 = vmatpush.bf16.msra.mxu0 %v2006
    %3367 = vmatpush.bf16.msra.mxu0 %v2002
    %3368 = vmatpush.bf16.msra.mxu0 %v1998
    %3369 = vmatmul.bf16.gmra.mxu0 %v497
    %v3370 = vpop.f32.mrf.mxu0
    %v3371 = vadd.f32 %v3358, %v3370
    %v3372 = vpop.f32.mrf.mxu0
    %3373 = vdwg.mxu0
    %3374 = vmatpush.bf16.msra.mxu0 %v2058
    %3375 = vmatpush.bf16.msra.mxu0 %v2054
    %3376 = vmatpush.bf16.msra.mxu0 %v2050
    %3377 = vmatpush.bf16.msra.mxu0 %v2046
    %3378 = vmatpush.bf16.msra.mxu0 %v2042
    %3379 = vmatpush.bf16.msra.mxu0 %v2038
    %3380 = vmatpush.bf16.msra.mxu0 %v2034
    %3381 = vmatpush.bf16.msra.mxu0 %v2030
    %3382 = vmatmul.bf16.gmra.mxu0 %v498
    %v3383 = vpop.f32.mrf.mxu0
    %v3384 = vadd.f32 %v3371, %v3383
    %v3385 = vpop.f32.mrf.mxu0
    %3386 = vdwg.mxu0
    %3387 = vmatpush.bf16.msra.mxu0 %v2090
    %3388 = vmatpush.bf16.msra.mxu0 %v2086
    %3389 = vmatpush.bf16.msra.mxu0 %v2082
    %3390 = vmatpush.bf16.msra.mxu0 %v2078
    %3391 = vmatpush.bf16.msra.mxu0 %v2074
    %3392 = vmatpush.bf16.msra.mxu0 %v2070
    %3393 = vmatpush.bf16.msra.mxu0 %v2066
    %3394 = vmatpush.bf16.msra.mxu0 %v2062
    %3395 = vmatmul.bf16.gmra.mxu0 %v499
    %v3396 = vpop.f32.mrf.mxu0
    %v3397 = vadd.f32 %v3384, %v3396
    %v3398 = vpop.f32.mrf.mxu0
    %3399 = vdwg.mxu0
    %3400 = vmatpush.bf16.msra.mxu0 %v2122
    %3401 = vmatpush.bf16.msra.mxu0 %v2118
    %3402 = vmatpush.bf16.msra.mxu0 %v2114
    %3403 = vmatpush.bf16.msra.mxu0 %v2110
    %3404 = vmatpush.bf16.msra.mxu0 %v2106
    %3405 = vmatpush.bf16.msra.mxu0 %v2102
    %3406 = vmatpush.bf16.msra.mxu0 %v2098
    %3407 = vmatpush.bf16.msra.mxu0 %v2094
    %3408 = vmatmul.bf16.gmra.mxu0 %v500
    %v3409 = vpop.f32.mrf.mxu0
    %v3410 = vadd.f32 %v3397, %v3409
    %v3411 = vpop.f32.mrf.mxu0
    %3412 = vdwg.mxu0
    %3413 = vmatpush.bf16.msra.mxu0 %v2154
    %3414 = vmatpush.bf16.msra.mxu0 %v2150
    %3415 = vmatpush.bf16.msra.mxu0 %v2146
    %3416 = vmatpush.bf16.msra.mxu0 %v2142
    %3417 = vmatpush.bf16.msra.mxu0 %v2138
    %3418 = vmatpush.bf16.msra.mxu0 %v2134
    %3419 = vmatpush.bf16.msra.mxu0 %v2130
    %3420 = vmatpush.bf16.msra.mxu0 %v2126
    %3421 = vmatmul.bf16.gmra.mxu0 %v503
    %v3422 = vpop.f32.mrf.mxu0
    %v3423 = vadd.f32 %v3410, %v3422
    %v3424 = vpop.f32.mrf.mxu0
    %3425 = vdwg.mxu0
    %3426 = vmatpush.bf16.msra.mxu0 %v2186
    %3427 = vmatpush.bf16.msra.mxu0 %v2182
    %3428 = vmatpush.bf16.msra.mxu0 %v2178
    %3429 = vmatpush.bf16.msra.mxu0 %v2174
    %3430 = vmatpush.bf16.msra.mxu0 %v2170
    %3431 = vmatpush.bf16.msra.mxu0 %v2166
    %3432 = vmatpush.bf16.msra.mxu0 %v2162
    %3433 = vmatpush.bf16.msra.mxu0 %v2158
    %3434 = vmatmul.bf16.gmra.mxu0 %v504
    %v3435 = vpop.f32.mrf.mxu0
    %v3436 = vadd.f32 %v3423, %v3435
    %v3437 = vpop.f32.mrf.mxu0
    %3438 = vdwg.mxu0
    %3439 = vmatpush.bf16.msra.mxu0 %v2218
    %3440 = vmatpush.bf16.msra.mxu0 %v2214
    %3441 = vmatpush.bf16.msra.mxu0 %v2210
    %3442 = vmatpush.bf16.msra.mxu0 %v2206
    %3443 = vmatpush.bf16.msra.mxu0 %v2202
    %3444 = vmatpush.bf16.msra.mxu0 %v2198
    %3445 = vmatpush.bf16.msra.mxu0 %v2194
    %3446 = vmatpush.bf16.msra.mxu0 %v2190
    %3447 = vmatmul.bf16.gmra.mxu0 %v505
    %v3448 = vpop.f32.mrf.mxu0
    %v3449 = vadd.f32 %v3436, %v3448
    %v3450 = vpop.f32.mrf.mxu0
    %3451 = vdwg.mxu0
    %3452 = vmatpush.bf16.msra.mxu0 %v2250
    %3453 = vmatpush.bf16.msra.mxu0 %v2246
    %3454 = vmatpush.bf16.msra.mxu0 %v2242
    %3455 = vmatpush.bf16.msra.mxu0 %v2238
    %3456 = vmatpush.bf16.msra.mxu0 %v2234
    %3457 = vmatpush.bf16.msra.mxu0 %v2230
    %3458 = vmatpush.bf16.msra.mxu0 %v2226
    %3459 = vmatpush.bf16.msra.mxu0 %v2222
    %3460 = vmatmul.bf16.gmra.mxu0 %v506
    %v3461 = vpop.f32.mrf.mxu0
    %v3462 = vadd.f32 %v3449, %v3461
    %v3463 = vpop.f32.mrf.mxu0
    %3464 = vdwg.mxu0
    %3465 = vmatpush.bf16.msra.mxu0 %v2282
    %3466 = vmatpush.bf16.msra.mxu0 %v2278
    %3467 = vmatpush.bf16.msra.mxu0 %v2274
    %3468 = vmatpush.bf16.msra.mxu0 %v2270
    %3469 = vmatpush.bf16.msra.mxu0 %v2266
    %3470 = vmatpush.bf16.msra.mxu0 %v2262
    %3471 = vmatpush.bf16.msra.mxu0 %v2258
    %3472 = vmatpush.bf16.msra.mxu0 %v2254
    %3473 = vmatmul.bf16.gmra.mxu0 %v507
    %v3474 = vpop.f32.mrf.mxu0
    %v3475 = vadd.f32 %v3462, %v3474
    %v3476 = vpop.f32.mrf.mxu0
    %3477 = vdwg.mxu0
    %3478 = vmatpush.bf16.msra.mxu0 %v2314
    %3479 = vmatpush.bf16.msra.mxu0 %v2310
    %3480 = vmatpush.bf16.msra.mxu0 %v2306
    %3481 = vmatpush.bf16.msra.mxu0 %v2302
    %3482 = vmatpush.bf16.msra.mxu0 %v2298
    %3483 = vmatpush.bf16.msra.mxu0 %v2294
    %3484 = vmatpush.bf16.msra.mxu0 %v2290
    %3485 = vmatpush.bf16.msra.mxu0 %v2286
    %3486 = vmatmul.bf16.gmra.mxu0 %v508
    %v3487 = vpop.f32.mrf.mxu0
    %v3488 = vadd.f32 %v3475, %v3487
    %v3489 = vpop.f32.mrf.mxu0
    %3490 = vdwg.mxu0
    %v3491 = vmax.f32 %v2942, 0.0
    %v3492 = vmax.f32 %v3124, 0.0
    %v3493 = vmax.f32 %v3306, 0.0
    %v3494 = vmax.f32 %v3488, 0.0
    %v3495 = vpack.c.bf16 %v3491, %v3491
    %v3496 = vpack.c.bf16 %v3492, %v3492
    %v3497 = vpack.c.bf16 %v3493, %v3493
    %v3498 = vpack.c.bf16 %v3494, %v3494
    %v3499 = vld [vmem:[%s3] sm:$0xf]
    %v3500 = vld [vmem:[%s3 + $0x4] sm:$0xf]
    %v3501 = vld [vmem:[%s3 + $0x8] sm:$0xf]
    %v3502 = vld [vmem:[%s3 + $0xc] sm:$0xf]
    %v3503 = vld [vmem:[%s3 + $0x10] sm:$0xf]
    %v3504 = vld [vmem:[%s3 + $0x14] sm:$0xf]
    %v3505 = vld [vmem:[%s3 + $0x18] sm:$0xf]
    %v3506 = vld [vmem:[%s3 + $0x1c] sm:$0xf]
    %v3507 = vld [vmem:[%s3 + $0x20] sm:$0xf]
    %v3508 = vld [vmem:[%s3 + $0x24] sm:$0xf]
    %v3509 = vld [vmem:[%s3 + $0x28] sm:$0xf]
    %v3510 = vld [vmem:[%s3 + $0x2c] sm:$0xf]
    %v3511 = vld [vmem:[%s3 + $0x30] sm:$0xf]
    %v3512 = vld [vmem:[%s3 + $0x34] sm:$0xf]
    %v3513 = vld [vmem:[%s3 + $0x38] sm:$0xf]
    %v3514 = vld [vmem:[%s3 + $0x3c] sm:$0xf]
    %v3515 = vld [vmem:[%s3 + $0x40] sm:$0xf]
    %v3516 = vld [vmem:[%s3 + $0x44] sm:$0xf]
    %v3517 = vld [vmem:[%s3 + $0x48] sm:$0xf]
    %v3518 = vld [vmem:[%s3 + $0x4c] sm:$0xf]
    %v3519 = vld [vmem:[%s3 + $0x50] sm:$0xf]
    %v3520 = vld [vmem:[%s3 + $0x54] sm:$0xf]
    %v3521 = vld [vmem:[%s3 + $0x58] sm:$0xf]
    %v3522 = vld [vmem:[%s3 + $0x5c] sm:$0xf]
    %v3523 = vld [vmem:[%s3 + $0x60] sm:$0xf]
    %v3524 = vld [vmem:[%s3 + $0x64] sm:$0xf]
    %v3525 = vld [vmem:[%s3 + $0x68] sm:$0xf]
    %v3526 = vld [vmem:[%s3 + $0x6c] sm:$0xf]
    %v3527 = vld [vmem:[%s3 + $0x70] sm:$0xf]
    %v3528 = vld [vmem:[%s3 + $0x74] sm:$0xf]
    %v3529 = vld [vmem:[%s3 + $0x78] sm:$0xf]
    %v3530 = vld [vmem:[%s3 + $0x7c] sm:$0xf]
    %v3531 = vld [vmem:[%s4] sm:$0x1]
    %v3533 = vperm.slane %v3531, 0
    %v3567 = vunpack.c.l.b16 %v3499
    %v3568 = vunpack.c.l.b16 %v3500
    %v3569 = vunpack.c.l.b16 %v3501
    %v3570 = vunpack.c.l.b16 %v3502
    %v3571 = vunpack.c.l.b16 %v3503
    %v3572 = vunpack.c.l.b16 %v3504
    %v3573 = vunpack.c.l.b16 %v3505
    %v3574 = vunpack.c.l.b16 %v3506
    %v3575 = vunpack.c.l.b16 %v3507
    %v3576 = vunpack.c.l.b16 %v3508
    %v3577 = vunpack.c.l.b16 %v3509
    %v3578 = vunpack.c.l.b16 %v3510
    %v3579 = vunpack.c.l.b16 %v3511
    %v3580 = vunpack.c.l.b16 %v3512
    %v3581 = vunpack.c.l.b16 %v3513
    %v3582 = vunpack.c.l.b16 %v3514
    %v3583 = vunpack.c.l.b16 %v3515
    %v3584 = vunpack.c.l.b16 %v3516
    %v3585 = vunpack.c.l.b16 %v3517
    %v3586 = vunpack.c.l.b16 %v3518
    %v3587 = vunpack.c.l.b16 %v3519
    %v3588 = vunpack.c.l.b16 %v3520
    %v3589 = vunpack.c.l.b16 %v3521
    %v3590 = vunpack.c.l.b16 %v3522
    %v3591 = vunpack.c.l.b16 %v3523
    %v3592 = vunpack.c.l.b16 %v3524
    %v3593 = vunpack.c.l.b16 %v3525
    %v3594 = vunpack.c.l.b16 %v3526
    %v3595 = vunpack.c.l.b16 %v3527
    %v3596 = vunpack.c.l.b16 %v3528
    %v3597 = vunpack.c.l.b16 %v3529
    %v3598 = vunpack.c.l.b16 %v3530
    %v3599 = vpack.c.b16 %v3568, %v3567
    %v3600 = vpack.c.b16 %v3570, %v3569
    %v3601 = vpack.c.b16 %v3572, %v3571
    %v3602 = vpack.c.b16 %v3574, %v3573
    %v3603 = vpack.c.b16 %v3576, %v3575
    %v3604 = vpack.c.b16 %v3578, %v3577
    %v3605 = vpack.c.b16 %v3580, %v3579
    %v3606 = vpack.c.b16 %v3582, %v3581
    %v3607 = vpack.c.b16 %v3584, %v3583
    %v3608 = vpack.c.b16 %v3586, %v3585
    %v3609 = vpack.c.b16 %v3588, %v3587
    %v3610 = vpack.c.b16 %v3590, %v3589
    %v3611 = vpack.c.b16 %v3592, %v3591
    %v3612 = vpack.c.b16 %v3594, %v3593
    %v3613 = vpack.c.b16 %v3596, %v3595
    %v3614 = vpack.c.b16 %v3598, %v3597
    %3631 = vmatpush.bf16.msra.mxu0 %v3606
    %3632 = vmatpush.bf16.msra.mxu0 %v3605
    %3633 = vmatpush.bf16.msra.mxu0 %v3604
    %3634 = vmatpush.bf16.msra.mxu0 %v3603
    %3635 = vmatpush.bf16.msra.mxu0 %v3602
    %3636 = vmatpush.bf16.msra.mxu0 %v3601
    %3637 = vmatpush.bf16.msra.mxu0 %v3600
    %3638 = vmatpush.bf16.msra.mxu0 %v3599
    %3639 = vmatmul.bf16.gmra.mxu0 %v3495
    %v3640 = vpop.f32.mrf.mxu0
    %v3641 = vadd.f32 %v3533, %v3640
    %v3642 = vpop.f32.mrf.mxu0
    %3643 = vdwg.mxu0
    %3644 = vmatpush.bf16.msra.mxu0 %v3614
    %3645 = vmatpush.bf16.msra.mxu0 %v3613
    %3646 = vmatpush.bf16.msra.mxu0 %v3612
    %3647 = vmatpush.bf16.msra.mxu0 %v3611
    %3648 = vmatpush.bf16.msra.mxu0 %v3610
    %3649 = vmatpush.bf16.msra.mxu0 %v3609
    %3650 = vmatpush.bf16.msra.mxu0 %v3608
    %3651 = vmatpush.bf16.msra.mxu0 %v3607
    %3652 = vmatmul.bf16.gmra.mxu0 %v3496
    %v3653 = vpop.f32.mrf.mxu0
    %v3654 = vadd.f32 %v3641, %v3653
    %v3655 = vpop.f32.mrf.mxu0
    %3656 = vdwg.mxu0
    %v3657 = vtanh.pop %v3654
    %vm3658 = vcmask 17408
    %3659 = vst.msk [vmem:[#allocation3] sm:$0x3] %vm3658, %v3657
    %v3660 = vld [vmem:[%s5] sm:$0xf]
    %v3661 = vld [vmem:[%s5 + $0x4] sm:$0xf]
    %v3662 = vld [vmem:[%s5 + $0x8] sm:$0xf]
    %v3663 = vld [vmem:[%s5 + $0xc] sm:$0xf]
    %v3664 = vld [vmem:[%s5 + $0x10] sm:$0xf]
    %v3665 = vld [vmem:[%s5 + $0x14] sm:$0xf]
    %v3666 = vld [vmem:[%s5 + $0x18] sm:$0xf]
    %v3667 = vld [vmem:[%s5 + $0x1c] sm:$0xf]
    %v3668 = vld [vmem:[%s5 + $0x20] sm:$0xf]
    %v3669 = vld [vmem:[%s5 + $0x24] sm:$0xf]
    %v3670 = vld [vmem:[%s5 + $0x28] sm:$0xf]
    %v3671 = vld [vmem:[%s5 + $0x2c] sm:$0xf]
    %v3672 = vld [vmem:[%s5 + $0x30] sm:$0xf]
    %v3673 = vld [vmem:[%s5 + $0x34] sm:$0xf]
    %v3674 = vld [vmem:[%s5 + $0x38] sm:$0xf]
    %v3675 = vld [vmem:[%s5 + $0x3c] sm:$0xf]
    %v3676 = vld [vmem:[%s5 + $0x40] sm:$0xf]
    %v3677 = vld [vmem:[%s5 + $0x44] sm:$0xf]
    %v3678 = vld [vmem:[%s5 + $0x48] sm:$0xf]
    %v3679 = vld [vmem:[%s5 + $0x4c] sm:$0xf]
    %v3680 = vld [vmem:[%s5 + $0x50] sm:$0xf]
    %v3681 = vld [vmem:[%s5 + $0x54] sm:$0xf]
    %v3682 = vld [vmem:[%s5 + $0x58] sm:$0xf]
    %v3683 = vld [vmem:[%s5 + $0x5c] sm:$0xf]
    %v3684 = vld [vmem:[%s5 + $0x60] sm:$0xf]
    %v3685 = vld [vmem:[%s5 + $0x64] sm:$0xf]
    %v3686 = vld [vmem:[%s5 + $0x68] sm:$0xf]
    %v3687 = vld [vmem:[%s5 + $0x6c] sm:$0xf]
    %v3688 = vld [vmem:[%s5 + $0x70] sm:$0xf]
    %v3689 = vld [vmem:[%s5 + $0x74] sm:$0xf]
    %v3690 = vld [vmem:[%s5 + $0x78] sm:$0xf]
    %v3691 = vld [vmem:[%s5 + $0x7c] sm:$0xf]
    %v3692 = vld [vmem:[#allocation2] sm:$0x1]
    %v3694 = vperm.slane %v3692, 0
    %v3728 = vunpack.c.l.b16 %v3660
    %v3729 = vunpack.c.l.b16 %v3661
    %v3730 = vunpack.c.l.b16 %v3662
    %v3731 = vunpack.c.l.b16 %v3663
    %v3732 = vunpack.c.l.b16 %v3664
    %v3733 = vunpack.c.l.b16 %v3665
    %v3734 = vunpack.c.l.b16 %v3666
    %v3735 = vunpack.c.l.b16 %v3667
    %v3736 = vunpack.c.l.b16 %v3668
    %v3737 = vunpack.c.l.b16 %v3669
    %v3738 = vunpack.c.l.b16 %v3670
    %v3739 = vunpack.c.l.b16 %v3671
    %v3740 = vunpack.c.l.b16 %v3672
    %v3741 = vunpack.c.l.b16 %v3673
    %v3742 = vunpack.c.l.b16 %v3674
    %v3743 = vunpack.c.l.b16 %v3675
    %v3744 = vunpack.c.l.b16 %v3676
    %v3745 = vunpack.c.l.b16 %v3677
    %v3746 = vunpack.c.l.b16 %v3678
    %v3747 = vunpack.c.l.b16 %v3679
    %v3748 = vunpack.c.l.b16 %v3680
    %v3749 = vunpack.c.l.b16 %v3681
    %v3750 = vunpack.c.l.b16 %v3682
    %v3751 = vunpack.c.l.b16 %v3683
    %v3752 = vunpack.c.l.b16 %v3684
    %v3753 = vunpack.c.l.b16 %v3685
    %v3754 = vunpack.c.l.b16 %v3686
    %v3755 = vunpack.c.l.b16 %v3687
    %v3756 = vunpack.c.l.b16 %v3688
    %v3757 = vunpack.c.l.b16 %v3689
    %v3758 = vunpack.c.l.b16 %v3690
    %v3759 = vunpack.c.l.b16 %v3691
    %v3760 = vpack.c.b16 %v3729, %v3728
    %v3761 = vpack.c.b16 %v3731, %v3730
    %v3762 = vpack.c.b16 %v3733, %v3732
    %v3763 = vpack.c.b16 %v3735, %v3734
    %v3764 = vpack.c.b16 %v3737, %v3736
    %v3765 = vpack.c.b16 %v3739, %v3738
    %v3766 = vpack.c.b16 %v3741, %v3740
    %v3767 = vpack.c.b16 %v3743, %v3742
    %v3768 = vpack.c.b16 %v3745, %v3744
    %v3769 = vpack.c.b16 %v3747, %v3746
    %v3770 = vpack.c.b16 %v3749, %v3748
    %v3771 = vpack.c.b16 %v3751, %v3750
    %v3772 = vpack.c.b16 %v3753, %v3752
    %v3773 = vpack.c.b16 %v3755, %v3754
    %v3774 = vpack.c.b16 %v3757, %v3756
    %v3775 = vpack.c.b16 %v3759, %v3758
    %3792 = vmatpush.bf16.msra.mxu0 %v3767
    %3793 = vmatpush.bf16.msra.mxu0 %v3766
    %3794 = vmatpush.bf16.msra.mxu0 %v3765
    %3795 = vmatpush.bf16.msra.mxu0 %v3764
    %3796 = vmatpush.bf16.msra.mxu0 %v3763
    %3797 = vmatpush.bf16.msra.mxu0 %v3762
    %3798 = vmatpush.bf16.msra.mxu0 %v3761
    %3799 = vmatpush.bf16.msra.mxu0 %v3760
    %3800 = vmatmul.bf16.gmra.mxu0 %v3497
    %v3801 = vpop.f32.mrf.mxu0
    %v3802 = vadd.f32 %v3694, %v3801
    %v3803 = vpop.f32.mrf.mxu0
    %3804 = vdwg.mxu0
    %3805 = vmatpush.bf16.msra.mxu0 %v3775
    %3806 = vmatpush.bf16.msra.mxu0 %v3774
    %3807 = vmatpush.bf16.msra.mxu0 %v3773
    %3808 = vmatpush.bf16.msra.mxu0 %v3772
    %3809 = vmatpush.bf16.msra.mxu0 %v3771
    %3810 = vmatpush.bf16.msra.mxu0 %v3770
    %3811 = vmatpush.bf16.msra.mxu0 %v3769
    %3812 = vmatpush.bf16.msra.mxu0 %v3768
    %3813 = vmatmul.bf16.gmra.mxu0 %v3498
    %v3814 = vpop.f32.mrf.mxu0
    %v3815 = vadd.f32 %v3802, %v3814
    %v3816 = vpop.f32.mrf.mxu0
    %3817 = vdwg.mxu0
    %vm3818 = vcmask 1024
    %3819 = vst.msk [vmem:[%s8] sm:$0x3] %vm3818, %v3815
    // Predicated region
    $region30: #{actor_critic_forward.7} parent=1 // pred_check
      _
    $region31: #{actor_critic_forward.7} parent=1 // pred_check_branch
      %3821 = sbr.rel (0) target = $region33
    $region32: #{actor_critic_forward.7} parent=1 // pred_region
      %3823 = vsyncadd [#allocation4], 0
      %s3825 = sshll.u32 [#allocation3], 4
      %s3826 = int_to_ptr.vmem [resolvable:$true] %s3825
      %s3827 = sshll.u32 %s7, 4
      %s3828 = int_to_ptr.hbm [resolvable:$true] %s3827
      %3830 = dma.vmem_to_hbm [thread:$0]  %s3826, 32, %s3828, [#allocation4]
    $region33: #{actor_critic_forward.7} parent=1 // pred_fallthru
      _
    // Predicated region
    $region34: #{actor_critic_forward.7} parent=1 // pred_check
      _
    $region35: #{actor_critic_forward.7} parent=1 // pred_check_branch
      %3832 = sbr.rel (0) target = $region37
    $region36: #{actor_critic_forward.7} parent=1 // pred_region
      _
    $region37: #{actor_critic_forward.7} parent=1 // pred_fallthru
      _
    // Predicated region
    $region38: #{actor_critic_forward.7} parent=1 // pred_check
      _
    $region39: #{actor_critic_forward.7} parent=1 // pred_check_branch
      %3834 = sbr.rel (0) target = $region41
    $region40: #{actor_critic_forward.7} parent=1 // pred_region
      %3836 = dma.done [#allocation4], 32
    $region41: #{actor_critic_forward.7} parent=1 // pred_fallthru
      _
    // Predicated region
    $region42: #{actor_critic_forward.7} parent=1 // pred_check
      _
    $region43: #{actor_critic_forward.7} parent=1 // pred_check_branch
      %3838 = sbr.rel (0) target = $region45
    $region44: #{actor_critic_forward.7} parent=1 // pred_region
      _
    $region45: #{actor_critic_forward.7} parent=1 // pred_fallthru
      _
    %3839 = vsyncpa [#allocation4], 1

</llo_original>
